<compile_context>
chip_gen: v7x
topology: tpu7x:2x2x1
jax: 0.10.0
libtpu: 0.0.40
codegen_flags: <defaults>
</compile_context>

<pallas_src>
import jax
import jax.numpy as jnp
from jax.experimental import pallas as pl
from jax.experimental.pallas import tpu as pltpu

# ---- synthetic "BERT" config (small, deterministic) ----
VOCAB = 64
H = 32           # hidden size
NH = 2           # attention heads
DH = H // NH     # head dim
FFN = 64         # intermediate size
LAYERS = 2
MAX_POS = 16
LN_EPS = 1e-12


# ---------------- fused Pallas kernel (single invocation, whole batch) ----------------

def fused_encoder_kernel(x_ref, bias_ref, pool_ref,
                         wattn_ref, bqkv_ref, wffn_ref, b1_ref, vecs_ref,
                         out_ref):
    scale = 1.0 / (DH ** 0.5)
    bs = x_ref.shape[0]                        # B*S rows, batch folded into M dimension

    vecs = vecs_ref[...]                       # (2 + 6*LAYERS, H) packed LN/bias vectors

    def vrow(r):                               # (1, H) row of the packed vector slab
        return vecs[r:r + 1, :]

    def ln(v, g, b):
        mu = jnp.mean(v, axis=-1, keepdims=True)
        var = jnp.mean((v - mu) ** 2, axis=-1, keepdims=True)
        return (v - mu) * jax.lax.rsqrt(var + LN_EPS) * g + b

    bias = bias_ref[...]                       # (BS, BS) block-diagonal additive mask bias

    # embedding layernorm
    x = ln(x_ref[...], vrow(0), vrow(1))       # (BS, H)

    for l in range(LAYERS):                    # static unroll (LAYERS=2); TODO(synk): fori_loop at depth
        base_v = 2 + 6 * l

        # ---- multi-head self-attention: per-head weights addressed by leading-dim index ----
        ctx_proj = jnp.zeros((bs, H), jnp.float32)
        for h in range(NH):
            wq = wattn_ref[(l * 4 + 0) * NH + h]      # (H, DH)
            wk = wattn_ref[(l * 4 + 1) * NH + h]      # (H, DH)
            wv = wattn_ref[(l * 4 + 2) * NH + h]      # (H, DH)
            woT = wattn_ref[(l * 4 + 3) * NH + h]     # (H, DH) == Wo_head^T

            q = jnp.dot(x, wq, preferred_element_type=jnp.float32) + bqkv_ref[(l * 3 + 0) * NH + h]
            k = jnp.dot(x, wk, preferred_element_type=jnp.float32) + bqkv_ref[(l * 3 + 1) * NH + h]
            v = jnp.dot(x, wv, preferred_element_type=jnp.float32) + bqkv_ref[(l * 3 + 2) * NH + h]

            s = jax.lax.dot_general(q, k, (((1,), (1,)), ((), ())),
                                    preferred_element_type=jnp.float32) * scale + bias
            s = s - jnp.max(s, axis=-1, keepdims=True)
            p = jnp.exp(s)
            p = p / jnp.sum(p, axis=-1, keepdims=True)          # exact divide (fidelity)

            ctx = jnp.dot(p, v, preferred_element_type=jnp.float32)      # (BS, DH)
            # concat(heads) @ W_o  ==  sum_h ctx_h @ Wo_h  (woT stored transposed)
            ctx_proj = ctx_proj + jax.lax.dot_general(
                ctx, woT, (((1,), (1,)), ((), ())),
                preferred_element_type=jnp.float32)                       # (BS, H)

        # residual add fused into layernorm input
        x = ln(x + ctx_proj + vrow(base_v + 0), vrow(base_v + 1), vrow(base_v + 2))

        # ---- FFN ----
        ffn = jnp.dot(x, wffn_ref[2 * l], preferred_element_type=jnp.float32) + b1_ref[l]
        ffn = jax.nn.gelu(ffn, approximate=True)   # TODO(synk): erf-GELU for exact HF match
        ffn = jax.lax.dot_general(ffn, wffn_ref[2 * l + 1], (((1,), (1,)), ((), ())),
                                  preferred_element_type=jnp.float32) + vrow(base_v + 3)
        x = ln(x + ffn, vrow(base_v + 4), vrow(base_v + 5))

    # ---- masked mean pool (block-diag pooling matmul) + L2 normalize epilogue ----
    pw = pool_ref[...]                                                     # (B, BS)
    summed = jnp.dot(pw, x, preferred_element_type=jnp.float32)            # (B, H)
    counts = jnp.maximum(jnp.sum(pw, axis=-1, keepdims=True), 1e-9)        # clamp(min=1e-9)
    pooled = summed / counts
    nrm = jnp.sqrt(jnp.sum(pooled * pooled, axis=-1, keepdims=True))
    out_ref[...] = pooled / jnp.maximum(nrm, 1e-12)                        # F.normalize(p=2)


# ---------------- wrapper: embedding-gather glue + single pallas_call ----------------

def contrastive_forward(params, input_ids, attention_mask):
    """Mirror of ContrastiveModel.forward: BERT -> mean_pooling -> F.normalize."""
    B, S = input_ids.shape
    BS = B * S

    # embedding gathers (plain-JAX glue)
    # TODO(synk): fuse via PrefetchScalarGridSpec scalar prefetch + pl.Element row gather.
    tok = params["word_emb"][input_ids]                         # (B, S, H)
    pos = params["pos_emb"][:S][None, :, :]                     # (1, S, H)
    tt = params["type_emb"][0][None, None, :]                   # token_type_ids == 0
    x_emb = (tok + pos + tt).reshape(BS, H).astype(jnp.float32)

    # block-diagonal attention bias + pooling weights (tiny glue, derived from the mask)
    m = attention_mask.astype(jnp.float32)                      # (B, S)
    mflat = m.reshape(1, BS)
    bid = jnp.arange(BS, dtype=jnp.int32) // S
    same = (bid[:, None] == bid[None, :]).astype(jnp.float32)   # (BS, BS)
    attn_bias = (1.0 - same * mflat) * (-1e9)                   # 0 for valid same-batch keys
    pool_w = (jnp.arange(B, dtype=jnp.int32)[:, None] == bid[None, :]).astype(jnp.float32) * mflat

    # advisory cost estimate (lets XLA schedule the custom call vs. surrounding gathers)
    mm_flops = LAYERS * (
        2 * BS * H * (3 * H)                 # Q/K/V projections
        + NH * (2 * BS * BS * DH) * 2        # scores + context
        + 2 * BS * H * H                     # output projection
        + 2 * (2 * BS * H * FFN)             # FFN up + down
    ) + 2 * B * BS * H                       # pooling matmul
    transc = LAYERS * (NH * BS * BS + BS * FFN)
    args = (x_emb, attn_bias, pool_w, params["w_attn"], params["b_qkv"],
            params["w_ffn"], params["b1"], params["vecs"])
    bytes_accessed = 4 * (sum(int(a.size) for a in args) + B * H)
    ce = pl.CostEstimate(flops=mm_flops, transcendentals=transc, bytes_accessed=bytes_accessed)

    out = pl.pallas_call(
        fused_encoder_kernel,
        out_shape=jax.ShapeDtypeStruct((B, H), jnp.float32),
        in_specs=[pl.BlockSpec(memory_space=pltpu.MemorySpace.VMEM)] * len(args),
        out_specs=pl.BlockSpec(memory_space=pltpu.MemorySpace.VMEM),
        cost_estimate=ce,
    )(*args)
    return out


# ---------------- deterministic parameter init (standard layout) + packing ----------------

def init_params(key):
    ks = iter(jax.random.split(key, 64))

    def nrm(shape):
        return 0.02 * jax.random.normal(next(ks), shape, dtype=jnp.float32)

    ones = lambda s: jnp.ones(s, jnp.float32)
    zeros = lambda s: jnp.zeros(s, jnp.float32)

    return {
        "word_emb": nrm((VOCAB, H)),
        "pos_emb": nrm((MAX_POS, H)),
        "type_emb": nrm((2, H)),
        "emb_ln_g": ones((H,)), "emb_ln_b": zeros((H,)),
        "wq": nrm((LAYERS, H, H)), "bq": nrm((LAYERS, H)),
        "wk": nrm((LAYERS, H, H)), "bk": nrm((LAYERS, H)),
        "wv": nrm((LAYERS, H, H)), "bv": nrm((LAYERS, H)),
        "wo": nrm((LAYERS, H, H)), "bo": nrm((LAYERS, H)),
        "ln1_g": ones((LAYERS, H)), "ln1_b": zeros((LAYERS, H)),
        "w1": nrm((LAYERS, H, FFN)), "b1": nrm((LAYERS, FFN)),
        "w2": nrm((LAYERS, FFN, H)), "b2": nrm((LAYERS, H)),
        "ln2_g": ones((LAYERS, H)), "ln2_b": zeros((LAYERS, H)),
    }


def pack_params(std):
    """Repack standard BERT-layout weights into the kernel's slab layout."""
    w_attn, b_qkv, w_ffn, b1 = [], [], [], []
    vecs = [std["emb_ln_g"], std["emb_ln_b"]]
    for l in range(LAYERS):
        for name in ("wq", "wk", "wv"):                         # heads = DH-column blocks
            for h in range(NH):
                w_attn.append(std[name][l][:, h * DH:(h + 1) * DH])
        for h in range(NH):                                     # Wo heads = DH-row blocks, transposed
            w_attn.append(std["wo"][l][h * DH:(h + 1) * DH, :].T)
        for name in ("bq", "bk", "bv"):
            for h in range(NH):
                b_qkv.append(std[name][l][h * DH:(h + 1) * DH][None, :])
        w_ffn.append(std["w1"][l])
        w_ffn.append(std["w2"][l].T)
        b1.append(std["b1"][l][None, :])
        vecs += [std["bo"][l], std["ln1_g"][l], std["ln1_b"][l],
                 std["b2"][l], std["ln2_g"][l], std["ln2_b"][l]]
    return {
        "word_emb": std["word_emb"], "pos_emb": std["pos_emb"], "type_emb": std["type_emb"],
        "w_attn": jnp.stack(w_attn),      # (LAYERS*4*NH, H, DH)
        "b_qkv": jnp.stack(b_qkv),        # (LAYERS*3*NH, 1, DH)
        "w_ffn": jnp.stack(w_ffn),        # (LAYERS*2, H, FFN)   [W1, W2^T]
        "b1": jnp.stack(b1),              # (LAYERS, 1, FFN)
        "vecs": jnp.stack(vecs),          # (2 + 6*LAYERS, H)
    }


# ---------------- pure-JAX reference (standard per-batch, per-head BERT math) ----------------

def reference_forward(std, input_ids, attention_mask):
    B, S = input_ids.shape

    def ln(v, g, b):
        mu = jnp.mean(v, -1, keepdims=True)
        var = jnp.mean((v - mu) ** 2, -1, keepdims=True)
        return (v - mu) * jax.lax.rsqrt(var + LN_EPS) * g + b

    x = std["word_emb"][input_ids] + std["pos_emb"][:S][None] + std["type_emb"][0][None, None]
    x = ln(x, std["emb_ln_g"], std["emb_ln_b"])
    m = attention_mask.astype(jnp.float32)
    bias = (1.0 - m)[:, None, None, :] * (-1e9)

    def split(t):
        return t.reshape(B, S, NH, DH).transpose(0, 2, 1, 3)

    for l in range(LAYERS):
        q = split(x @ std["wq"][l] + std["bq"][l])
        k = split(x @ std["wk"][l] + std["bk"][l])
        v = split(x @ std["wv"][l] + std["bv"][l])
        s = jnp.einsum("bhqd,bhkd->bhqk", q, k) / (DH ** 0.5) + bias
        p = jax.nn.softmax(s, axis=-1)
        ctx = jnp.einsum("bhqk,bhkd->bhqd", p, v).transpose(0, 2, 1, 3).reshape(B, S, H)
        x = ln(x + ctx @ std["wo"][l] + std["bo"][l], std["ln1_g"][l], std["ln1_b"][l])
        f = jax.nn.gelu(x @ std["w1"][l] + std["b1"][l], approximate=True)
        x = ln(x + f @ std["w2"][l] + std["b2"][l], std["ln2_g"][l], std["ln2_b"][l])

    me = m[..., None]
    pooled = jnp.sum(x * me, axis=1) / jnp.maximum(jnp.sum(me, axis=1), 1e-9)
    return pooled / jnp.maximum(jnp.linalg.norm(pooled, axis=1, keepdims=True), 1e-12)


if __name__ == "__main__":
    key = jax.random.PRNGKey(0)
    pkey, ikey = jax.random.split(key)
    std = init_params(pkey)
    packed = pack_params(std)

    B, S = 2, 8
    input_ids = jax.random.randint(ikey, (B, S), 0, VOCAB, dtype=jnp.int32)
    attention_mask = jnp.array(
        [[1, 1, 1, 1, 1, 1, 0, 0],
         [1, 1, 1, 1, 0, 0, 0, 0]], dtype=jnp.int32)

    fwd = jax.jit(contrastive_forward)
    emb = fwd(packed, input_ids, attention_mask)
    jax.block_until_ready(emb)

    assert emb.shape == (B, H), emb.shape
    # rows should be unit-norm (F.normalize semantics)
    norms = jnp.linalg.norm(emb, axis=1)
    assert bool(jnp.all(jnp.abs(norms - 1.0) < 1e-4)), norms
    # fused-kernel output should match the standard per-batch / per-head reference
    ref = reference_forward(std, input_ids, attention_mask)
    assert bool(jnp.all(jnp.abs(emb - ref) < 5e-3)), float(jnp.max(jnp.abs(emb - ref)))

    print("KERNEL_OK")
</pallas_src>

<mosaic_0001>
module attributes {stable_mosaic.version = 11 : i64} {
  func.func @fused_encoder_kernel(%arg0: memref<16x32xf32, #tpu.memory_space<vmem>>, %arg1: memref<16x16xf32, #tpu.memory_space<vmem>>, %arg2: memref<2x16xf32, #tpu.memory_space<vmem>>, %arg3: memref<16x32x16xf32, #tpu.memory_space<vmem>>, %arg4: memref<12x1x16xf32, #tpu.memory_space<vmem>>, %arg5: memref<4x32x64xf32, #tpu.memory_space<vmem>>, %arg6: memref<2x1x64xf32, #tpu.memory_space<vmem>>, %arg7: memref<14x32xf32, #tpu.memory_space<vmem>>, %arg8: memref<2x32xf32, #tpu.memory_space<vmem>>) attributes {dimension_semantics = [], scalar_prefetch = 0 : i64, scratch_operands = 0 : i64, tpu.core_type = #tpu.core_type<tc>} {
    %c0 = arith.constant 0 : index
    %c0_0 = arith.constant 0 : index
    %0 = vector.load %arg7[%c0, %c0_0] : memref<14x32xf32, #tpu.memory_space<vmem>>, vector<14x32xf32>
    %c0_1 = arith.constant 0 : index
    %c0_2 = arith.constant 0 : index
    %1 = vector.load %arg1[%c0_1, %c0_2] : memref<16x16xf32, #tpu.memory_space<vmem>>, vector<16x16xf32>
    %c0_3 = arith.constant 0 : index
    %c0_4 = arith.constant 0 : index
    %2 = vector.load %arg0[%c0_3, %c0_4] : memref<16x32xf32, #tpu.memory_space<vmem>>, vector<16x32xf32>
    %3 = vector.extract_strided_slice %0 {offsets = [0, 0], sizes = [1, 32], strides = [1, 1]} : vector<14x32xf32> to vector<1x32xf32>
    %4 = vector.extract_strided_slice %0 {offsets = [1, 0], sizes = [1, 32], strides = [1, 1]} : vector<14x32xf32> to vector<1x32xf32>
    %cst = arith.constant dense<0.000000e+00> : vector<16xf32>
    %5 = vector.multi_reduction <add>, %2, %cst [1] : vector<16x32xf32> to vector<16xf32>
    %6 = vector.shape_cast %5 : vector<16xf32> to vector<16x1xf32>
    %cst_5 = arith.constant 3.200000e+01 : f32
    %7 = vector.broadcast %cst_5 : f32 to vector<16x1xf32>
    %8 = arith.divf %6, %7 : vector<16x1xf32>
    %9 = vector.broadcast %8 : vector<16x1xf32> to vector<16x32xf32>
    %10 = arith.subf %2, %9 : vector<16x32xf32>
    %11 = arith.mulf %10, %10 : vector<16x32xf32>
    %cst_6 = arith.constant dense<0.000000e+00> : vector<16xf32>
    %12 = vector.multi_reduction <add>, %11, %cst_6 [1] : vector<16x32xf32> to vector<16xf32>
    %13 = vector.shape_cast %12 : vector<16xf32> to vector<16x1xf32>
    %cst_7 = arith.constant 3.200000e+01 : f32
    %14 = vector.broadcast %cst_7 : f32 to vector<16x1xf32>
    %15 = arith.divf %13, %14 : vector<16x1xf32>
    %16 = vector.broadcast %8 : vector<16x1xf32> to vector<16x32xf32>
    %17 = arith.subf %2, %16 : vector<16x32xf32>
    %cst_8 = arith.constant 9.99999996E-13 : f32
    %18 = vector.broadcast %cst_8 : f32 to vector<16x1xf32>
    %19 = arith.addf %15, %18 : vector<16x1xf32>
    %20 = math.rsqrt %19 : vector<16x1xf32>
    %21 = vector.broadcast %20 : vector<16x1xf32> to vector<16x32xf32>
    %22 = arith.mulf %17, %21 : vector<16x32xf32>
    %23 = vector.broadcast %3 : vector<1x32xf32> to vector<16x32xf32>
    %24 = arith.mulf %22, %23 : vector<16x32xf32>
    %25 = vector.broadcast %4 : vector<1x32xf32> to vector<16x32xf32>
    %26 = arith.addf %24, %25 : vector<16x32xf32>
    %cst_9 = arith.constant 0.000000e+00 : f32
    %27 = vector.broadcast %cst_9 : f32 to vector<16x32xf32>
    %c0_10 = arith.constant 0 : index
    %c0_11 = arith.constant 0 : index
    %c0_12 = arith.constant 0 : index
    %28 = vector.load %arg3[%c0_10, %c0_11, %c0_12] : memref<16x32x16xf32, #tpu.memory_space<vmem>>, vector<1x32x16xf32>
    %29 = vector.shape_cast %28 : vector<1x32x16xf32> to vector<32x16xf32>
    %c2 = arith.constant 2 : index
    %c0_13 = arith.constant 0 : index
    %c0_14 = arith.constant 0 : index
    %30 = vector.load %arg3[%c2, %c0_13, %c0_14] : memref<16x32x16xf32, #tpu.memory_space<vmem>>, vector<1x32x16xf32>
    %31 = vector.shape_cast %30 : vector<1x32x16xf32> to vector<32x16xf32>
    %c4 = arith.constant 4 : index
    %c0_15 = arith.constant 0 : index
    %c0_16 = arith.constant 0 : index
    %32 = vector.load %arg3[%c4, %c0_15, %c0_16] : memref<16x32x16xf32, #tpu.memory_space<vmem>>, vector<1x32x16xf32>
    %33 = vector.shape_cast %32 : vector<1x32x16xf32> to vector<32x16xf32>
    %c6 = arith.constant 6 : index
    %c0_17 = arith.constant 0 : index
    %c0_18 = arith.constant 0 : index
    %34 = vector.load %arg3[%c6, %c0_17, %c0_18] : memref<16x32x16xf32, #tpu.memory_space<vmem>>, vector<1x32x16xf32>
    %35 = vector.shape_cast %34 : vector<1x32x16xf32> to vector<32x16xf32>
    %cst_19 = arith.constant dense<0.000000e+00> : vector<16x16xf32>
    %36 = tpu.matmul %26, %29, %cst_19 {dimension_numbers = #tpu.dot_dimension_numbers<[1], [0], [0], [1], [0, 0, 1, 1], [], []>} : vector<16x32xf32>, vector<32x16xf32>, vector<16x16xf32> -> vector<16x16xf32>
    %c0_20 = arith.constant 0 : index
    %c0_21 = arith.constant 0 : index
    %c0_22 = arith.constant 0 : index
    %37 = vector.load %arg4[%c0_20, %c0_21, %c0_22] : memref<12x1x16xf32, #tpu.memory_space<vmem>>, vector<1x1x16xf32>
    %38 = vector.shape_cast %37 : vector<1x1x16xf32> to vector<1x16xf32>
    %39 = vector.broadcast %38 : vector<1x16xf32> to vector<16x16xf32>
    %40 = arith.addf %36, %39 : vector<16x16xf32>
    %cst_23 = arith.constant dense<0.000000e+00> : vector<16x16xf32>
    %41 = tpu.matmul %26, %31, %cst_23 {dimension_numbers = #tpu.dot_dimension_numbers<[1], [0], [0], [1], [0, 0, 1, 1], [], []>} : vector<16x32xf32>, vector<32x16xf32>, vector<16x16xf32> -> vector<16x16xf32>
    %c2_24 = arith.constant 2 : index
    %c0_25 = arith.constant 0 : index
    %c0_26 = arith.constant 0 : index
    %42 = vector.load %arg4[%c2_24, %c0_25, %c0_26] : memref<12x1x16xf32, #tpu.memory_space<vmem>>, vector<1x1x16xf32>
    %43 = vector.shape_cast %42 : vector<1x1x16xf32> to vector<1x16xf32>
    %44 = vector.broadcast %43 : vector<1x16xf32> to vector<16x16xf32>
    %45 = arith.addf %41, %44 : vector<16x16xf32>
    %cst_27 = arith.constant dense<0.000000e+00> : vector<16x16xf32>
    %46 = tpu.matmul %26, %33, %cst_27 {dimension_numbers = #tpu.dot_dimension_numbers<[1], [0], [0], [1], [0, 0, 1, 1], [], []>} : vector<16x32xf32>, vector<32x16xf32>, vector<16x16xf32> -> vector<16x16xf32>
    %c4_28 = arith.constant 4 : index
    %c0_29 = arith.constant 0 : index
    %c0_30 = arith.constant 0 : index
    %47 = vector.load %arg4[%c4_28, %c0_29, %c0_30] : memref<12x1x16xf32, #tpu.memory_space<vmem>>, vector<1x1x16xf32>
    %48 = vector.shape_cast %47 : vector<1x1x16xf32> to vector<1x16xf32>
    %49 = vector.broadcast %48 : vector<1x16xf32> to vector<16x16xf32>
    %50 = arith.addf %46, %49 : vector<16x16xf32>
    %cst_31 = arith.constant dense<0.000000e+00> : vector<16x16xf32>
    %51 = tpu.matmul %40, %45, %cst_31 {dimension_numbers = #tpu.dot_dimension_numbers<[1], [1], [0], [0], [0, 0, 1, 0], [], []>} : vector<16x16xf32>, vector<16x16xf32>, vector<16x16xf32> -> vector<16x16xf32>
    %cst_32 = arith.constant 2.500000e-01 : f32
    %52 = vector.broadcast %cst_32 : f32 to vector<16x16xf32>
    %53 = arith.mulf %51, %52 : vector<16x16xf32>
    %54 = arith.addf %53, %1 : vector<16x16xf32>
    %cst_33 = arith.constant dense<0xFF800000> : vector<16xf32>
    %55 = vector.multi_reduction <maximumf>, %54, %cst_33 [1] : vector<16x16xf32> to vector<16xf32>
    %56 = vector.shape_cast %55 : vector<16xf32> to vector<16x1xf32>
    %57 = vector.broadcast %56 : vector<16x1xf32> to vector<16x16xf32>
    %58 = arith.subf %54, %57 : vector<16x16xf32>
    %59 = math.exp %58 : vector<16x16xf32>
    %cst_34 = arith.constant dense<0.000000e+00> : vector<16xf32>
    %60 = vector.multi_reduction <add>, %59, %cst_34 [1] : vector<16x16xf32> to vector<16xf32>
    %61 = vector.shape_cast %60 : vector<16xf32> to vector<16x1xf32>
    %62 = vector.broadcast %61 : vector<16x1xf32> to vector<16x16xf32>
    %63 = arith.divf %59, %62 : vector<16x16xf32>
    %cst_35 = arith.constant dense<0.000000e+00> : vector<16x16xf32>
    %64 = tpu.matmul %63, %50, %cst_35 {dimension_numbers = #tpu.dot_dimension_numbers<[1], [0], [0], [1], [0, 0, 1, 1], [], []>} : vector<16x16xf32>, vector<16x16xf32>, vector<16x16xf32> -> vector<16x16xf32>
    %cst_36 = arith.constant dense<0.000000e+00> : vector<16x32xf32>
    %65 = tpu.matmul %64, %35, %cst_36 {dimension_numbers = #tpu.dot_dimension_numbers<[1], [1], [0], [0], [0, 0, 1, 0], [], []>} : vector<16x16xf32>, vector<32x16xf32>, vector<16x32xf32> -> vector<16x32xf32>
    %66 = arith.addf %27, %65 : vector<16x32xf32>
    %c1 = arith.constant 1 : index
    %c0_37 = arith.constant 0 : index
    %c0_38 = arith.constant 0 : index
    %67 = vector.load %arg3[%c1, %c0_37, %c0_38] : memref<16x32x16xf32, #tpu.memory_space<vmem>>, vector<1x32x16xf32>
    %68 = vector.shape_cast %67 : vector<1x32x16xf32> to vector<32x16xf32>
    %c3 = arith.constant 3 : index
    %c0_39 = arith.constant 0 : index
    %c0_40 = arith.constant 0 : index
    %69 = vector.load %arg3[%c3, %c0_39, %c0_40] : memref<16x32x16xf32, #tpu.memory_space<vmem>>, vector<1x32x16xf32>
    %70 = vector.shape_cast %69 : vector<1x32x16xf32> to vector<32x16xf32>
    %c5 = arith.constant 5 : index
    %c0_41 = arith.constant 0 : index
    %c0_42 = arith.constant 0 : index
    %71 = vector.load %arg3[%c5, %c0_41, %c0_42] : memref<16x32x16xf32, #tpu.memory_space<vmem>>, vector<1x32x16xf32>
    %72 = vector.shape_cast %71 : vector<1x32x16xf32> to vector<32x16xf32>
    %c7 = arith.constant 7 : index
    %c0_43 = arith.constant 0 : index
    %c0_44 = arith.constant 0 : index
    %73 = vector.load %arg3[%c7, %c0_43, %c0_44] : memref<16x32x16xf32, #tpu.memory_space<vmem>>, vector<1x32x16xf32>
    %74 = vector.shape_cast %73 : vector<1x32x16xf32> to vector<32x16xf32>
    %cst_45 = arith.constant dense<0.000000e+00> : vector<16x16xf32>
    %75 = tpu.matmul %26, %68, %cst_45 {dimension_numbers = #tpu.dot_dimension_numbers<[1], [0], [0], [1], [0, 0, 1, 1], [], []>} : vector<16x32xf32>, vector<32x16xf32>, vector<16x16xf32> -> vector<16x16xf32>
    %c1_46 = arith.constant 1 : index
    %c0_47 = arith.constant 0 : index
    %c0_48 = arith.constant 0 : index
    %76 = vector.load %arg4[%c1_46, %c0_47, %c0_48] : memref<12x1x16xf32, #tpu.memory_space<vmem>>, vector<1x1x16xf32>
    %77 = vector.shape_cast %76 : vector<1x1x16xf32> to vector<1x16xf32>
    %78 = vector.broadcast %77 : vector<1x16xf32> to vector<16x16xf32>
    %79 = arith.addf %75, %78 : vector<16x16xf32>
    %cst_49 = arith.constant dense<0.000000e+00> : vector<16x16xf32>
    %80 = tpu.matmul %26, %70, %cst_49 {dimension_numbers = #tpu.dot_dimension_numbers<[1], [0], [0], [1], [0, 0, 1, 1], [], []>} : vector<16x32xf32>, vector<32x16xf32>, vector<16x16xf32> -> vector<16x16xf32>
    %c3_50 = arith.constant 3 : index
    %c0_51 = arith.constant 0 : index
    %c0_52 = arith.constant 0 : index
    %81 = vector.load %arg4[%c3_50, %c0_51, %c0_52] : memref<12x1x16xf32, #tpu.memory_space<vmem>>, vector<1x1x16xf32>
    %82 = vector.shape_cast %81 : vector<1x1x16xf32> to vector<1x16xf32>
    %83 = vector.broadcast %82 : vector<1x16xf32> to vector<16x16xf32>
    %84 = arith.addf %80, %83 : vector<16x16xf32>
    %cst_53 = arith.constant dense<0.000000e+00> : vector<16x16xf32>
    %85 = tpu.matmul %26, %72, %cst_53 {dimension_numbers = #tpu.dot_dimension_numbers<[1], [0], [0], [1], [0, 0, 1, 1], [], []>} : vector<16x32xf32>, vector<32x16xf32>, vector<16x16xf32> -> vector<16x16xf32>
    %c5_54 = arith.constant 5 : index
    %c0_55 = arith.constant 0 : index
    %c0_56 = arith.constant 0 : index
    %86 = vector.load %arg4[%c5_54, %c0_55, %c0_56] : memref<12x1x16xf32, #tpu.memory_space<vmem>>, vector<1x1x16xf32>
    %87 = vector.shape_cast %86 : vector<1x1x16xf32> to vector<1x16xf32>
    %88 = vector.broadcast %87 : vector<1x16xf32> to vector<16x16xf32>
    %89 = arith.addf %85, %88 : vector<16x16xf32>
    %cst_57 = arith.constant dense<0.000000e+00> : vector<16x16xf32>
    %90 = tpu.matmul %79, %84, %cst_57 {dimension_numbers = #tpu.dot_dimension_numbers<[1], [1], [0], [0], [0, 0, 1, 0], [], []>} : vector<16x16xf32>, vector<16x16xf32>, vector<16x16xf32> -> vector<16x16xf32>
    %cst_58 = arith.constant 2.500000e-01 : f32
    %91 = vector.broadcast %cst_58 : f32 to vector<16x16xf32>
    %92 = arith.mulf %90, %91 : vector<16x16xf32>
    %93 = arith.addf %92, %1 : vector<16x16xf32>
    %cst_59 = arith.constant dense<0xFF800000> : vector<16xf32>
    %94 = vector.multi_reduction <maximumf>, %93, %cst_59 [1] : vector<16x16xf32> to vector<16xf32>
    %95 = vector.shape_cast %94 : vector<16xf32> to vector<16x1xf32>
    %96 = vector.broadcast %95 : vector<16x1xf32> to vector<16x16xf32>
    %97 = arith.subf %93, %96 : vector<16x16xf32>
    %98 = math.exp %97 : vector<16x16xf32>
    %cst_60 = arith.constant dense<0.000000e+00> : vector<16xf32>
    %99 = vector.multi_reduction <add>, %98, %cst_60 [1] : vector<16x16xf32> to vector<16xf32>
    %100 = vector.shape_cast %99 : vector<16xf32> to vector<16x1xf32>
    %101 = vector.broadcast %100 : vector<16x1xf32> to vector<16x16xf32>
    %102 = arith.divf %98, %101 : vector<16x16xf32>
    %cst_61 = arith.constant dense<0.000000e+00> : vector<16x16xf32>
    %103 = tpu.matmul %102, %89, %cst_61 {dimension_numbers = #tpu.dot_dimension_numbers<[1], [0], [0], [1], [0, 0, 1, 1], [], []>} : vector<16x16xf32>, vector<16x16xf32>, vector<16x16xf32> -> vector<16x16xf32>
    %cst_62 = arith.constant dense<0.000000e+00> : vector<16x32xf32>
    %104 = tpu.matmul %103, %74, %cst_62 {dimension_numbers = #tpu.dot_dimension_numbers<[1], [1], [0], [0], [0, 0, 1, 0], [], []>} : vector<16x16xf32>, vector<32x16xf32>, vector<16x32xf32> -> vector<16x32xf32>
    %105 = arith.addf %66, %104 : vector<16x32xf32>
    %106 = arith.addf %26, %105 : vector<16x32xf32>
    %107 = vector.extract_strided_slice %0 {offsets = [2, 0], sizes = [1, 32], strides = [1, 1]} : vector<14x32xf32> to vector<1x32xf32>
    %108 = vector.broadcast %107 : vector<1x32xf32> to vector<16x32xf32>
    %109 = arith.addf %106, %108 : vector<16x32xf32>
    %110 = vector.extract_strided_slice %0 {offsets = [3, 0], sizes = [1, 32], strides = [1, 1]} : vector<14x32xf32> to vector<1x32xf32>
    %111 = vector.extract_strided_slice %0 {offsets = [4, 0], sizes = [1, 32], strides = [1, 1]} : vector<14x32xf32> to vector<1x32xf32>
    %cst_63 = arith.constant dense<0.000000e+00> : vector<16xf32>
    %112 = vector.multi_reduction <add>, %109, %cst_63 [1] : vector<16x32xf32> to vector<16xf32>
    %113 = vector.shape_cast %112 : vector<16xf32> to vector<16x1xf32>
    %cst_64 = arith.constant 3.200000e+01 : f32
    %114 = vector.broadcast %cst_64 : f32 to vector<16x1xf32>
    %115 = arith.divf %113, %114 : vector<16x1xf32>
    %116 = vector.broadcast %115 : vector<16x1xf32> to vector<16x32xf32>
    %117 = arith.subf %109, %116 : vector<16x32xf32>
    %118 = arith.mulf %117, %117 : vector<16x32xf32>
    %cst_65 = arith.constant dense<0.000000e+00> : vector<16xf32>
    %119 = vector.multi_reduction <add>, %118, %cst_65 [1] : vector<16x32xf32> to vector<16xf32>
    %120 = vector.shape_cast %119 : vector<16xf32> to vector<16x1xf32>
    %cst_66 = arith.constant 3.200000e+01 : f32
    %121 = vector.broadcast %cst_66 : f32 to vector<16x1xf32>
    %122 = arith.divf %120, %121 : vector<16x1xf32>
    %123 = vector.broadcast %115 : vector<16x1xf32> to vector<16x32xf32>
    %124 = arith.subf %109, %123 : vector<16x32xf32>
    %cst_67 = arith.constant 9.99999996E-13 : f32
    %125 = vector.broadcast %cst_67 : f32 to vector<16x1xf32>
    %126 = arith.addf %122, %125 : vector<16x1xf32>
    %127 = math.rsqrt %126 : vector<16x1xf32>
    %128 = vector.broadcast %127 : vector<16x1xf32> to vector<16x32xf32>
    %129 = arith.mulf %124, %128 : vector<16x32xf32>
    %130 = vector.broadcast %110 : vector<1x32xf32> to vector<16x32xf32>
    %131 = arith.mulf %129, %130 : vector<16x32xf32>
    %132 = vector.broadcast %111 : vector<1x32xf32> to vector<16x32xf32>
    %133 = arith.addf %131, %132 : vector<16x32xf32>
    %c0_68 = arith.constant 0 : index
    %c0_69 = arith.constant 0 : index
    %c0_70 = arith.constant 0 : index
    %134 = vector.load %arg5[%c0_68, %c0_69, %c0_70] : memref<4x32x64xf32, #tpu.memory_space<vmem>>, vector<1x32x64xf32>
    %135 = vector.shape_cast %134 : vector<1x32x64xf32> to vector<32x64xf32>
    %cst_71 = arith.constant dense<0.000000e+00> : vector<16x64xf32>
    %136 = tpu.matmul %133, %135, %cst_71 {dimension_numbers = #tpu.dot_dimension_numbers<[1], [0], [0], [1], [0, 0, 1, 1], [], []>} : vector<16x32xf32>, vector<32x64xf32>, vector<16x64xf32> -> vector<16x64xf32>
    %c0_72 = arith.constant 0 : index
    %c0_73 = arith.constant 0 : index
    %c0_74 = arith.constant 0 : index
    %137 = vector.load %arg6[%c0_72, %c0_73, %c0_74] : memref<2x1x64xf32, #tpu.memory_space<vmem>>, vector<1x1x64xf32>
    %138 = vector.shape_cast %137 : vector<1x1x64xf32> to vector<1x64xf32>
    %139 = vector.broadcast %138 : vector<1x64xf32> to vector<16x64xf32>
    %140 = arith.addf %136, %139 : vector<16x64xf32>
    %141 = arith.mulf %140, %140 : vector<16x64xf32>
    %142 = arith.mulf %140, %141 : vector<16x64xf32>
    %cst_75 = arith.constant 4.471500e-02 : f32
    %143 = vector.broadcast %cst_75 : f32 to vector<16x64xf32>
    %144 = arith.mulf %143, %142 : vector<16x64xf32>
    %145 = arith.addf %140, %144 : vector<16x64xf32>
    %cst_76 = arith.constant 0.797884583 : f32
    %146 = vector.broadcast %cst_76 : f32 to vector<16x64xf32>
    %147 = arith.mulf %146, %145 : vector<16x64xf32>
    %148 = math.tanh %147 : vector<16x64xf32>
    %cst_77 = arith.constant 1.000000e+00 : f32
    %149 = vector.broadcast %cst_77 : f32 to vector<16x64xf32>
    %150 = arith.addf %149, %148 : vector<16x64xf32>
    %cst_78 = arith.constant 5.000000e-01 : f32
    %151 = vector.broadcast %cst_78 : f32 to vector<16x64xf32>
    %152 = arith.mulf %151, %150 : vector<16x64xf32>
    %153 = arith.mulf %140, %152 : vector<16x64xf32>
    %c1_79 = arith.constant 1 : index
    %c0_80 = arith.constant 0 : index
    %c0_81 = arith.constant 0 : index
    %154 = vector.load %arg5[%c1_79, %c0_80, %c0_81] : memref<4x32x64xf32, #tpu.memory_space<vmem>>, vector<1x32x64xf32>
    %155 = vector.shape_cast %154 : vector<1x32x64xf32> to vector<32x64xf32>
    %cst_82 = arith.constant dense<0.000000e+00> : vector<16x32xf32>
    %156 = tpu.matmul %153, %155, %cst_82 {dimension_numbers = #tpu.dot_dimension_numbers<[1], [1], [0], [0], [0, 0, 1, 0], [], []>} : vector<16x64xf32>, vector<32x64xf32>, vector<16x32xf32> -> vector<16x32xf32>
    %157 = vector.extract_strided_slice %0 {offsets = [5, 0], sizes = [1, 32], strides = [1, 1]} : vector<14x32xf32> to vector<1x32xf32>
    %158 = vector.broadcast %157 : vector<1x32xf32> to vector<16x32xf32>
    %159 = arith.addf %156, %158 : vector<16x32xf32>
    %160 = arith.addf %133, %159 : vector<16x32xf32>
    %161 = vector.extract_strided_slice %0 {offsets = [6, 0], sizes = [1, 32], strides = [1, 1]} : vector<14x32xf32> to vector<1x32xf32>
    %162 = vector.extract_strided_slice %0 {offsets = [7, 0], sizes = [1, 32], strides = [1, 1]} : vector<14x32xf32> to vector<1x32xf32>
    %cst_83 = arith.constant dense<0.000000e+00> : vector<16xf32>
    %163 = vector.multi_reduction <add>, %160, %cst_83 [1] : vector<16x32xf32> to vector<16xf32>
    %164 = vector.shape_cast %163 : vector<16xf32> to vector<16x1xf32>
    %cst_84 = arith.constant 3.200000e+01 : f32
    %165 = vector.broadcast %cst_84 : f32 to vector<16x1xf32>
    %166 = arith.divf %164, %165 : vector<16x1xf32>
    %167 = vector.broadcast %166 : vector<16x1xf32> to vector<16x32xf32>
    %168 = arith.subf %160, %167 : vector<16x32xf32>
    %169 = arith.mulf %168, %168 : vector<16x32xf32>
    %cst_85 = arith.constant dense<0.000000e+00> : vector<16xf32>
    %170 = vector.multi_reduction <add>, %169, %cst_85 [1] : vector<16x32xf32> to vector<16xf32>
    %171 = vector.shape_cast %170 : vector<16xf32> to vector<16x1xf32>
    %cst_86 = arith.constant 3.200000e+01 : f32
    %172 = vector.broadcast %cst_86 : f32 to vector<16x1xf32>
    %173 = arith.divf %171, %172 : vector<16x1xf32>
    %174 = vector.broadcast %166 : vector<16x1xf32> to vector<16x32xf32>
    %175 = arith.subf %160, %174 : vector<16x32xf32>
    %cst_87 = arith.constant 9.99999996E-13 : f32
    %176 = vector.broadcast %cst_87 : f32 to vector<16x1xf32>
    %177 = arith.addf %173, %176 : vector<16x1xf32>
    %178 = math.rsqrt %177 : vector<16x1xf32>
    %179 = vector.broadcast %178 : vector<16x1xf32> to vector<16x32xf32>
    %180 = arith.mulf %175, %179 : vector<16x32xf32>
    %181 = vector.broadcast %161 : vector<1x32xf32> to vector<16x32xf32>
    %182 = arith.mulf %180, %181 : vector<16x32xf32>
    %183 = vector.broadcast %162 : vector<1x32xf32> to vector<16x32xf32>
    %184 = arith.addf %182, %183 : vector<16x32xf32>
    %cst_88 = arith.constant 0.000000e+00 : f32
    %185 = vector.broadcast %cst_88 : f32 to vector<16x32xf32>
    %c8 = arith.constant 8 : index
    %c0_89 = arith.constant 0 : index
    %c0_90 = arith.constant 0 : index
    %186 = vector.load %arg3[%c8, %c0_89, %c0_90] : memref<16x32x16xf32, #tpu.memory_space<vmem>>, vector<1x32x16xf32>
    %187 = vector.shape_cast %186 : vector<1x32x16xf32> to vector<32x16xf32>
    %c10 = arith.constant 10 : index
    %c0_91 = arith.constant 0 : index
    %c0_92 = arith.constant 0 : index
    %188 = vector.load %arg3[%c10, %c0_91, %c0_92] : memref<16x32x16xf32, #tpu.memory_space<vmem>>, vector<1x32x16xf32>
    %189 = vector.shape_cast %188 : vector<1x32x16xf32> to vector<32x16xf32>
    %c12 = arith.constant 12 : index
    %c0_93 = arith.constant 0 : index
    %c0_94 = arith.constant 0 : index
    %190 = vector.load %arg3[%c12, %c0_93, %c0_94] : memref<16x32x16xf32, #tpu.memory_space<vmem>>, vector<1x32x16xf32>
    %191 = vector.shape_cast %190 : vector<1x32x16xf32> to vector<32x16xf32>
    %c14 = arith.constant 14 : index
    %c0_95 = arith.constant 0 : index
    %c0_96 = arith.constant 0 : index
    %192 = vector.load %arg3[%c14, %c0_95, %c0_96] : memref<16x32x16xf32, #tpu.memory_space<vmem>>, vector<1x32x16xf32>
    %193 = vector.shape_cast %192 : vector<1x32x16xf32> to vector<32x16xf32>
    %cst_97 = arith.constant dense<0.000000e+00> : vector<16x16xf32>
    %194 = tpu.matmul %184, %187, %cst_97 {dimension_numbers = #tpu.dot_dimension_numbers<[1], [0], [0], [1], [0, 0, 1, 1], [], []>} : vector<16x32xf32>, vector<32x16xf32>, vector<16x16xf32> -> vector<16x16xf32>
    %c6_98 = arith.constant 6 : index
    %c0_99 = arith.constant 0 : index
    %c0_100 = arith.constant 0 : index
    %195 = vector.load %arg4[%c6_98, %c0_99, %c0_100] : memref<12x1x16xf32, #tpu.memory_space<vmem>>, vector<1x1x16xf32>
    %196 = vector.shape_cast %195 : vector<1x1x16xf32> to vector<1x16xf32>
    %197 = vector.broadcast %196 : vector<1x16xf32> to vector<16x16xf32>
    %198 = arith.addf %194, %197 : vector<16x16xf32>
    %cst_101 = arith.constant dense<0.000000e+00> : vector<16x16xf32>
    %199 = tpu.matmul %184, %189, %cst_101 {dimension_numbers = #tpu.dot_dimension_numbers<[1], [0], [0], [1], [0, 0, 1, 1], [], []>} : vector<16x32xf32>, vector<32x16xf32>, vector<16x16xf32> -> vector<16x16xf32>
    %c8_102 = arith.constant 8 : index
    %c0_103 = arith.constant 0 : index
    %c0_104 = arith.constant 0 : index
    %200 = vector.load %arg4[%c8_102, %c0_103, %c0_104] : memref<12x1x16xf32, #tpu.memory_space<vmem>>, vector<1x1x16xf32>
    %201 = vector.shape_cast %200 : vector<1x1x16xf32> to vector<1x16xf32>
    %202 = vector.broadcast %201 : vector<1x16xf32> to vector<16x16xf32>
    %203 = arith.addf %199, %202 : vector<16x16xf32>
    %cst_105 = arith.constant dense<0.000000e+00> : vector<16x16xf32>
    %204 = tpu.matmul %184, %191, %cst_105 {dimension_numbers = #tpu.dot_dimension_numbers<[1], [0], [0], [1], [0, 0, 1, 1], [], []>} : vector<16x32xf32>, vector<32x16xf32>, vector<16x16xf32> -> vector<16x16xf32>
    %c10_106 = arith.constant 10 : index
    %c0_107 = arith.constant 0 : index
    %c0_108 = arith.constant 0 : index
    %205 = vector.load %arg4[%c10_106, %c0_107, %c0_108] : memref<12x1x16xf32, #tpu.memory_space<vmem>>, vector<1x1x16xf32>
    %206 = vector.shape_cast %205 : vector<1x1x16xf32> to vector<1x16xf32>
    %207 = vector.broadcast %206 : vector<1x16xf32> to vector<16x16xf32>
    %208 = arith.addf %204, %207 : vector<16x16xf32>
    %cst_109 = arith.constant dense<0.000000e+00> : vector<16x16xf32>
    %209 = tpu.matmul %198, %203, %cst_109 {dimension_numbers = #tpu.dot_dimension_numbers<[1], [1], [0], [0], [0, 0, 1, 0], [], []>} : vector<16x16xf32>, vector<16x16xf32>, vector<16x16xf32> -> vector<16x16xf32>
    %cst_110 = arith.constant 2.500000e-01 : f32
    %210 = vector.broadcast %cst_110 : f32 to vector<16x16xf32>
    %211 = arith.mulf %209, %210 : vector<16x16xf32>
    %212 = arith.addf %211, %1 : vector<16x16xf32>
    %cst_111 = arith.constant dense<0xFF800000> : vector<16xf32>
    %213 = vector.multi_reduction <maximumf>, %212, %cst_111 [1] : vector<16x16xf32> to vector<16xf32>
    %214 = vector.shape_cast %213 : vector<16xf32> to vector<16x1xf32>
    %215 = vector.broadcast %214 : vector<16x1xf32> to vector<16x16xf32>
    %216 = arith.subf %212, %215 : vector<16x16xf32>
    %217 = math.exp %216 : vector<16x16xf32>
    %cst_112 = arith.constant dense<0.000000e+00> : vector<16xf32>
    %218 = vector.multi_reduction <add>, %217, %cst_112 [1] : vector<16x16xf32> to vector<16xf32>
    %219 = vector.shape_cast %218 : vector<16xf32> to vector<16x1xf32>
    %220 = vector.broadcast %219 : vector<16x1xf32> to vector<16x16xf32>
    %221 = arith.divf %217, %220 : vector<16x16xf32>
    %cst_113 = arith.constant dense<0.000000e+00> : vector<16x16xf32>
    %222 = tpu.matmul %221, %208, %cst_113 {dimension_numbers = #tpu.dot_dimension_numbers<[1], [0], [0], [1], [0, 0, 1, 1], [], []>} : vector<16x16xf32>, vector<16x16xf32>, vector<16x16xf32> -> vector<16x16xf32>
    %cst_114 = arith.constant dense<0.000000e+00> : vector<16x32xf32>
    %223 = tpu.matmul %222, %193, %cst_114 {dimension_numbers = #tpu.dot_dimension_numbers<[1], [1], [0], [0], [0, 0, 1, 0], [], []>} : vector<16x16xf32>, vector<32x16xf32>, vector<16x32xf32> -> vector<16x32xf32>
    %224 = arith.addf %185, %223 : vector<16x32xf32>
    %c9 = arith.constant 9 : index
    %c0_115 = arith.constant 0 : index
    %c0_116 = arith.constant 0 : index
    %225 = vector.load %arg3[%c9, %c0_115, %c0_116] : memref<16x32x16xf32, #tpu.memory_space<vmem>>, vector<1x32x16xf32>
    %226 = vector.shape_cast %225 : vector<1x32x16xf32> to vector<32x16xf32>
    %c11 = arith.constant 11 : index
    %c0_117 = arith.constant 0 : index
    %c0_118 = arith.constant 0 : index
    %227 = vector.load %arg3[%c11, %c0_117, %c0_118] : memref<16x32x16xf32, #tpu.memory_space<vmem>>, vector<1x32x16xf32>
    %228 = vector.shape_cast %227 : vector<1x32x16xf32> to vector<32x16xf32>
    %c13 = arith.constant 13 : index
    %c0_119 = arith.constant 0 : index
    %c0_120 = arith.constant 0 : index
    %229 = vector.load %arg3[%c13, %c0_119, %c0_120] : memref<16x32x16xf32, #tpu.memory_space<vmem>>, vector<1x32x16xf32>
    %230 = vector.shape_cast %229 : vector<1x32x16xf32> to vector<32x16xf32>
    %c15 = arith.constant 15 : index
    %c0_121 = arith.constant 0 : index
    %c0_122 = arith.constant 0 : index
    %231 = vector.load %arg3[%c15, %c0_121, %c0_122] : memref<16x32x16xf32, #tpu.memory_space<vmem>>, vector<1x32x16xf32>
    %232 = vector.shape_cast %231 : vector<1x32x16xf32> to vector<32x16xf32>
    %cst_123 = arith.constant dense<0.000000e+00> : vector<16x16xf32>
    %233 = tpu.matmul %184, %226, %cst_123 {dimension_numbers = #tpu.dot_dimension_numbers<[1], [0], [0], [1], [0, 0, 1, 1], [], []>} : vector<16x32xf32>, vector<32x16xf32>, vector<16x16xf32> -> vector<16x16xf32>
    %c7_124 = arith.constant 7 : index
    %c0_125 = arith.constant 0 : index
    %c0_126 = arith.constant 0 : index
    %234 = vector.load %arg4[%c7_124, %c0_125, %c0_126] : memref<12x1x16xf32, #tpu.memory_space<vmem>>, vector<1x1x16xf32>
    %235 = vector.shape_cast %234 : vector<1x1x16xf32> to vector<1x16xf32>
    %236 = vector.broadcast %235 : vector<1x16xf32> to vector<16x16xf32>
    %237 = arith.addf %233, %236 : vector<16x16xf32>
    %cst_127 = arith.constant dense<0.000000e+00> : vector<16x16xf32>
    %238 = tpu.matmul %184, %228, %cst_127 {dimension_numbers = #tpu.dot_dimension_numbers<[1], [0], [0], [1], [0, 0, 1, 1], [], []>} : vector<16x32xf32>, vector<32x16xf32>, vector<16x16xf32> -> vector<16x16xf32>
    %c9_128 = arith.constant 9 : index
    %c0_129 = arith.constant 0 : index
    %c0_130 = arith.constant 0 : index
    %239 = vector.load %arg4[%c9_128, %c0_129, %c0_130] : memref<12x1x16xf32, #tpu.memory_space<vmem>>, vector<1x1x16xf32>
    %240 = vector.shape_cast %239 : vector<1x1x16xf32> to vector<1x16xf32>
    %241 = vector.broadcast %240 : vector<1x16xf32> to vector<16x16xf32>
    %242 = arith.addf %238, %241 : vector<16x16xf32>
    %cst_131 = arith.constant dense<0.000000e+00> : vector<16x16xf32>
    %243 = tpu.matmul %184, %230, %cst_131 {dimension_numbers = #tpu.dot_dimension_numbers<[1], [0], [0], [1], [0, 0, 1, 1], [], []>} : vector<16x32xf32>, vector<32x16xf32>, vector<16x16xf32> -> vector<16x16xf32>
    %c11_132 = arith.constant 11 : index
    %c0_133 = arith.constant 0 : index
    %c0_134 = arith.constant 0 : index
    %244 = vector.load %arg4[%c11_132, %c0_133, %c0_134] : memref<12x1x16xf32, #tpu.memory_space<vmem>>, vector<1x1x16xf32>
    %245 = vector.shape_cast %244 : vector<1x1x16xf32> to vector<1x16xf32>
    %246 = vector.broadcast %245 : vector<1x16xf32> to vector<16x16xf32>
    %247 = arith.addf %243, %246 : vector<16x16xf32>
    %cst_135 = arith.constant dense<0.000000e+00> : vector<16x16xf32>
    %248 = tpu.matmul %237, %242, %cst_135 {dimension_numbers = #tpu.dot_dimension_numbers<[1], [1], [0], [0], [0, 0, 1, 0], [], []>} : vector<16x16xf32>, vector<16x16xf32>, vector<16x16xf32> -> vector<16x16xf32>
    %cst_136 = arith.constant 2.500000e-01 : f32
    %249 = vector.broadcast %cst_136 : f32 to vector<16x16xf32>
    %250 = arith.mulf %248, %249 : vector<16x16xf32>
    %251 = arith.addf %250, %1 : vector<16x16xf32>
    %cst_137 = arith.constant dense<0xFF800000> : vector<16xf32>
    %252 = vector.multi_reduction <maximumf>, %251, %cst_137 [1] : vector<16x16xf32> to vector<16xf32>
    %253 = vector.shape_cast %252 : vector<16xf32> to vector<16x1xf32>
    %254 = vector.broadcast %253 : vector<16x1xf32> to vector<16x16xf32>
    %255 = arith.subf %251, %254 : vector<16x16xf32>
    %256 = math.exp %255 : vector<16x16xf32>
    %cst_138 = arith.constant dense<0.000000e+00> : vector<16xf32>
    %257 = vector.multi_reduction <add>, %256, %cst_138 [1] : vector<16x16xf32> to vector<16xf32>
    %258 = vector.shape_cast %257 : vector<16xf32> to vector<16x1xf32>
    %259 = vector.broadcast %258 : vector<16x1xf32> to vector<16x16xf32>
    %260 = arith.divf %256, %259 : vector<16x16xf32>
    %cst_139 = arith.constant dense<0.000000e+00> : vector<16x16xf32>
    %261 = tpu.matmul %260, %247, %cst_139 {dimension_numbers = #tpu.dot_dimension_numbers<[1], [0], [0], [1], [0, 0, 1, 1], [], []>} : vector<16x16xf32>, vector<16x16xf32>, vector<16x16xf32> -> vector<16x16xf32>
    %cst_140 = arith.constant dense<0.000000e+00> : vector<16x32xf32>
    %262 = tpu.matmul %261, %232, %cst_140 {dimension_numbers = #tpu.dot_dimension_numbers<[1], [1], [0], [0], [0, 0, 1, 0], [], []>} : vector<16x16xf32>, vector<32x16xf32>, vector<16x32xf32> -> vector<16x32xf32>
    %263 = arith.addf %224, %262 : vector<16x32xf32>
    %264 = arith.addf %184, %263 : vector<16x32xf32>
    %265 = vector.extract_strided_slice %0 {offsets = [8, 0], sizes = [1, 32], strides = [1, 1]} : vector<14x32xf32> to vector<1x32xf32>
    %266 = vector.broadcast %265 : vector<1x32xf32> to vector<16x32xf32>
    %267 = arith.addf %264, %266 : vector<16x32xf32>
    %268 = vector.extract_strided_slice %0 {offsets = [9, 0], sizes = [1, 32], strides = [1, 1]} : vector<14x32xf32> to vector<1x32xf32>
    %269 = vector.extract_strided_slice %0 {offsets = [10, 0], sizes = [1, 32], strides = [1, 1]} : vector<14x32xf32> to vector<1x32xf32>
    %cst_141 = arith.constant dense<0.000000e+00> : vector<16xf32>
    %270 = vector.multi_reduction <add>, %267, %cst_141 [1] : vector<16x32xf32> to vector<16xf32>
    %271 = vector.shape_cast %270 : vector<16xf32> to vector<16x1xf32>
    %cst_142 = arith.constant 3.200000e+01 : f32
    %272 = vector.broadcast %cst_142 : f32 to vector<16x1xf32>
    %273 = arith.divf %271, %272 : vector<16x1xf32>
    %274 = vector.broadcast %273 : vector<16x1xf32> to vector<16x32xf32>
    %275 = arith.subf %267, %274 : vector<16x32xf32>
    %276 = arith.mulf %275, %275 : vector<16x32xf32>
    %cst_143 = arith.constant dense<0.000000e+00> : vector<16xf32>
    %277 = vector.multi_reduction <add>, %276, %cst_143 [1] : vector<16x32xf32> to vector<16xf32>
    %278 = vector.shape_cast %277 : vector<16xf32> to vector<16x1xf32>
    %cst_144 = arith.constant 3.200000e+01 : f32
    %279 = vector.broadcast %cst_144 : f32 to vector<16x1xf32>
    %280 = arith.divf %278, %279 : vector<16x1xf32>
    %281 = vector.broadcast %273 : vector<16x1xf32> to vector<16x32xf32>
    %282 = arith.subf %267, %281 : vector<16x32xf32>
    %cst_145 = arith.constant 9.99999996E-13 : f32
    %283 = vector.broadcast %cst_145 : f32 to vector<16x1xf32>
    %284 = arith.addf %280, %283 : vector<16x1xf32>
    %285 = math.rsqrt %284 : vector<16x1xf32>
    %286 = vector.broadcast %285 : vector<16x1xf32> to vector<16x32xf32>
    %287 = arith.mulf %282, %286 : vector<16x32xf32>
    %288 = vector.broadcast %268 : vector<1x32xf32> to vector<16x32xf32>
    %289 = arith.mulf %287, %288 : vector<16x32xf32>
    %290 = vector.broadcast %269 : vector<1x32xf32> to vector<16x32xf32>
    %291 = arith.addf %289, %290 : vector<16x32xf32>
    %c2_146 = arith.constant 2 : index
    %c0_147 = arith.constant 0 : index
    %c0_148 = arith.constant 0 : index
    %292 = vector.load %arg5[%c2_146, %c0_147, %c0_148] : memref<4x32x64xf32, #tpu.memory_space<vmem>>, vector<1x32x64xf32>
    %293 = vector.shape_cast %292 : vector<1x32x64xf32> to vector<32x64xf32>
    %cst_149 = arith.constant dense<0.000000e+00> : vector<16x64xf32>
    %294 = tpu.matmul %291, %293, %cst_149 {dimension_numbers = #tpu.dot_dimension_numbers<[1], [0], [0], [1], [0, 0, 1, 1], [], []>} : vector<16x32xf32>, vector<32x64xf32>, vector<16x64xf32> -> vector<16x64xf32>
    %c1_150 = arith.constant 1 : index
    %c0_151 = arith.constant 0 : index
    %c0_152 = arith.constant 0 : index
    %295 = vector.load %arg6[%c1_150, %c0_151, %c0_152] : memref<2x1x64xf32, #tpu.memory_space<vmem>>, vector<1x1x64xf32>
    %296 = vector.shape_cast %295 : vector<1x1x64xf32> to vector<1x64xf32>
    %297 = vector.broadcast %296 : vector<1x64xf32> to vector<16x64xf32>
    %298 = arith.addf %294, %297 : vector<16x64xf32>
    %299 = arith.mulf %298, %298 : vector<16x64xf32>
    %300 = arith.mulf %298, %299 : vector<16x64xf32>
    %cst_153 = arith.constant 4.471500e-02 : f32
    %301 = vector.broadcast %cst_153 : f32 to vector<16x64xf32>
    %302 = arith.mulf %301, %300 : vector<16x64xf32>
    %303 = arith.addf %298, %302 : vector<16x64xf32>
    %cst_154 = arith.constant 0.797884583 : f32
    %304 = vector.broadcast %cst_154 : f32 to vector<16x64xf32>
    %305 = arith.mulf %304, %303 : vector<16x64xf32>
    %306 = math.tanh %305 : vector<16x64xf32>
    %cst_155 = arith.constant 1.000000e+00 : f32
    %307 = vector.broadcast %cst_155 : f32 to vector<16x64xf32>
    %308 = arith.addf %307, %306 : vector<16x64xf32>
    %cst_156 = arith.constant 5.000000e-01 : f32
    %309 = vector.broadcast %cst_156 : f32 to vector<16x64xf32>
    %310 = arith.mulf %309, %308 : vector<16x64xf32>
    %311 = arith.mulf %298, %310 : vector<16x64xf32>
    %c3_157 = arith.constant 3 : index
    %c0_158 = arith.constant 0 : index
    %c0_159 = arith.constant 0 : index
    %312 = vector.load %arg5[%c3_157, %c0_158, %c0_159] : memref<4x32x64xf32, #tpu.memory_space<vmem>>, vector<1x32x64xf32>
    %313 = vector.shape_cast %312 : vector<1x32x64xf32> to vector<32x64xf32>
    %cst_160 = arith.constant dense<0.000000e+00> : vector<16x32xf32>
    %314 = tpu.matmul %311, %313, %cst_160 {dimension_numbers = #tpu.dot_dimension_numbers<[1], [1], [0], [0], [0, 0, 1, 0], [], []>} : vector<16x64xf32>, vector<32x64xf32>, vector<16x32xf32> -> vector<16x32xf32>
    %315 = vector.extract_strided_slice %0 {offsets = [11, 0], sizes = [1, 32], strides = [1, 1]} : vector<14x32xf32> to vector<1x32xf32>
    %316 = vector.broadcast %315 : vector<1x32xf32> to vector<16x32xf32>
    %317 = arith.addf %314, %316 : vector<16x32xf32>
    %318 = arith.addf %291, %317 : vector<16x32xf32>
    %319 = vector.extract_strided_slice %0 {offsets = [12, 0], sizes = [1, 32], strides = [1, 1]} : vector<14x32xf32> to vector<1x32xf32>
    %320 = vector.extract_strided_slice %0 {offsets = [13, 0], sizes = [1, 32], strides = [1, 1]} : vector<14x32xf32> to vector<1x32xf32>
    %cst_161 = arith.constant dense<0.000000e+00> : vector<16xf32>
    %321 = vector.multi_reduction <add>, %318, %cst_161 [1] : vector<16x32xf32> to vector<16xf32>
    %322 = vector.shape_cast %321 : vector<16xf32> to vector<16x1xf32>
    %cst_162 = arith.constant 3.200000e+01 : f32
    %323 = vector.broadcast %cst_162 : f32 to vector<16x1xf32>
    %324 = arith.divf %322, %323 : vector<16x1xf32>
    %325 = vector.broadcast %324 : vector<16x1xf32> to vector<16x32xf32>
    %326 = arith.subf %318, %325 : vector<16x32xf32>
    %327 = arith.mulf %326, %326 : vector<16x32xf32>
    %cst_163 = arith.constant dense<0.000000e+00> : vector<16xf32>
    %328 = vector.multi_reduction <add>, %327, %cst_163 [1] : vector<16x32xf32> to vector<16xf32>
    %329 = vector.shape_cast %328 : vector<16xf32> to vector<16x1xf32>
    %cst_164 = arith.constant 3.200000e+01 : f32
    %330 = vector.broadcast %cst_164 : f32 to vector<16x1xf32>
    %331 = arith.divf %329, %330 : vector<16x1xf32>
    %332 = vector.broadcast %324 : vector<16x1xf32> to vector<16x32xf32>
    %333 = arith.subf %318, %332 : vector<16x32xf32>
    %cst_165 = arith.constant 9.99999996E-13 : f32
    %334 = vector.broadcast %cst_165 : f32 to vector<16x1xf32>
    %335 = arith.addf %331, %334 : vector<16x1xf32>
    %336 = math.rsqrt %335 : vector<16x1xf32>
    %337 = vector.broadcast %336 : vector<16x1xf32> to vector<16x32xf32>
    %338 = arith.mulf %333, %337 : vector<16x32xf32>
    %339 = vector.broadcast %319 : vector<1x32xf32> to vector<16x32xf32>
    %340 = arith.mulf %338, %339 : vector<16x32xf32>
    %341 = vector.broadcast %320 : vector<1x32xf32> to vector<16x32xf32>
    %342 = arith.addf %340, %341 : vector<16x32xf32>
    %c0_166 = arith.constant 0 : index
    %c0_167 = arith.constant 0 : index
    %343 = vector.load %arg2[%c0_166, %c0_167] : memref<2x16xf32, #tpu.memory_space<vmem>>, vector<2x16xf32>
    %cst_168 = arith.constant dense<0.000000e+00> : vector<2x32xf32>
    %344 = tpu.matmul %343, %342, %cst_168 {dimension_numbers = #tpu.dot_dimension_numbers<[1], [0], [0], [1], [0, 0, 1, 1], [], []>} : vector<2x16xf32>, vector<16x32xf32>, vector<2x32xf32> -> vector<2x32xf32>
    %cst_169 = arith.constant dense<0.000000e+00> : vector<2xf32>
    %345 = vector.multi_reduction <add>, %343, %cst_169 [1] : vector<2x16xf32> to vector<2xf32>
    %346 = vector.shape_cast %345 : vector<2xf32> to vector<2x1xf32>
    %cst_170 = arith.constant 9.99999971E-10 : f32
    %347 = vector.broadcast %cst_170 : f32 to vector<2x1xf32>
    %348 = arith.maximumf %346, %347 : vector<2x1xf32>
    %349 = vector.broadcast %348 : vector<2x1xf32> to vector<2x32xf32>
    %350 = arith.divf %344, %349 : vector<2x32xf32>
    %351 = arith.mulf %350, %350 : vector<2x32xf32>
    %cst_171 = arith.constant dense<0.000000e+00> : vector<2xf32>
    %352 = vector.multi_reduction <add>, %351, %cst_171 [1] : vector<2x32xf32> to vector<2xf32>
    %353 = vector.shape_cast %352 : vector<2xf32> to vector<2x1xf32>
    %354 = math.sqrt %353 : vector<2x1xf32>
    %cst_172 = arith.constant 9.99999996E-13 : f32
    %355 = vector.broadcast %cst_172 : f32 to vector<2x1xf32>
    %356 = arith.maximumf %354, %355 : vector<2x1xf32>
    %357 = vector.broadcast %356 : vector<2x1xf32> to vector<2x32xf32>
    %358 = arith.divf %350, %357 : vector<2x32xf32>
    %c0_173 = arith.constant 0 : index
    %c0_174 = arith.constant 0 : index
    %359 = vector.load %arg8[%c0_173, %c0_174] : memref<2x32xf32, #tpu.memory_space<vmem>>, vector<2x32xf32>
    tpu.vector_store %arg8[%c0_173, %c0_174], %358 {strides = array<i32>} : memref<2x32xf32, #tpu.memory_space<vmem>>, vector<2x32xf32>,
    return
  }
}

</mosaic_0001>

<llo_original>
// kernel: mul.12
$region0: #{mul.12}
  %s0 = inlined_call_operand.vmem [shape: f32[2,8], index: 0, kind: input, shape index: {}]
  %s1 = inlined_call_operand.vmem [shape: f32[16], index: 1, kind: output, shape index: {}]
  $region1: #{mul.12} parent=0
    #allocation0 [shape = 'u8[4096]{0}', space=vmem, size = 0x1000, scoped, tag = 'scoped mem for output reshape']
    #allocation1 [shape = 'u8[4096]{0}', space=vmem, size = 0x1000, scoped, tag = 'scoped mem for input reshape']
    %s3 = sshllo.u32 0, 2
    %v4 = vld [vmem:[%s0] sm:%s3]
    %5 = vst [vmem:[#allocation1] sm:%s3] %v4
    %v6 = vld [vmem:[#allocation1] sm:$0x1]
    %vm7 = vcmask 64512
    %8 = vst.msk [vmem:[#allocation0] sm:$0x1] %vm7, %v6
    %s9 = scalar_lea.vmem [#allocation1], 1
    %v10 = vld [vmem:[%s9] sm:$0x1]
    %11 = vrot.lane.b32.xlu0 %v10, 8
    %v12 = vpop.permute.xlu0 %11
    %vm13 = vcmask 130112
    %14 = vst.msk [vmem:[#allocation0] sm:$0x1] %vm13, %v12
    %s16 = sshllo.u32 0, 1
    %v18 = vld [vmem:[#allocation0] sm:%s16]
    %s19 = sshllo.u32 0, 1
    %20 = vst [vmem:[%s1] sm:%s19] %v18

// kernel: contrastive_forward.1
$region0: #{contrastive_forward.1}
  #allocation0 [shape = 'u32[]', space=smem, size = 0x4, offset = 0x4, fixed_abs, tag = 'smem constant byte address 0x4 - core index']
  #allocation1 [shape = 'u32[144,128]{1,0:T(1,128)}', space=vmem, size = 0x12000, scoped, tag = 'internal scratch']
  %s0 = inlined_call_operand.vmem [shape: f32[16,32], index: 0, kind: input, shape index: {}]
  %s1 = inlined_call_operand.vmem [shape: f32[16,16], index: 1, kind: input, shape index: {}]
  %s2 = inlined_call_operand.vmem [shape: f32[2,16], index: 2, kind: input, shape index: {}]
  %s3 = inlined_call_operand.vmem [shape: f32[16,32,16], index: 3, kind: input, shape index: {}]
  %s4 = inlined_call_operand.vmem [shape: f32[12,1,16], index: 4, kind: input, shape index: {}]
  %s5 = inlined_call_operand.vmem [shape: f32[4,32,64], index: 5, kind: input, shape index: {}]
  %s6 = inlined_call_operand.vmem [shape: f32[2,1,64], index: 6, kind: input, shape index: {}]
  %s7 = inlined_call_operand.vmem [shape: f32[14,32], index: 7, kind: input, shape index: {}]
  %s8 = inlined_call_operand.hbm [shape: f32[2,32], index: 8, kind: output, shape index: {}]
  %s9 = sld [smem:[#allocation0]]
  $region42: #{contrastive_forward.1} parent=0
    _
  %s11 = ssub.s32 1, %s9
  %s12 = scalar_select 0, %s11, %s9
  $region1: #{contrastive_forward.1} parent=0
    #allocation2 [shape = 'u8[1024]{0}', space=vmem, size = 0x400, scoped, tag = 'output window, operand 0, single buffered']
    #allocation3 [shape = 's32[1]{0}', space=sflag, size = 0x4, scoped, tag = 'scoped memory for contrastive_forward.1']
    %13 = vsyncpa [#allocation3], 0
    // Predicated region
    $region2: #{contrastive_forward.1} parent=1 // pred_check
      _
    $region3: #{contrastive_forward.1} parent=1 // pred_check_branch
      %15 = sbr.rel (0) target = $region5
    $region4: #{contrastive_forward.1} parent=1 // pred_region
      _
    $region5: #{contrastive_forward.1} parent=1 // pred_fallthru
      _
    // Predicated region
    $region6: #{contrastive_forward.1} parent=1 // pred_check
      _
    $region7: #{contrastive_forward.1} parent=1 // pred_check_branch
      %17 = sbr.rel (0) target = $region9
    $region8: #{contrastive_forward.1} parent=1 // pred_region
      _
    $region9: #{contrastive_forward.1} parent=1 // pred_fallthru
      _
    // Predicated region
    $region10: #{contrastive_forward.1} parent=1 // pred_check
      _
    $region11: #{contrastive_forward.1} parent=1 // pred_check_branch
      %19 = sbr.rel (0) target = $region13
    $region12: #{contrastive_forward.1} parent=1 // pred_region
      _
    $region13: #{contrastive_forward.1} parent=1 // pred_fallthru
      _
    // Predicated region
    $region14: #{contrastive_forward.1} parent=1 // pred_check
      _
    $region15: #{contrastive_forward.1} parent=1 // pred_check_branch
      %21 = sbr.rel (0) target = $region17
    $region16: #{contrastive_forward.1} parent=1 // pred_region
      _
    $region17: #{contrastive_forward.1} parent=1 // pred_fallthru
      _
    // Predicated region
    $region18: #{contrastive_forward.1} parent=1 // pred_check
      _
    $region19: #{contrastive_forward.1} parent=1 // pred_check_branch
      %23 = sbr.rel (0) target = $region21
    $region20: #{contrastive_forward.1} parent=1 // pred_region
      _
    $region21: #{contrastive_forward.1} parent=1 // pred_fallthru
      _
    // Predicated region
    $region22: #{contrastive_forward.1} parent=1 // pred_check
      _
    $region23: #{contrastive_forward.1} parent=1 // pred_check_branch
      %25 = sbr.rel (0) target = $region25
    $region24: #{contrastive_forward.1} parent=1 // pred_region
      _
    $region25: #{contrastive_forward.1} parent=1 // pred_fallthru
      _
    // Predicated region
    $region26: #{contrastive_forward.1} parent=1 // pred_check
      _
    $region27: #{contrastive_forward.1} parent=1 // pred_check_branch
      %27 = sbr.rel (0) target = $region29
    $region28: #{contrastive_forward.1} parent=1 // pred_region
      _
    $region29: #{contrastive_forward.1} parent=1 // pred_fallthru
      _
    // Predicated region
    $region30: #{contrastive_forward.1} parent=1 // pred_check
      _
    $region31: #{contrastive_forward.1} parent=1 // pred_check_branch
      %29 = sbr.rel (0) target = $region33
    $region32: #{contrastive_forward.1} parent=1 // pred_region
      _
    $region33: #{contrastive_forward.1} parent=1 // pred_fallthru
      _
    %v30 = vld [vmem:[%s7] sm:$0xff]
    %v31 = vld [vmem:[%s7 + $0x8] sm:$0x3f]
    %v32 = vld [vmem:[%s1] sm:$0xff]
    %v33 = vld [vmem:[%s1 + $0x8] sm:$0xff]
    %v34 = vld [vmem:[%s0] sm:$0xff]
    %v35 = vld [vmem:[%s0 + $0x8] sm:$0xff]
    %vm36 = vcmask 261120
    %v37 = vsel %vm36, %v34, 0.0
    %38 = vadd.xlane.f32.xlu0 %v37
    %v39 = vpop.xlane.xlu0 %38
    %v40 = vsel %vm36, %v35, 0.0
    %41 = vadd.xlane.f32.xlu0 %v40
    %v42 = vpop.xlane.xlu0 %41
    %v43 = vrcp.pop 32.0
    %v44 = vmul.f32 %v39, %v43
    %v45 = vmul.f32 %v42, %v43
    %v46 = vsub.f32 %v34, %v44
    %v47 = vsub.f32 %v35, %v45
    %v48 = vmul.f32 %v46, %v46
    %v49 = vmul.f32 %v47, %v47
    %v50 = vsel %vm36, %v48, 0.0
    %51 = vadd.xlane.f32.xlu0 %v50
    %v52 = vpop.xlane.xlu0 %51
    %v53 = vsel %vm36, %v49, 0.0
    %54 = vadd.xlane.f32.xlu0 %v53
    %v55 = vpop.xlane.xlu0 %54
    %v56 = vmul.f32 %v52, %v43
    %v57 = vmul.f32 %v55, %v43
    %v58 = vadd.f32 %v56, 1e-12
    %v59 = vadd.f32 %v57, 1e-12
    %v60 = vrsqrt.pop %v58
    %v61 = vrsqrt.pop %v59
    %v62 = vmul.f32 %v46, %v60
    %v63 = vmul.f32 %v47, %v61
    %v64 = vlaneseq
    %v65 = vshrl.u32 %v64, 7
    %v66 = vsub.s32 0, %v65
    %v67 = vrot.slane %v30, %v66
    %v68 = vmul.f32 %v62, %v67
    %v69 = vmul.f32 %v63, %v67
    %v70 = vlaneseq
    %v71 = vshrl.u32 %v70, 7
    %v72 = vsub.s32 1, %v71
    %v73 = vrot.slane %v30, %v72
    %v74 = vadd.f32 %v68, %v73
    %v75 = vadd.f32 %v69, %v73
    %v76 = vld [vmem:[%s3] sm:$0xff]
    %v77 = vld [vmem:[%s3 + $0x8] sm:$0xff]
    %v78 = vld [vmem:[%s3 + $0x10] sm:$0xff]
    %v79 = vld [vmem:[%s3 + $0x18] sm:$0xff]
    %s80 = scalar_lea.vmem %s3, 64
    %v81 = vld [vmem:[%s80] sm:$0xff]
    %v82 = vld [vmem:[%s80 + $0x8] sm:$0xff]
    %v83 = vld [vmem:[%s80 + $0x10] sm:$0xff]
    %v84 = vld [vmem:[%s80 + $0x18] sm:$0xff]
    %s85 = scalar_lea.vmem %s3, 128
    %v86 = vld [vmem:[%s85] sm:$0xff]
    %v87 = vld [vmem:[%s85 + $0x8] sm:$0xff]
    %v88 = vld [vmem:[%s85 + $0x10] sm:$0xff]
    %v89 = vld [vmem:[%s85 + $0x18] sm:$0xff]
    %s90 = scalar_lea.vmem %s3, 192
    %v91 = vld [vmem:[%s90] sm:$0xff]
    %v92 = vld [vmem:[%s90 + $0x8] sm:$0xff]
    %v93 = vld [vmem:[%s90 + $0x10] sm:$0xff]
    %v94 = vld [vmem:[%s90 + $0x18] sm:$0xff]
    %v95 = vld [vmem:[%s4] sm:$0x1]
    %v97 = vlaneseq
    %v98 = vshrl.u32 %v97, 7
    %v99 = vsub.s32 0, %v98
    %v100 = vrot.slane %v95, %v99
    %v103 = vsel %vm36, %v74, 0
    %v106 = vsel %vm36, %v75, 0
    %108 = vmatprep.subr.mxu0 0.0
    %109 = vmatpush1.msra.mxu0 %v76
    %110 = vmatprep.subr.mxu0 0.0
    %111 = vmatpush1.msra.mxu0 %v77
    %112 = vmatprep.subr.mxu0 0.0
    %113 = vmatpush1.msra.mxu0 %v78
    %114 = vmatprep.subr.mxu0 0.0
    %115 = vmatpush1.msra.mxu0 %v79
    %116 = vmatprep.subr.mxu0 0.0
    %117 = vmatpush1.msra.mxu0 0.0
    %118 = vmatprep.subr.mxu0 0.0
    %119 = vmatpush1.msra.mxu0 0.0
    %120 = vmatprep.subr.mxu0 0.0
    %121 = vmatpush1.msra.mxu0 0.0
    %122 = vmatprep.subr.mxu0 0.0
    %123 = vmatpush1.msra.mxu0 0.0
    %124 = vmatprep.subr.mxu0 0.0
    %125 = vmatpush1.msra.mxu0 0.0
    %126 = vmatprep.subr.mxu0 0.0
    %127 = vmatpush1.msra.mxu0 0.0
    %128 = vmatprep.subr.mxu0 0.0
    %129 = vmatpush1.msra.mxu0 0.0
    %130 = vmatprep.subr.mxu0 0.0
    %131 = vmatpush1.msra.mxu0 0.0
    %132 = vmatprep.subr.mxu0 0.0
    %133 = vmatpush1.msra.mxu0 0.0
    %134 = vmatprep.subr.mxu0 0.0
    %135 = vmatpush1.msra.mxu0 0.0
    %136 = vmatprep.subr.mxu0 0.0
    %137 = vmatpush1.msra.mxu0 0.0
    %138 = vmatprep.subr.mxu0 0.0
    %139 = vmatpush1.msra.mxu0 0.0
    %140 = vmatprep.subr.mxu0 0.0
    %141 = vmatpush1.msra.mxu0 0.0
    %142 = vmatprep.subr.mxu0 0.0
    %143 = vmatpush1.msra.mxu0 0.0
    %144 = vmatprep.subr.mxu0 0.0
    %145 = vmatpush1.msra.mxu0 0.0
    %146 = vmatprep.subr.mxu0 0.0
    %147 = vmatpush1.msra.mxu0 0.0
    %148 = vmatprep.subr.mxu0 0.0
    %149 = vmatpush1.msra.mxu0 0.0
    %150 = vmatprep.subr.mxu0 0.0
    %151 = vmatpush1.msra.mxu0 0.0
    %152 = vmatprep.subr.mxu0 0.0
    %153 = vmatpush1.msra.mxu0 0.0
    %154 = vmatprep.subr.mxu0 0.0
    %155 = vmatpush1.msra.mxu0 0.0
    %156 = vmatprep.subr.mxu0 0.0
    %157 = vmatpush1.msra.mxu0 0.0
    %158 = vmatprep.subr.mxu0 0.0
    %159 = vmatpush1.msra.mxu0 0.0
    %160 = vmatprep.subr.mxu0 0.0
    %161 = vmatpush1.msra.mxu0 0.0
    %162 = vmatprep.subr.mxu0 0.0
    %163 = vmatpush1.msra.mxu0 0.0
    %164 = vmatprep.subr.mxu0 0.0
    %165 = vmatpush1.msra.mxu0 0.0
    %166 = vmatprep.subr.mxu0 0.0
    %167 = vmatpush1.msra.mxu0 0.0
    %168 = vmatprep.subr.mxu0 0.0
    %169 = vmatpush1.msra.mxu0 0.0
    %170 = vmatprep.subr.mxu0 0.0
    %171 = vmatpush1.msra.mxu0 0.0
    %172 = vmatprep.mubr.f32.mxu0 0.0
    %173 = vmatmul.mubr.f32.gmra.mrb[0].mxu0 %v103
    %v174 = vpop.f32.mrb[0].mxu0
    %v175 = vadd.f32 %v100, %v174
    %v176 = vpop.f32.mrb[0].mxu0
    %177 = vmatprep.mubr.f32.mxu0 0.0
    %178 = vmatmul.mubr.f32.gmra.mrb[0].mxu0 %v106
    %v179 = vpop.f32.mrb[0].mxu0
    %v180 = vadd.f32 %v100, %v179
    %v181 = vpop.f32.mrb[0].mxu0
    %182 = vdwg.mxu0
    %s183 = scalar_lea.vmem %s4, 2
    %v184 = vld [vmem:[%s183] sm:$0x1]
    %v186 = vlaneseq
    %v187 = vshrl.u32 %v186, 7
    %v188 = vsub.s32 0, %v187
    %v189 = vrot.slane %v184, %v188
    %191 = vmatprep.subr.mxu0 0.0
    %192 = vmatpush1.msra.mxu0 %v81
    %193 = vmatprep.subr.mxu0 0.0
    %194 = vmatpush1.msra.mxu0 %v82
    %195 = vmatprep.subr.mxu0 0.0
    %196 = vmatpush1.msra.mxu0 %v83
    %197 = vmatprep.subr.mxu0 0.0
    %198 = vmatpush1.msra.mxu0 %v84
    %199 = vmatprep.subr.mxu0 0.0
    %200 = vmatpush1.msra.mxu0 0.0
    %201 = vmatprep.subr.mxu0 0.0
    %202 = vmatpush1.msra.mxu0 0.0
    %203 = vmatprep.subr.mxu0 0.0
    %204 = vmatpush1.msra.mxu0 0.0
    %205 = vmatprep.subr.mxu0 0.0
    %206 = vmatpush1.msra.mxu0 0.0
    %207 = vmatprep.subr.mxu0 0.0
    %208 = vmatpush1.msra.mxu0 0.0
    %209 = vmatprep.subr.mxu0 0.0
    %210 = vmatpush1.msra.mxu0 0.0
    %211 = vmatprep.subr.mxu0 0.0
    %212 = vmatpush1.msra.mxu0 0.0
    %213 = vmatprep.subr.mxu0 0.0
    %214 = vmatpush1.msra.mxu0 0.0
    %215 = vmatprep.subr.mxu0 0.0
    %216 = vmatpush1.msra.mxu0 0.0
    %217 = vmatprep.subr.mxu0 0.0
    %218 = vmatpush1.msra.mxu0 0.0
    %219 = vmatprep.subr.mxu0 0.0
    %220 = vmatpush1.msra.mxu0 0.0
    %221 = vmatprep.subr.mxu0 0.0
    %222 = vmatpush1.msra.mxu0 0.0
    %223 = vmatprep.subr.mxu0 0.0
    %224 = vmatpush1.msra.mxu0 0.0
    %225 = vmatprep.subr.mxu0 0.0
    %226 = vmatpush1.msra.mxu0 0.0
    %227 = vmatprep.subr.mxu0 0.0
    %228 = vmatpush1.msra.mxu0 0.0
    %229 = vmatprep.subr.mxu0 0.0
    %230 = vmatpush1.msra.mxu0 0.0
    %231 = vmatprep.subr.mxu0 0.0
    %232 = vmatpush1.msra.mxu0 0.0
    %233 = vmatprep.subr.mxu0 0.0
    %234 = vmatpush1.msra.mxu0 0.0
    %235 = vmatprep.subr.mxu0 0.0
    %236 = vmatpush1.msra.mxu0 0.0
    %237 = vmatprep.subr.mxu0 0.0
    %238 = vmatpush1.msra.mxu0 0.0
    %239 = vmatprep.subr.mxu0 0.0
    %240 = vmatpush1.msra.mxu0 0.0
    %241 = vmatprep.subr.mxu0 0.0
    %242 = vmatpush1.msra.mxu0 0.0
    %243 = vmatprep.subr.mxu0 0.0
    %244 = vmatpush1.msra.mxu0 0.0
    %245 = vmatprep.subr.mxu0 0.0
    %246 = vmatpush1.msra.mxu0 0.0
    %247 = vmatprep.subr.mxu0 0.0
    %248 = vmatpush1.msra.mxu0 0.0
    %249 = vmatprep.subr.mxu0 0.0
    %250 = vmatpush1.msra.mxu0 0.0
    %251 = vmatprep.subr.mxu0 0.0
    %252 = vmatpush1.msra.mxu0 0.0
    %253 = vmatprep.subr.mxu0 0.0
    %254 = vmatpush1.msra.mxu0 0.0
    %255 = vmatprep.mubr.f32.mxu0 0.0
    %256 = vmatmul.mubr.f32.gmra.mrb[0].mxu0 %v103
    %v257 = vpop.f32.mrb[0].mxu0
    %v258 = vadd.f32 %v189, %v257
    %v259 = vpop.f32.mrb[0].mxu0
    %260 = vmatprep.mubr.f32.mxu0 0.0
    %261 = vmatmul.mubr.f32.gmra.mrb[0].mxu0 %v106
    %v262 = vpop.f32.mrb[0].mxu0
    %v263 = vadd.f32 %v189, %v262
    %v264 = vpop.f32.mrb[0].mxu0
    %265 = vdwg.mxu0
    %s266 = scalar_lea.vmem %s4, 4
    %v267 = vld [vmem:[%s266] sm:$0x1]
    %v269 = vlaneseq
    %v270 = vshrl.u32 %v269, 7
    %v271 = vsub.s32 0, %v270
    %v272 = vrot.slane %v267, %v271
    %274 = vmatprep.subr.mxu0 0.0
    %275 = vmatpush1.msra.mxu0 %v86
    %276 = vmatprep.subr.mxu0 0.0
    %277 = vmatpush1.msra.mxu0 %v87
    %278 = vmatprep.subr.mxu0 0.0
    %279 = vmatpush1.msra.mxu0 %v88
    %280 = vmatprep.subr.mxu0 0.0
    %281 = vmatpush1.msra.mxu0 %v89
    %282 = vmatprep.subr.mxu0 0.0
    %283 = vmatpush1.msra.mxu0 0.0
    %284 = vmatprep.subr.mxu0 0.0
    %285 = vmatpush1.msra.mxu0 0.0
    %286 = vmatprep.subr.mxu0 0.0
    %287 = vmatpush1.msra.mxu0 0.0
    %288 = vmatprep.subr.mxu0 0.0
    %289 = vmatpush1.msra.mxu0 0.0
    %290 = vmatprep.subr.mxu0 0.0
    %291 = vmatpush1.msra.mxu0 0.0
    %292 = vmatprep.subr.mxu0 0.0
    %293 = vmatpush1.msra.mxu0 0.0
    %294 = vmatprep.subr.mxu0 0.0
    %295 = vmatpush1.msra.mxu0 0.0
    %296 = vmatprep.subr.mxu0 0.0
    %297 = vmatpush1.msra.mxu0 0.0
    %298 = vmatprep.subr.mxu0 0.0
    %299 = vmatpush1.msra.mxu0 0.0
    %300 = vmatprep.subr.mxu0 0.0
    %301 = vmatpush1.msra.mxu0 0.0
    %302 = vmatprep.subr.mxu0 0.0
    %303 = vmatpush1.msra.mxu0 0.0
    %304 = vmatprep.subr.mxu0 0.0
    %305 = vmatpush1.msra.mxu0 0.0
    %306 = vmatprep.subr.mxu0 0.0
    %307 = vmatpush1.msra.mxu0 0.0
    %308 = vmatprep.subr.mxu0 0.0
    %309 = vmatpush1.msra.mxu0 0.0
    %310 = vmatprep.subr.mxu0 0.0
    %311 = vmatpush1.msra.mxu0 0.0
    %312 = vmatprep.subr.mxu0 0.0
    %313 = vmatpush1.msra.mxu0 0.0
    %314 = vmatprep.subr.mxu0 0.0
    %315 = vmatpush1.msra.mxu0 0.0
    %316 = vmatprep.subr.mxu0 0.0
    %317 = vmatpush1.msra.mxu0 0.0
    %318 = vmatprep.subr.mxu0 0.0
    %319 = vmatpush1.msra.mxu0 0.0
    %320 = vmatprep.subr.mxu0 0.0
    %321 = vmatpush1.msra.mxu0 0.0
    %322 = vmatprep.subr.mxu0 0.0
    %323 = vmatpush1.msra.mxu0 0.0
    %324 = vmatprep.subr.mxu0 0.0
    %325 = vmatpush1.msra.mxu0 0.0
    %326 = vmatprep.subr.mxu0 0.0
    %327 = vmatpush1.msra.mxu0 0.0
    %328 = vmatprep.subr.mxu0 0.0
    %329 = vmatpush1.msra.mxu0 0.0
    %330 = vmatprep.subr.mxu0 0.0
    %331 = vmatpush1.msra.mxu0 0.0
    %332 = vmatprep.subr.mxu0 0.0
    %333 = vmatpush1.msra.mxu0 0.0
    %334 = vmatprep.subr.mxu0 0.0
    %335 = vmatpush1.msra.mxu0 0.0
    %336 = vmatprep.subr.mxu0 0.0
    %337 = vmatpush1.msra.mxu0 0.0
    %338 = vmatprep.mubr.f32.mxu0 0.0
    %339 = vmatmul.mubr.f32.gmra.mrb[0].mxu0 %v103
    %v340 = vpop.f32.mrb[0].mxu0
    %v341 = vadd.f32 %v272, %v340
    %v342 = vpop.f32.mrb[0].mxu0
    %343 = vmatprep.mubr.f32.mxu0 0.0
    %344 = vmatmul.mubr.f32.gmra.mrb[0].mxu0 %v106
    %v345 = vpop.f32.mrb[0].mxu0
    %v346 = vadd.f32 %v272, %v345
    %v347 = vpop.f32.mrb[0].mxu0
    %348 = vdwg.mxu0
    %vm349 = vcmask 130048
    %v351 = vsel %vm349, %v175, 0
    %v354 = vsel %vm349, %v180, 0
    %v357 = vsel %vm349, %v258, 0
    %v360 = vsel %vm349, %v263, 0
    %362 = vmatprep.subr.mxu0 0.0
    %363 = vmatpush1.xpose.msra.mxu0 %v357
    %364 = vmatprep.subr.mxu0 0.0
    %365 = vmatpush1.xpose.msra.mxu0 %v360
    %366 = vmatprep.subr.mxu0 0.0
    %367 = vmatpush1.xpose.msra.mxu0 0.0
    %368 = vmatprep.subr.mxu0 0.0
    %369 = vmatpush1.xpose.msra.mxu0 0.0
    %370 = vmatprep.subr.mxu0 0.0
    %371 = vmatpush1.xpose.msra.mxu0 0.0
    %372 = vmatprep.subr.mxu0 0.0
    %373 = vmatpush1.xpose.msra.mxu0 0.0
    %374 = vmatprep.subr.mxu0 0.0
    %375 = vmatpush1.xpose.msra.mxu0 0.0
    %376 = vmatprep.subr.mxu0 0.0
    %377 = vmatpush1.xpose.msra.mxu0 0.0
    %378 = vmatprep.subr.mxu0 0.0
    %379 = vmatpush1.xpose.msra.mxu0 0.0
    %380 = vmatprep.subr.mxu0 0.0
    %381 = vmatpush1.xpose.msra.mxu0 0.0
    %382 = vmatprep.subr.mxu0 0.0
    %383 = vmatpush1.xpose.msra.mxu0 0.0
    %384 = vmatprep.subr.mxu0 0.0
    %385 = vmatpush1.xpose.msra.mxu0 0.0
    %386 = vmatprep.subr.mxu0 0.0
    %387 = vmatpush1.xpose.msra.mxu0 0.0
    %388 = vmatprep.subr.mxu0 0.0
    %389 = vmatpush1.xpose.msra.mxu0 0.0
    %390 = vmatprep.subr.mxu0 0.0
    %391 = vmatpush1.xpose.msra.mxu0 0.0
    %392 = vmatprep.subr.mxu0 0.0
    %393 = vmatpush1.xpose.msra.mxu0 0.0
    %394 = vmatprep.subr.mxu0 0.0
    %395 = vmatpush1.xpose.msra.mxu0 0.0
    %396 = vmatprep.subr.mxu0 0.0
    %397 = vmatpush1.xpose.msra.mxu0 0.0
    %398 = vmatprep.subr.mxu0 0.0
    %399 = vmatpush1.xpose.msra.mxu0 0.0
    %400 = vmatprep.subr.mxu0 0.0
    %401 = vmatpush1.xpose.msra.mxu0 0.0
    %402 = vmatprep.subr.mxu0 0.0
    %403 = vmatpush1.xpose.msra.mxu0 0.0
    %404 = vmatprep.subr.mxu0 0.0
    %405 = vmatpush1.xpose.msra.mxu0 0.0
    %406 = vmatprep.subr.mxu0 0.0
    %407 = vmatpush1.xpose.msra.mxu0 0.0
    %408 = vmatprep.subr.mxu0 0.0
    %409 = vmatpush1.xpose.msra.mxu0 0.0
    %410 = vmatprep.subr.mxu0 0.0
    %411 = vmatpush1.xpose.msra.mxu0 0.0
    %412 = vmatprep.subr.mxu0 0.0
    %413 = vmatpush1.xpose.msra.mxu0 0.0
    %414 = vmatprep.subr.mxu0 0.0
    %415 = vmatpush1.xpose.msra.mxu0 0.0
    %416 = vmatprep.subr.mxu0 0.0
    %417 = vmatpush1.xpose.msra.mxu0 0.0
    %418 = vmatprep.subr.mxu0 0.0
    %419 = vmatpush1.xpose.msra.mxu0 0.0
    %420 = vmatprep.subr.mxu0 0.0
    %421 = vmatpush1.xpose.msra.mxu0 0.0
    %422 = vmatprep.subr.mxu0 0.0
    %423 = vmatpush1.xpose.msra.mxu0 0.0
    %424 = vmatprep.subr.mxu0 0.0
    %425 = vmatpush1.xpose.msra.mxu0 0.0
    %426 = vmatprep.mubr.f32.mxu0 0.0
    %427 = vmatmul.mubr.f32.gmra.mrb[0].mxu0 %v351
    %v428 = vpop.f32.mrb[0].mxu0
    %v429 = vadd.f32 0.0, %v428
    %v430 = vpop.f32.mrb[0].mxu0
    %431 = vmatprep.mubr.f32.mxu0 0.0
    %432 = vmatmul.mubr.f32.gmra.mrb[0].mxu0 %v354
    %v433 = vpop.f32.mrb[0].mxu0
    %v434 = vadd.f32 0.0, %v433
    %v435 = vpop.f32.mrb[0].mxu0
    %436 = vdwg.mxu0
    %v437 = vmul.f32 %v429, 0.25
    %v438 = vmul.f32 %v434, 0.25
    %v439 = vadd.f32 %v437, %v32
    %v440 = vadd.f32 %v438, %v33
    %v441 = vsel %vm349, %v439, -inf
    %442 = vmax.xlane.f32.xlu0 %v441
    %v443 = vpop.xlane.xlu0 %442
    %v444 = vsel %vm349, %v440, -inf
    %445 = vmax.xlane.f32.xlu0 %v444
    %v446 = vpop.xlane.xlu0 %445
    %v447 = vsub.f32 %v439, %v443
    %v448 = vsub.f32 %v440, %v446
    %v449 = vmul.f32 %v447, 1.442695
    %v450 = vpow.pop %v449
    %v451 = vmul.f32 %v448, 1.442695
    %v452 = vpow.pop %v451
    %v453 = vsel %vm349, %v450, 0.0
    %454 = vadd.xlane.f32.xlu0 %v453
    %v455 = vpop.xlane.xlu0 %454
    %v456 = vsel %vm349, %v452, 0.0
    %457 = vadd.xlane.f32.xlu0 %v456
    %v458 = vpop.xlane.xlu0 %457
    %v459 = vrcp.pop %v455
    %v460 = vmul.f32 %v450, %v459
    %v461 = vrcp.pop %v458
    %v462 = vmul.f32 %v452, %v461
    %v464 = vsel %vm349, %v460, 0
    %v467 = vsel %vm349, %v462, 0
    %469 = vmatprep.subr.mxu0 0.0
    %470 = vmatpush1.msra.mxu0 %v341
    %471 = vmatprep.subr.mxu0 0.0
    %472 = vmatpush1.msra.mxu0 %v346
    %473 = vmatprep.subr.mxu0 0.0
    %474 = vmatpush1.msra.mxu0 0.0
    %475 = vmatprep.subr.mxu0 0.0
    %476 = vmatpush1.msra.mxu0 0.0
    %477 = vmatprep.subr.mxu0 0.0
    %478 = vmatpush1.msra.mxu0 0.0
    %479 = vmatprep.subr.mxu0 0.0
    %480 = vmatpush1.msra.mxu0 0.0
    %481 = vmatprep.subr.mxu0 0.0
    %482 = vmatpush1.msra.mxu0 0.0
    %483 = vmatprep.subr.mxu0 0.0
    %484 = vmatpush1.msra.mxu0 0.0
    %485 = vmatprep.subr.mxu0 0.0
    %486 = vmatpush1.msra.mxu0 0.0
    %487 = vmatprep.subr.mxu0 0.0
    %488 = vmatpush1.msra.mxu0 0.0
    %489 = vmatprep.subr.mxu0 0.0
    %490 = vmatpush1.msra.mxu0 0.0
    %491 = vmatprep.subr.mxu0 0.0
    %492 = vmatpush1.msra.mxu0 0.0
    %493 = vmatprep.subr.mxu0 0.0
    %494 = vmatpush1.msra.mxu0 0.0
    %495 = vmatprep.subr.mxu0 0.0
    %496 = vmatpush1.msra.mxu0 0.0
    %497 = vmatprep.subr.mxu0 0.0
    %498 = vmatpush1.msra.mxu0 0.0
    %499 = vmatprep.subr.mxu0 0.0
    %500 = vmatpush1.msra.mxu0 0.0
    %501 = vmatprep.subr.mxu0 0.0
    %502 = vmatpush1.msra.mxu0 0.0
    %503 = vmatprep.subr.mxu0 0.0
    %504 = vmatpush1.msra.mxu0 0.0
    %505 = vmatprep.subr.mxu0 0.0
    %506 = vmatpush1.msra.mxu0 0.0
    %507 = vmatprep.subr.mxu0 0.0
    %508 = vmatpush1.msra.mxu0 0.0
    %509 = vmatprep.subr.mxu0 0.0
    %510 = vmatpush1.msra.mxu0 0.0
    %511 = vmatprep.subr.mxu0 0.0
    %512 = vmatpush1.msra.mxu0 0.0
    %513 = vmatprep.subr.mxu0 0.0
    %514 = vmatpush1.msra.mxu0 0.0
    %515 = vmatprep.subr.mxu0 0.0
    %516 = vmatpush1.msra.mxu0 0.0
    %517 = vmatprep.subr.mxu0 0.0
    %518 = vmatpush1.msra.mxu0 0.0
    %519 = vmatprep.subr.mxu0 0.0
    %520 = vmatpush1.msra.mxu0 0.0
    %521 = vmatprep.subr.mxu0 0.0
    %522 = vmatpush1.msra.mxu0 0.0
    %523 = vmatprep.subr.mxu0 0.0
    %524 = vmatpush1.msra.mxu0 0.0
    %525 = vmatprep.subr.mxu0 0.0
    %526 = vmatpush1.msra.mxu0 0.0
    %527 = vmatprep.subr.mxu0 0.0
    %528 = vmatpush1.msra.mxu0 0.0
    %529 = vmatprep.subr.mxu0 0.0
    %530 = vmatpush1.msra.mxu0 0.0
    %531 = vmatprep.subr.mxu0 0.0
    %532 = vmatpush1.msra.mxu0 0.0
    %533 = vmatprep.mubr.f32.mxu0 0.0
    %534 = vmatmul.mubr.f32.gmra.mrb[0].mxu0 %v464
    %v535 = vpop.f32.mrb[0].mxu0
    %v536 = vadd.f32 0.0, %v535
    %v537 = vpop.f32.mrb[0].mxu0
    %538 = vmatprep.mubr.f32.mxu0 0.0
    %539 = vmatmul.mubr.f32.gmra.mrb[0].mxu0 %v467
    %v540 = vpop.f32.mrb[0].mxu0
    %v541 = vadd.f32 0.0, %v540
    %v542 = vpop.f32.mrb[0].mxu0
    %543 = vdwg.mxu0
    %s544 = scalar_lea.vmem %s3, 32
    %v545 = vld [vmem:[%s544] sm:$0xff]
    %v546 = vld [vmem:[%s544 + $0x8] sm:$0xff]
    %v547 = vld [vmem:[%s544 + $0x10] sm:$0xff]
    %v548 = vld [vmem:[%s544 + $0x18] sm:$0xff]
    %s549 = scalar_lea.vmem %s3, 96
    %v550 = vld [vmem:[%s549] sm:$0xff]
    %v551 = vld [vmem:[%s549 + $0x8] sm:$0xff]
    %v552 = vld [vmem:[%s549 + $0x10] sm:$0xff]
    %v553 = vld [vmem:[%s549 + $0x18] sm:$0xff]
    %s554 = scalar_lea.vmem %s3, 160
    %v555 = vld [vmem:[%s554] sm:$0xff]
    %v556 = vld [vmem:[%s554 + $0x8] sm:$0xff]
    %v557 = vld [vmem:[%s554 + $0x10] sm:$0xff]
    %v558 = vld [vmem:[%s554 + $0x18] sm:$0xff]
    %s559 = scalar_lea.vmem %s3, 224
    %v560 = vld [vmem:[%s559] sm:$0xff]
    %v561 = vld [vmem:[%s559 + $0x8] sm:$0xff]
    %v562 = vld [vmem:[%s559 + $0x10] sm:$0xff]
    %v563 = vld [vmem:[%s559 + $0x18] sm:$0xff]
    %s564 = scalar_lea.vmem %s4, 1
    %v565 = vld [vmem:[%s564] sm:$0x1]
    %v567 = vlaneseq
    %v568 = vshrl.u32 %v567, 7
    %v569 = vsub.s32 0, %v568
    %v570 = vrot.slane %v565, %v569
    %572 = vmatprep.subr.mxu0 0.0
    %573 = vmatpush1.msra.mxu0 %v545
    %574 = vmatprep.subr.mxu0 0.0
    %575 = vmatpush1.msra.mxu0 %v546
    %576 = vmatprep.subr.mxu0 0.0
    %577 = vmatpush1.msra.mxu0 %v547
    %578 = vmatprep.subr.mxu0 0.0
    %579 = vmatpush1.msra.mxu0 %v548
    %580 = vmatprep.subr.mxu0 0.0
    %581 = vmatpush1.msra.mxu0 0.0
    %582 = vmatprep.subr.mxu0 0.0
    %583 = vmatpush1.msra.mxu0 0.0
    %584 = vmatprep.subr.mxu0 0.0
    %585 = vmatpush1.msra.mxu0 0.0
    %586 = vmatprep.subr.mxu0 0.0
    %587 = vmatpush1.msra.mxu0 0.0
    %588 = vmatprep.subr.mxu0 0.0
    %589 = vmatpush1.msra.mxu0 0.0
    %590 = vmatprep.subr.mxu0 0.0
    %591 = vmatpush1.msra.mxu0 0.0
    %592 = vmatprep.subr.mxu0 0.0
    %593 = vmatpush1.msra.mxu0 0.0
    %594 = vmatprep.subr.mxu0 0.0
    %595 = vmatpush1.msra.mxu0 0.0
    %596 = vmatprep.subr.mxu0 0.0
    %597 = vmatpush1.msra.mxu0 0.0
    %598 = vmatprep.subr.mxu0 0.0
    %599 = vmatpush1.msra.mxu0 0.0
    %600 = vmatprep.subr.mxu0 0.0
    %601 = vmatpush1.msra.mxu0 0.0
    %602 = vmatprep.subr.mxu0 0.0
    %603 = vmatpush1.msra.mxu0 0.0
    %604 = vmatprep.subr.mxu0 0.0
    %605 = vmatpush1.msra.mxu0 0.0
    %606 = vmatprep.subr.mxu0 0.0
    %607 = vmatpush1.msra.mxu0 0.0
    %608 = vmatprep.subr.mxu0 0.0
    %609 = vmatpush1.msra.mxu0 0.0
    %610 = vmatprep.subr.mxu0 0.0
    %611 = vmatpush1.msra.mxu0 0.0
    %612 = vmatprep.subr.mxu0 0.0
    %613 = vmatpush1.msra.mxu0 0.0
    %614 = vmatprep.subr.mxu0 0.0
    %615 = vmatpush1.msra.mxu0 0.0
    %616 = vmatprep.subr.mxu0 0.0
    %617 = vmatpush1.msra.mxu0 0.0
    %618 = vmatprep.subr.mxu0 0.0
    %619 = vmatpush1.msra.mxu0 0.0
    %620 = vmatprep.subr.mxu0 0.0
    %621 = vmatpush1.msra.mxu0 0.0
    %622 = vmatprep.subr.mxu0 0.0
    %623 = vmatpush1.msra.mxu0 0.0
    %624 = vmatprep.subr.mxu0 0.0
    %625 = vmatpush1.msra.mxu0 0.0
    %626 = vmatprep.subr.mxu0 0.0
    %627 = vmatpush1.msra.mxu0 0.0
    %628 = vmatprep.subr.mxu0 0.0
    %629 = vmatpush1.msra.mxu0 0.0
    %630 = vmatprep.subr.mxu0 0.0
    %631 = vmatpush1.msra.mxu0 0.0
    %632 = vmatprep.subr.mxu0 0.0
    %633 = vmatpush1.msra.mxu0 0.0
    %634 = vmatprep.subr.mxu0 0.0
    %635 = vmatpush1.msra.mxu0 0.0
    %636 = vmatprep.mubr.f32.mxu0 0.0
    %637 = vmatmul.mubr.f32.gmra.mrb[0].mxu0 %v103
    %v638 = vpop.f32.mrb[0].mxu0
    %v639 = vadd.f32 %v570, %v638
    %v640 = vpop.f32.mrb[0].mxu0
    %641 = vmatprep.mubr.f32.mxu0 0.0
    %642 = vmatmul.mubr.f32.gmra.mrb[0].mxu0 %v106
    %v643 = vpop.f32.mrb[0].mxu0
    %v644 = vadd.f32 %v570, %v643
    %v645 = vpop.f32.mrb[0].mxu0
    %646 = vdwg.mxu0
    %s647 = scalar_lea.vmem %s4, 3
    %v648 = vld [vmem:[%s647] sm:$0x1]
    %v650 = vlaneseq
    %v651 = vshrl.u32 %v650, 7
    %v652 = vsub.s32 0, %v651
    %v653 = vrot.slane %v648, %v652
    %655 = vmatprep.subr.mxu0 0.0
    %656 = vmatpush1.msra.mxu0 %v550
    %657 = vmatprep.subr.mxu0 0.0
    %658 = vmatpush1.msra.mxu0 %v551
    %659 = vmatprep.subr.mxu0 0.0
    %660 = vmatpush1.msra.mxu0 %v552
    %661 = vmatprep.subr.mxu0 0.0
    %662 = vmatpush1.msra.mxu0 %v553
    %663 = vmatprep.subr.mxu0 0.0
    %664 = vmatpush1.msra.mxu0 0.0
    %665 = vmatprep.subr.mxu0 0.0
    %666 = vmatpush1.msra.mxu0 0.0
    %667 = vmatprep.subr.mxu0 0.0
    %668 = vmatpush1.msra.mxu0 0.0
    %669 = vmatprep.subr.mxu0 0.0
    %670 = vmatpush1.msra.mxu0 0.0
    %671 = vmatprep.subr.mxu0 0.0
    %672 = vmatpush1.msra.mxu0 0.0
    %673 = vmatprep.subr.mxu0 0.0
    %674 = vmatpush1.msra.mxu0 0.0
    %675 = vmatprep.subr.mxu0 0.0
    %676 = vmatpush1.msra.mxu0 0.0
    %677 = vmatprep.subr.mxu0 0.0
    %678 = vmatpush1.msra.mxu0 0.0
    %679 = vmatprep.subr.mxu0 0.0
    %680 = vmatpush1.msra.mxu0 0.0
    %681 = vmatprep.subr.mxu0 0.0
    %682 = vmatpush1.msra.mxu0 0.0
    %683 = vmatprep.subr.mxu0 0.0
    %684 = vmatpush1.msra.mxu0 0.0
    %685 = vmatprep.subr.mxu0 0.0
    %686 = vmatpush1.msra.mxu0 0.0
    %687 = vmatprep.subr.mxu0 0.0
    %688 = vmatpush1.msra.mxu0 0.0
    %689 = vmatprep.subr.mxu0 0.0
    %690 = vmatpush1.msra.mxu0 0.0
    %691 = vmatprep.subr.mxu0 0.0
    %692 = vmatpush1.msra.mxu0 0.0
    %693 = vmatprep.subr.mxu0 0.0
    %694 = vmatpush1.msra.mxu0 0.0
    %695 = vmatprep.subr.mxu0 0.0
    %696 = vmatpush1.msra.mxu0 0.0
    %697 = vmatprep.subr.mxu0 0.0
    %698 = vmatpush1.msra.mxu0 0.0
    %699 = vmatprep.subr.mxu0 0.0
    %700 = vmatpush1.msra.mxu0 0.0
    %701 = vmatprep.subr.mxu0 0.0
    %702 = vmatpush1.msra.mxu0 0.0
    %703 = vmatprep.subr.mxu0 0.0
    %704 = vmatpush1.msra.mxu0 0.0
    %705 = vmatprep.subr.mxu0 0.0
    %706 = vmatpush1.msra.mxu0 0.0
    %707 = vmatprep.subr.mxu0 0.0
    %708 = vmatpush1.msra.mxu0 0.0
    %709 = vmatprep.subr.mxu0 0.0
    %710 = vmatpush1.msra.mxu0 0.0
    %711 = vmatprep.subr.mxu0 0.0
    %712 = vmatpush1.msra.mxu0 0.0
    %713 = vmatprep.subr.mxu0 0.0
    %714 = vmatpush1.msra.mxu0 0.0
    %715 = vmatprep.subr.mxu0 0.0
    %716 = vmatpush1.msra.mxu0 0.0
    %717 = vmatprep.subr.mxu0 0.0
    %718 = vmatpush1.msra.mxu0 0.0
    %719 = vmatprep.mubr.f32.mxu0 0.0
    %720 = vmatmul.mubr.f32.gmra.mrb[0].mxu0 %v103
    %v721 = vpop.f32.mrb[0].mxu0
    %v722 = vadd.f32 %v653, %v721
    %v723 = vpop.f32.mrb[0].mxu0
    %724 = vmatprep.mubr.f32.mxu0 0.0
    %725 = vmatmul.mubr.f32.gmra.mrb[0].mxu0 %v106
    %v726 = vpop.f32.mrb[0].mxu0
    %v727 = vadd.f32 %v653, %v726
    %v728 = vpop.f32.mrb[0].mxu0
    %729 = vdwg.mxu0
    %s730 = scalar_lea.vmem %s4, 5
    %v731 = vld [vmem:[%s730] sm:$0x1]
    %v733 = vlaneseq
    %v734 = vshrl.u32 %v733, 7
    %v735 = vsub.s32 0, %v734
    %v736 = vrot.slane %v731, %v735
    %738 = vmatprep.subr.mxu0 0.0
    %739 = vmatpush1.msra.mxu0 %v555
    %740 = vmatprep.subr.mxu0 0.0
    %741 = vmatpush1.msra.mxu0 %v556
    %742 = vmatprep.subr.mxu0 0.0
    %743 = vmatpush1.msra.mxu0 %v557
    %744 = vmatprep.subr.mxu0 0.0
    %745 = vmatpush1.msra.mxu0 %v558
    %746 = vmatprep.subr.mxu0 0.0
    %747 = vmatpush1.msra.mxu0 0.0
    %748 = vmatprep.subr.mxu0 0.0
    %749 = vmatpush1.msra.mxu0 0.0
    %750 = vmatprep.subr.mxu0 0.0
    %751 = vmatpush1.msra.mxu0 0.0
    %752 = vmatprep.subr.mxu0 0.0
    %753 = vmatpush1.msra.mxu0 0.0
    %754 = vmatprep.subr.mxu0 0.0
    %755 = vmatpush1.msra.mxu0 0.0
    %756 = vmatprep.subr.mxu0 0.0
    %757 = vmatpush1.msra.mxu0 0.0
    %758 = vmatprep.subr.mxu0 0.0
    %759 = vmatpush1.msra.mxu0 0.0
    %760 = vmatprep.subr.mxu0 0.0
    %761 = vmatpush1.msra.mxu0 0.0
    %762 = vmatprep.subr.mxu0 0.0
    %763 = vmatpush1.msra.mxu0 0.0
    %764 = vmatprep.subr.mxu0 0.0
    %765 = vmatpush1.msra.mxu0 0.0
    %766 = vmatprep.subr.mxu0 0.0
    %767 = vmatpush1.msra.mxu0 0.0
    %768 = vmatprep.subr.mxu0 0.0
    %769 = vmatpush1.msra.mxu0 0.0
    %770 = vmatprep.subr.mxu0 0.0
    %771 = vmatpush1.msra.mxu0 0.0
    %772 = vmatprep.subr.mxu0 0.0
    %773 = vmatpush1.msra.mxu0 0.0
    %774 = vmatprep.subr.mxu0 0.0
    %775 = vmatpush1.msra.mxu0 0.0
    %776 = vmatprep.subr.mxu0 0.0
    %777 = vmatpush1.msra.mxu0 0.0
    %778 = vmatprep.subr.mxu0 0.0
    %779 = vmatpush1.msra.mxu0 0.0
    %780 = vmatprep.subr.mxu0 0.0
    %781 = vmatpush1.msra.mxu0 0.0
    %782 = vmatprep.subr.mxu0 0.0
    %783 = vmatpush1.msra.mxu0 0.0
    %784 = vmatprep.subr.mxu0 0.0
    %785 = vmatpush1.msra.mxu0 0.0
    %786 = vmatprep.subr.mxu0 0.0
    %787 = vmatpush1.msra.mxu0 0.0
    %788 = vmatprep.subr.mxu0 0.0
    %789 = vmatpush1.msra.mxu0 0.0
    %790 = vmatprep.subr.mxu0 0.0
    %791 = vmatpush1.msra.mxu0 0.0
    %792 = vmatprep.subr.mxu0 0.0
    %793 = vmatpush1.msra.mxu0 0.0
    %794 = vmatprep.subr.mxu0 0.0
    %795 = vmatpush1.msra.mxu0 0.0
    %796 = vmatprep.subr.mxu0 0.0
    %797 = vmatpush1.msra.mxu0 0.0
    %798 = vmatprep.subr.mxu0 0.0
    %799 = vmatpush1.msra.mxu0 0.0
    %800 = vmatprep.subr.mxu0 0.0
    %801 = vmatpush1.msra.mxu0 0.0
    %802 = vmatprep.mubr.f32.mxu0 0.0
    %803 = vmatmul.mubr.f32.gmra.mrb[0].mxu0 %v103
    %v804 = vpop.f32.mrb[0].mxu0
    %v805 = vadd.f32 %v736, %v804
    %v806 = vpop.f32.mrb[0].mxu0
    %807 = vmatprep.mubr.f32.mxu0 0.0
    %808 = vmatmul.mubr.f32.gmra.mrb[0].mxu0 %v106
    %v809 = vpop.f32.mrb[0].mxu0
    %v810 = vadd.f32 %v736, %v809
    %v811 = vpop.f32.mrb[0].mxu0
    %812 = vdwg.mxu0
    %v814 = vsel %vm349, %v639, 0
    %v817 = vsel %vm349, %v644, 0
    %v820 = vsel %vm349, %v722, 0
    %v823 = vsel %vm349, %v727, 0
    %825 = vmatprep.subr.mxu0 0.0
    %826 = vmatpush1.xpose.msra.mxu0 %v820
    %827 = vmatprep.subr.mxu0 0.0
    %828 = vmatpush1.xpose.msra.mxu0 %v823
    %829 = vmatprep.subr.mxu0 0.0
    %830 = vmatpush1.xpose.msra.mxu0 0.0
    %831 = vmatprep.subr.mxu0 0.0
    %832 = vmatpush1.xpose.msra.mxu0 0.0
    %833 = vmatprep.subr.mxu0 0.0
    %834 = vmatpush1.xpose.msra.mxu0 0.0
    %835 = vmatprep.subr.mxu0 0.0
    %836 = vmatpush1.xpose.msra.mxu0 0.0
    %837 = vmatprep.subr.mxu0 0.0
    %838 = vmatpush1.xpose.msra.mxu0 0.0
    %839 = vmatprep.subr.mxu0 0.0
    %840 = vmatpush1.xpose.msra.mxu0 0.0
    %841 = vmatprep.subr.mxu0 0.0
    %842 = vmatpush1.xpose.msra.mxu0 0.0
    %843 = vmatprep.subr.mxu0 0.0
    %844 = vmatpush1.xpose.msra.mxu0 0.0
    %845 = vmatprep.subr.mxu0 0.0
    %846 = vmatpush1.xpose.msra.mxu0 0.0
    %847 = vmatprep.subr.mxu0 0.0
    %848 = vmatpush1.xpose.msra.mxu0 0.0
    %849 = vmatprep.subr.mxu0 0.0
    %850 = vmatpush1.xpose.msra.mxu0 0.0
    %851 = vmatprep.subr.mxu0 0.0
    %852 = vmatpush1.xpose.msra.mxu0 0.0
    %853 = vmatprep.subr.mxu0 0.0
    %854 = vmatpush1.xpose.msra.mxu0 0.0
    %855 = vmatprep.subr.mxu0 0.0
    %856 = vmatpush1.xpose.msra.mxu0 0.0
    %857 = vmatprep.subr.mxu0 0.0
    %858 = vmatpush1.xpose.msra.mxu0 0.0
    %859 = vmatprep.subr.mxu0 0.0
    %860 = vmatpush1.xpose.msra.mxu0 0.0
    %861 = vmatprep.subr.mxu0 0.0
    %862 = vmatpush1.xpose.msra.mxu0 0.0
    %863 = vmatprep.subr.mxu0 0.0
    %864 = vmatpush1.xpose.msra.mxu0 0.0
    %865 = vmatprep.subr.mxu0 0.0
    %866 = vmatpush1.xpose.msra.mxu0 0.0
    %867 = vmatprep.subr.mxu0 0.0
    %868 = vmatpush1.xpose.msra.mxu0 0.0
    %869 = vmatprep.subr.mxu0 0.0
    %870 = vmatpush1.xpose.msra.mxu0 0.0
    %871 = vmatprep.subr.mxu0 0.0
    %872 = vmatpush1.xpose.msra.mxu0 0.0
    %873 = vmatprep.subr.mxu0 0.0
    %874 = vmatpush1.xpose.msra.mxu0 0.0
    %875 = vmatprep.subr.mxu0 0.0
    %876 = vmatpush1.xpose.msra.mxu0 0.0
    %877 = vmatprep.subr.mxu0 0.0
    %878 = vmatpush1.xpose.msra.mxu0 0.0
    %879 = vmatprep.subr.mxu0 0.0
    %880 = vmatpush1.xpose.msra.mxu0 0.0
    %881 = vmatprep.subr.mxu0 0.0
    %882 = vmatpush1.xpose.msra.mxu0 0.0
    %883 = vmatprep.subr.mxu0 0.0
    %884 = vmatpush1.xpose.msra.mxu0 0.0
    %885 = vmatprep.subr.mxu0 0.0
    %886 = vmatpush1.xpose.msra.mxu0 0.0
    %887 = vmatprep.subr.mxu0 0.0
    %888 = vmatpush1.xpose.msra.mxu0 0.0
    %889 = vmatprep.mubr.f32.mxu0 0.0
    %890 = vmatmul.mubr.f32.gmra.mrb[0].mxu0 %v814
    %v891 = vpop.f32.mrb[0].mxu0
    %v892 = vadd.f32 0.0, %v891
    %v893 = vpop.f32.mrb[0].mxu0
    %894 = vmatprep.mubr.f32.mxu0 0.0
    %895 = vmatmul.mubr.f32.gmra.mrb[0].mxu0 %v817
    %v896 = vpop.f32.mrb[0].mxu0
    %v897 = vadd.f32 0.0, %v896
    %v898 = vpop.f32.mrb[0].mxu0
    %899 = vdwg.mxu0
    %v900 = vmul.f32 %v892, 0.25
    %v901 = vmul.f32 %v897, 0.25
    %v902 = vadd.f32 %v900, %v32
    %v903 = vadd.f32 %v901, %v33
    %v904 = vsel %vm349, %v902, -inf
    %905 = vmax.xlane.f32.xlu0 %v904
    %v906 = vpop.xlane.xlu0 %905
    %v907 = vsel %vm349, %v903, -inf
    %908 = vmax.xlane.f32.xlu0 %v907
    %v909 = vpop.xlane.xlu0 %908
    %v910 = vsub.f32 %v902, %v906
    %v911 = vsub.f32 %v903, %v909
    %v912 = vmul.f32 %v910, 1.442695
    %v913 = vpow.pop %v912
    %v914 = vmul.f32 %v911, 1.442695
    %v915 = vpow.pop %v914
    %v916 = vsel %vm349, %v913, 0.0
    %917 = vadd.xlane.f32.xlu0 %v916
    %v918 = vpop.xlane.xlu0 %917
    %v919 = vsel %vm349, %v915, 0.0
    %920 = vadd.xlane.f32.xlu0 %v919
    %v921 = vpop.xlane.xlu0 %920
    %v922 = vrcp.pop %v918
    %v923 = vmul.f32 %v913, %v922
    %v924 = vrcp.pop %v921
    %v925 = vmul.f32 %v915, %v924
    %v927 = vsel %vm349, %v923, 0
    %v930 = vsel %vm349, %v925, 0
    %932 = vmatprep.subr.mxu0 0.0
    %933 = vmatpush1.msra.mxu0 %v805
    %934 = vmatprep.subr.mxu0 0.0
    %935 = vmatpush1.msra.mxu0 %v810
    %936 = vmatprep.subr.mxu0 0.0
    %937 = vmatpush1.msra.mxu0 0.0
    %938 = vmatprep.subr.mxu0 0.0
    %939 = vmatpush1.msra.mxu0 0.0
    %940 = vmatprep.subr.mxu0 0.0
    %941 = vmatpush1.msra.mxu0 0.0
    %942 = vmatprep.subr.mxu0 0.0
    %943 = vmatpush1.msra.mxu0 0.0
    %944 = vmatprep.subr.mxu0 0.0
    %945 = vmatpush1.msra.mxu0 0.0
    %946 = vmatprep.subr.mxu0 0.0
    %947 = vmatpush1.msra.mxu0 0.0
    %948 = vmatprep.subr.mxu0 0.0
    %949 = vmatpush1.msra.mxu0 0.0
    %950 = vmatprep.subr.mxu0 0.0
    %951 = vmatpush1.msra.mxu0 0.0
    %952 = vmatprep.subr.mxu0 0.0
    %953 = vmatpush1.msra.mxu0 0.0
    %954 = vmatprep.subr.mxu0 0.0
    %955 = vmatpush1.msra.mxu0 0.0
    %956 = vmatprep.subr.mxu0 0.0
    %957 = vmatpush1.msra.mxu0 0.0
    %958 = vmatprep.subr.mxu0 0.0
    %959 = vmatpush1.msra.mxu0 0.0
    %960 = vmatprep.subr.mxu0 0.0
    %961 = vmatpush1.msra.mxu0 0.0
    %962 = vmatprep.subr.mxu0 0.0
    %963 = vmatpush1.msra.mxu0 0.0
    %964 = vmatprep.subr.mxu0 0.0
    %965 = vmatpush1.msra.mxu0 0.0
    %966 = vmatprep.subr.mxu0 0.0
    %967 = vmatpush1.msra.mxu0 0.0
    %968 = vmatprep.subr.mxu0 0.0
    %969 = vmatpush1.msra.mxu0 0.0
    %970 = vmatprep.subr.mxu0 0.0
    %971 = vmatpush1.msra.mxu0 0.0
    %972 = vmatprep.subr.mxu0 0.0
    %973 = vmatpush1.msra.mxu0 0.0
    %974 = vmatprep.subr.mxu0 0.0
    %975 = vmatpush1.msra.mxu0 0.0
    %976 = vmatprep.subr.mxu0 0.0
    %977 = vmatpush1.msra.mxu0 0.0
    %978 = vmatprep.subr.mxu0 0.0
    %979 = vmatpush1.msra.mxu0 0.0
    %980 = vmatprep.subr.mxu0 0.0
    %981 = vmatpush1.msra.mxu0 0.0
    %982 = vmatprep.subr.mxu0 0.0
    %983 = vmatpush1.msra.mxu0 0.0
    %984 = vmatprep.subr.mxu0 0.0
    %985 = vmatpush1.msra.mxu0 0.0
    %986 = vmatprep.subr.mxu0 0.0
    %987 = vmatpush1.msra.mxu0 0.0
    %988 = vmatprep.subr.mxu0 0.0
    %989 = vmatpush1.msra.mxu0 0.0
    %990 = vmatprep.subr.mxu0 0.0
    %991 = vmatpush1.msra.mxu0 0.0
    %992 = vmatprep.subr.mxu0 0.0
    %993 = vmatpush1.msra.mxu0 0.0
    %994 = vmatprep.subr.mxu0 0.0
    %995 = vmatpush1.msra.mxu0 0.0
    %996 = vmatprep.mubr.f32.mxu0 0.0
    %997 = vmatmul.mubr.f32.gmra.mrb[0].mxu0 %v927
    %v998 = vpop.f32.mrb[0].mxu0
    %v999 = vadd.f32 0.0, %v998
    %v1000 = vpop.f32.mrb[0].mxu0
    %1001 = vmatprep.mubr.f32.mxu0 0.0
    %1002 = vmatmul.mubr.f32.gmra.mrb[0].mxu0 %v930
    %v1003 = vpop.f32.mrb[0].mxu0
    %v1004 = vadd.f32 0.0, %v1003
    %v1005 = vpop.f32.mrb[0].mxu0
    %1006 = vdwg.mxu0
    %v1008 = vsel %vm349, %v999, 0
    %v1011 = vsel %vm349, %v1004, 0
    %v1014 = vsel %vm349, %v560, 0
    %v1017 = vsel %vm349, %v561, 0
    %v1020 = vsel %vm349, %v562, 0
    %v1023 = vsel %vm349, %v563, 0
    %1025 = vmatprep.subr.mxu0 0.0
    %1026 = vmatpush1.xpose.msra.mxu0 %v1014
    %1027 = vmatprep.subr.mxu0 0.0
    %1028 = vmatpush1.xpose.msra.mxu0 %v1017
    %1029 = vmatprep.subr.mxu0 0.0
    %1030 = vmatpush1.xpose.msra.mxu0 %v1020
    %1031 = vmatprep.subr.mxu0 0.0
    %1032 = vmatpush1.xpose.msra.mxu0 %v1023
    %1033 = vmatprep.subr.mxu0 0.0
    %1034 = vmatpush1.xpose.msra.mxu0 0.0
    %1035 = vmatprep.subr.mxu0 0.0
    %1036 = vmatpush1.xpose.msra.mxu0 0.0
    %1037 = vmatprep.subr.mxu0 0.0
    %1038 = vmatpush1.xpose.msra.mxu0 0.0
    %1039 = vmatprep.subr.mxu0 0.0
    %1040 = vmatpush1.xpose.msra.mxu0 0.0
    %1041 = vmatprep.subr.mxu0 0.0
    %1042 = vmatpush1.xpose.msra.mxu0 0.0
    %1043 = vmatprep.subr.mxu0 0.0
    %1044 = vmatpush1.xpose.msra.mxu0 0.0
    %1045 = vmatprep.subr.mxu0 0.0
    %1046 = vmatpush1.xpose.msra.mxu0 0.0
    %1047 = vmatprep.subr.mxu0 0.0
    %1048 = vmatpush1.xpose.msra.mxu0 0.0
    %1049 = vmatprep.subr.mxu0 0.0
    %1050 = vmatpush1.xpose.msra.mxu0 0.0
    %1051 = vmatprep.subr.mxu0 0.0
    %1052 = vmatpush1.xpose.msra.mxu0 0.0
    %1053 = vmatprep.subr.mxu0 0.0
    %1054 = vmatpush1.xpose.msra.mxu0 0.0
    %1055 = vmatprep.subr.mxu0 0.0
    %1056 = vmatpush1.xpose.msra.mxu0 0.0
    %1057 = vmatprep.subr.mxu0 0.0
    %1058 = vmatpush1.xpose.msra.mxu0 0.0
    %1059 = vmatprep.subr.mxu0 0.0
    %1060 = vmatpush1.xpose.msra.mxu0 0.0
    %1061 = vmatprep.subr.mxu0 0.0
    %1062 = vmatpush1.xpose.msra.mxu0 0.0
    %1063 = vmatprep.subr.mxu0 0.0
    %1064 = vmatpush1.xpose.msra.mxu0 0.0
    %1065 = vmatprep.subr.mxu0 0.0
    %1066 = vmatpush1.xpose.msra.mxu0 0.0
    %1067 = vmatprep.subr.mxu0 0.0
    %1068 = vmatpush1.xpose.msra.mxu0 0.0
    %1069 = vmatprep.subr.mxu0 0.0
    %1070 = vmatpush1.xpose.msra.mxu0 0.0
    %1071 = vmatprep.subr.mxu0 0.0
    %1072 = vmatpush1.xpose.msra.mxu0 0.0
    %1073 = vmatprep.subr.mxu0 0.0
    %1074 = vmatpush1.xpose.msra.mxu0 0.0
    %1075 = vmatprep.subr.mxu0 0.0
    %1076 = vmatpush1.xpose.msra.mxu0 0.0
    %1077 = vmatprep.subr.mxu0 0.0
    %1078 = vmatpush1.xpose.msra.mxu0 0.0
    %1079 = vmatprep.subr.mxu0 0.0
    %1080 = vmatpush1.xpose.msra.mxu0 0.0
    %1081 = vmatprep.subr.mxu0 0.0
    %1082 = vmatpush1.xpose.msra.mxu0 0.0
    %1083 = vmatprep.subr.mxu0 0.0
    %1084 = vmatpush1.xpose.msra.mxu0 0.0
    %1085 = vmatprep.subr.mxu0 0.0
    %1086 = vmatpush1.xpose.msra.mxu0 0.0
    %1087 = vmatprep.subr.mxu0 0.0
    %1088 = vmatpush1.xpose.msra.mxu0 0.0
    %1089 = vmatprep.mubr.f32.mxu0 0.0
    %1090 = vmatmul.mubr.f32.gmra.mrb[0].mxu0 %v1008
    %v1091 = vpop.f32.mrb[0].mxu0
    %v1092 = vadd.f32 0.0, %v1091
    %v1093 = vpop.f32.mrb[0].mxu0
    %1094 = vmatprep.mubr.f32.mxu0 0.0
    %1095 = vmatmul.mubr.f32.gmra.mrb[0].mxu0 %v1011
    %v1096 = vpop.f32.mrb[0].mxu0
    %v1097 = vadd.f32 0.0, %v1096
    %v1098 = vpop.f32.mrb[0].mxu0
    %1099 = vdwg.mxu0
    %v1101 = vsel %vm349, %v536, 0
    %v1104 = vsel %vm349, %v541, 0
    %v1107 = vsel %vm349, %v91, 0
    %v1110 = vsel %vm349, %v92, 0
    %v1113 = vsel %vm349, %v93, 0
    %v1116 = vsel %vm349, %v94, 0
    %1118 = vmatprep.subr.mxu0 0.0
    %1119 = vmatpush1.xpose.msra.mxu0 %v1107
    %1120 = vmatprep.subr.mxu0 0.0
    %1121 = vmatpush1.xpose.msra.mxu0 %v1110
    %1122 = vmatprep.subr.mxu0 0.0
    %1123 = vmatpush1.xpose.msra.mxu0 %v1113
    %1124 = vmatprep.subr.mxu0 0.0
    %1125 = vmatpush1.xpose.msra.mxu0 %v1116
    %1126 = vmatprep.subr.mxu0 0.0
    %1127 = vmatpush1.xpose.msra.mxu0 0.0
    %1128 = vmatprep.subr.mxu0 0.0
    %1129 = vmatpush1.xpose.msra.mxu0 0.0
    %1130 = vmatprep.subr.mxu0 0.0
    %1131 = vmatpush1.xpose.msra.mxu0 0.0
    %1132 = vmatprep.subr.mxu0 0.0
    %1133 = vmatpush1.xpose.msra.mxu0 0.0
    %1134 = vmatprep.subr.mxu0 0.0
    %1135 = vmatpush1.xpose.msra.mxu0 0.0
    %1136 = vmatprep.subr.mxu0 0.0
    %1137 = vmatpush1.xpose.msra.mxu0 0.0
    %1138 = vmatprep.subr.mxu0 0.0
    %1139 = vmatpush1.xpose.msra.mxu0 0.0
    %1140 = vmatprep.subr.mxu0 0.0
    %1141 = vmatpush1.xpose.msra.mxu0 0.0
    %1142 = vmatprep.subr.mxu0 0.0
    %1143 = vmatpush1.xpose.msra.mxu0 0.0
    %1144 = vmatprep.subr.mxu0 0.0
    %1145 = vmatpush1.xpose.msra.mxu0 0.0
    %1146 = vmatprep.subr.mxu0 0.0
    %1147 = vmatpush1.xpose.msra.mxu0 0.0
    %1148 = vmatprep.subr.mxu0 0.0
    %1149 = vmatpush1.xpose.msra.mxu0 0.0
    %1150 = vmatprep.subr.mxu0 0.0
    %1151 = vmatpush1.xpose.msra.mxu0 0.0
    %1152 = vmatprep.subr.mxu0 0.0
    %1153 = vmatpush1.xpose.msra.mxu0 0.0
    %1154 = vmatprep.subr.mxu0 0.0
    %1155 = vmatpush1.xpose.msra.mxu0 0.0
    %1156 = vmatprep.subr.mxu0 0.0
    %1157 = vmatpush1.xpose.msra.mxu0 0.0
    %1158 = vmatprep.subr.mxu0 0.0
    %1159 = vmatpush1.xpose.msra.mxu0 0.0
    %1160 = vmatprep.subr.mxu0 0.0
    %1161 = vmatpush1.xpose.msra.mxu0 0.0
    %1162 = vmatprep.subr.mxu0 0.0
    %1163 = vmatpush1.xpose.msra.mxu0 0.0
    %1164 = vmatprep.subr.mxu0 0.0
    %1165 = vmatpush1.xpose.msra.mxu0 0.0
    %1166 = vmatprep.subr.mxu0 0.0
    %1167 = vmatpush1.xpose.msra.mxu0 0.0
    %1168 = vmatprep.subr.mxu0 0.0
    %1169 = vmatpush1.xpose.msra.mxu0 0.0
    %1170 = vmatprep.subr.mxu0 0.0
    %1171 = vmatpush1.xpose.msra.mxu0 0.0
    %1172 = vmatprep.subr.mxu0 0.0
    %1173 = vmatpush1.xpose.msra.mxu0 0.0
    %1174 = vmatprep.subr.mxu0 0.0
    %1175 = vmatpush1.xpose.msra.mxu0 0.0
    %1176 = vmatprep.subr.mxu0 0.0
    %1177 = vmatpush1.xpose.msra.mxu0 0.0
    %1178 = vmatprep.subr.mxu0 0.0
    %1179 = vmatpush1.xpose.msra.mxu0 0.0
    %1180 = vmatprep.subr.mxu0 0.0
    %1181 = vmatpush1.xpose.msra.mxu0 0.0
    %1182 = vmatprep.mubr.f32.mxu0 0.0
    %1183 = vmatmul.mubr.f32.gmra.mrb[0].mxu0 %v1101
    %v1184 = vpop.f32.mrb[0].mxu0
    %v1185 = vadd.f32 %v1092, %v1184
    %v1186 = vpop.f32.mrb[0].mxu0
    %1187 = vmatprep.mubr.f32.mxu0 0.0
    %1188 = vmatmul.mubr.f32.gmra.mrb[0].mxu0 %v1104
    %v1189 = vpop.f32.mrb[0].mxu0
    %v1190 = vadd.f32 %v1097, %v1189
    %v1191 = vpop.f32.mrb[0].mxu0
    %1192 = vdwg.mxu0
    %v1193 = vadd.f32 %v74, %v1185
    %v1194 = vadd.f32 %v75, %v1190
    %v1195 = vlaneseq
    %v1196 = vshrl.u32 %v1195, 7
    %v1197 = vsub.s32 2, %v1196
    %v1198 = vrot.slane %v30, %v1197
    %v1199 = vadd.f32 %v1193, %v1198
    %v1200 = vadd.f32 %v1194, %v1198
    %v1201 = vsel %vm36, %v1199, 0.0
    %1202 = vadd.xlane.f32.xlu0 %v1201
    %v1203 = vpop.xlane.xlu0 %1202
    %v1204 = vsel %vm36, %v1200, 0.0
    %1205 = vadd.xlane.f32.xlu0 %v1204
    %v1206 = vpop.xlane.xlu0 %1205
    %v1207 = vmul.f32 %v1203, %v43
    %v1208 = vmul.f32 %v1206, %v43
    %v1209 = vsub.f32 %v1199, %v1207
    %v1210 = vsub.f32 %v1200, %v1208
    %v1211 = vmul.f32 %v1209, %v1209
    %v1212 = vmul.f32 %v1210, %v1210
    %v1213 = vsel %vm36, %v1211, 0.0
    %1214 = vadd.xlane.f32.xlu0 %v1213
    %v1215 = vpop.xlane.xlu0 %1214
    %v1216 = vsel %vm36, %v1212, 0.0
    %1217 = vadd.xlane.f32.xlu0 %v1216
    %v1218 = vpop.xlane.xlu0 %1217
    %v1219 = vmul.f32 %v1215, %v43
    %v1220 = vmul.f32 %v1218, %v43
    %v1221 = vadd.f32 %v1219, 1e-12
    %v1222 = vadd.f32 %v1220, 1e-12
    %v1223 = vrsqrt.pop %v1221
    %v1224 = vrsqrt.pop %v1222
    %v1225 = vmul.f32 %v1209, %v1223
    %v1226 = vmul.f32 %v1210, %v1224
    %v1227 = vlaneseq
    %v1228 = vshrl.u32 %v1227, 7
    %v1229 = vsub.s32 3, %v1228
    %v1230 = vrot.slane %v30, %v1229
    %v1231 = vmul.f32 %v1225, %v1230
    %v1232 = vmul.f32 %v1226, %v1230
    %v1233 = vlaneseq
    %v1234 = vshrl.u32 %v1233, 7
    %v1235 = vsub.s32 4, %v1234
    %v1236 = vrot.slane %v30, %v1235
    %v1237 = vadd.f32 %v1231, %v1236
    %v1238 = vadd.f32 %v1232, %v1236
    %v1239 = vld [vmem:[%s5] sm:$0xff]
    %v1240 = vld [vmem:[%s5 + $0x8] sm:$0xff]
    %v1241 = vld [vmem:[%s5 + $0x10] sm:$0xff]
    %v1242 = vld [vmem:[%s5 + $0x18] sm:$0xff]
    %v1243 = vld [vmem:[%s6] sm:$0x1]
    %v1245 = vlaneseq
    %v1246 = vshrl.u32 %v1245, 7
    %v1247 = vsub.s32 0, %v1246
    %v1248 = vrot.slane %v1243, %v1247
    %v1251 = vsel %vm36, %v1237, 0
    %v1254 = vsel %vm36, %v1238, 0
    %1256 = vmatprep.subr.mxu0 0.0
    %1257 = vmatpush1.msra.mxu0 %v1239
    %1258 = vmatprep.subr.mxu0 0.0
    %1259 = vmatpush1.msra.mxu0 %v1240
    %1260 = vmatprep.subr.mxu0 0.0
    %1261 = vmatpush1.msra.mxu0 %v1241
    %1262 = vmatprep.subr.mxu0 0.0
    %1263 = vmatpush1.msra.mxu0 %v1242
    %1264 = vmatprep.subr.mxu0 0.0
    %1265 = vmatpush1.msra.mxu0 0.0
    %1266 = vmatprep.subr.mxu0 0.0
    %1267 = vmatpush1.msra.mxu0 0.0
    %1268 = vmatprep.subr.mxu0 0.0
    %1269 = vmatpush1.msra.mxu0 0.0
    %1270 = vmatprep.subr.mxu0 0.0
    %1271 = vmatpush1.msra.mxu0 0.0
    %1272 = vmatprep.subr.mxu0 0.0
    %1273 = vmatpush1.msra.mxu0 0.0
    %1274 = vmatprep.subr.mxu0 0.0
    %1275 = vmatpush1.msra.mxu0 0.0
    %1276 = vmatprep.subr.mxu0 0.0
    %1277 = vmatpush1.msra.mxu0 0.0
    %1278 = vmatprep.subr.mxu0 0.0
    %1279 = vmatpush1.msra.mxu0 0.0
    %1280 = vmatprep.subr.mxu0 0.0
    %1281 = vmatpush1.msra.mxu0 0.0
    %1282 = vmatprep.subr.mxu0 0.0
    %1283 = vmatpush1.msra.mxu0 0.0
    %1284 = vmatprep.subr.mxu0 0.0
    %1285 = vmatpush1.msra.mxu0 0.0
    %1286 = vmatprep.subr.mxu0 0.0
    %1287 = vmatpush1.msra.mxu0 0.0
    %1288 = vmatprep.subr.mxu0 0.0
    %1289 = vmatpush1.msra.mxu0 0.0
    %1290 = vmatprep.subr.mxu0 0.0
    %1291 = vmatpush1.msra.mxu0 0.0
    %1292 = vmatprep.subr.mxu0 0.0
    %1293 = vmatpush1.msra.mxu0 0.0
    %1294 = vmatprep.subr.mxu0 0.0
    %1295 = vmatpush1.msra.mxu0 0.0
    %1296 = vmatprep.subr.mxu0 0.0
    %1297 = vmatpush1.msra.mxu0 0.0
    %1298 = vmatprep.subr.mxu0 0.0
    %1299 = vmatpush1.msra.mxu0 0.0
    %1300 = vmatprep.subr.mxu0 0.0
    %1301 = vmatpush1.msra.mxu0 0.0
    %1302 = vmatprep.subr.mxu0 0.0
    %1303 = vmatpush1.msra.mxu0 0.0
    %1304 = vmatprep.subr.mxu0 0.0
    %1305 = vmatpush1.msra.mxu0 0.0
    %1306 = vmatprep.subr.mxu0 0.0
    %1307 = vmatpush1.msra.mxu0 0.0
    %1308 = vmatprep.subr.mxu0 0.0
    %1309 = vmatpush1.msra.mxu0 0.0
    %1310 = vmatprep.subr.mxu0 0.0
    %1311 = vmatpush1.msra.mxu0 0.0
    %1312 = vmatprep.subr.mxu0 0.0
    %1313 = vmatpush1.msra.mxu0 0.0
    %1314 = vmatprep.subr.mxu0 0.0
    %1315 = vmatpush1.msra.mxu0 0.0
    %1316 = vmatprep.subr.mxu0 0.0
    %1317 = vmatpush1.msra.mxu0 0.0
    %1318 = vmatprep.subr.mxu0 0.0
    %1319 = vmatpush1.msra.mxu0 0.0
    %1320 = vmatprep.mubr.f32.mxu0 0.0
    %1321 = vmatmul.mubr.f32.gmra.mrb[0].mxu0 %v1251
    %v1322 = vpop.f32.mrb[0].mxu0
    %v1323 = vadd.f32 %v1248, %v1322
    %v1324 = vpop.f32.mrb[0].mxu0
    %1325 = vmatprep.mubr.f32.mxu0 0.0
    %1326 = vmatmul.mubr.f32.gmra.mrb[0].mxu0 %v1254
    %v1327 = vpop.f32.mrb[0].mxu0
    %v1328 = vadd.f32 %v1248, %v1327
    %v1329 = vpop.f32.mrb[0].mxu0
    %1330 = vdwg.mxu0
    %v1331 = vmul.f32 %v1323, %v1323
    %v1332 = vmul.f32 %v1328, %v1328
    %v1333 = vmul.f32 %v1323, %v1331
    %v1334 = vmul.f32 %v1328, %v1332
    %v1335 = vmul.f32 %v1333, 0.044715
    %v1336 = vmul.f32 %v1334, 0.044715
    %v1337 = vadd.f32 %v1323, %v1335
    %v1338 = vadd.f32 %v1328, %v1336
    %v1339 = vmul.f32 %v1337, 0.7978846
    %v1340 = vmul.f32 %v1338, 0.7978846
    %v1341 = vtanh.pop %v1339
    %v1342 = vtanh.pop %v1340
    %v1343 = vadd.f32 %v1341, 1.0
    %v1344 = vadd.f32 %v1342, 1.0
    %v1345 = vmul.f32 %v1343, 0.5
    %v1346 = vmul.f32 %v1344, 0.5
    %v1347 = vmul.f32 %v1323, %v1345
    %v1348 = vmul.f32 %v1328, %v1346
    %s1349 = scalar_lea.vmem %s5, 32
    %v1350 = vld [vmem:[%s1349] sm:$0xff]
    %v1351 = vld [vmem:[%s1349 + $0x8] sm:$0xff]
    %v1352 = vld [vmem:[%s1349 + $0x10] sm:$0xff]
    %v1353 = vld [vmem:[%s1349 + $0x18] sm:$0xff]
    %v1354 = vlaneseq
    %v1355 = vshrl.u32 %v1354, 7
    %v1356 = vsub.s32 5, %v1355
    %v1357 = vrot.slane %v30, %v1356
    %vm1358 = vcmask 523264
    %v1360 = vsel %vm1358, %v1347, 0
    %v1363 = vsel %vm1358, %v1348, 0
    %v1366 = vsel %vm1358, %v1350, 0
    %v1369 = vsel %vm1358, %v1351, 0
    %v1372 = vsel %vm1358, %v1352, 0
    %v1375 = vsel %vm1358, %v1353, 0
    %1377 = vmatprep.subr.mxu0 0.0
    %1378 = vmatpush1.xpose.msra.mxu0 %v1366
    %1379 = vmatprep.subr.mxu0 0.0
    %1380 = vmatpush1.xpose.msra.mxu0 %v1369
    %1381 = vmatprep.subr.mxu0 0.0
    %1382 = vmatpush1.xpose.msra.mxu0 %v1372
    %1383 = vmatprep.subr.mxu0 0.0
    %1384 = vmatpush1.xpose.msra.mxu0 %v1375
    %1385 = vmatprep.subr.mxu0 0.0
    %1386 = vmatpush1.xpose.msra.mxu0 0.0
    %1387 = vmatprep.subr.mxu0 0.0
    %1388 = vmatpush1.xpose.msra.mxu0 0.0
    %1389 = vmatprep.subr.mxu0 0.0
    %1390 = vmatpush1.xpose.msra.mxu0 0.0
    %1391 = vmatprep.subr.mxu0 0.0
    %1392 = vmatpush1.xpose.msra.mxu0 0.0
    %1393 = vmatprep.subr.mxu0 0.0
    %1394 = vmatpush1.xpose.msra.mxu0 0.0
    %1395 = vmatprep.subr.mxu0 0.0
    %1396 = vmatpush1.xpose.msra.mxu0 0.0
    %1397 = vmatprep.subr.mxu0 0.0
    %1398 = vmatpush1.xpose.msra.mxu0 0.0
    %1399 = vmatprep.subr.mxu0 0.0
    %1400 = vmatpush1.xpose.msra.mxu0 0.0
    %1401 = vmatprep.subr.mxu0 0.0
    %1402 = vmatpush1.xpose.msra.mxu0 0.0
    %1403 = vmatprep.subr.mxu0 0.0
    %1404 = vmatpush1.xpose.msra.mxu0 0.0
    %1405 = vmatprep.subr.mxu0 0.0
    %1406 = vmatpush1.xpose.msra.mxu0 0.0
    %1407 = vmatprep.subr.mxu0 0.0
    %1408 = vmatpush1.xpose.msra.mxu0 0.0
    %1409 = vmatprep.subr.mxu0 0.0
    %1410 = vmatpush1.xpose.msra.mxu0 0.0
    %1411 = vmatprep.subr.mxu0 0.0
    %1412 = vmatpush1.xpose.msra.mxu0 0.0
    %1413 = vmatprep.subr.mxu0 0.0
    %1414 = vmatpush1.xpose.msra.mxu0 0.0
    %1415 = vmatprep.subr.mxu0 0.0
    %1416 = vmatpush1.xpose.msra.mxu0 0.0
    %1417 = vmatprep.subr.mxu0 0.0
    %1418 = vmatpush1.xpose.msra.mxu0 0.0
    %1419 = vmatprep.subr.mxu0 0.0
    %1420 = vmatpush1.xpose.msra.mxu0 0.0
    %1421 = vmatprep.subr.mxu0 0.0
    %1422 = vmatpush1.xpose.msra.mxu0 0.0
    %1423 = vmatprep.subr.mxu0 0.0
    %1424 = vmatpush1.xpose.msra.mxu0 0.0
    %1425 = vmatprep.subr.mxu0 0.0
    %1426 = vmatpush1.xpose.msra.mxu0 0.0
    %1427 = vmatprep.subr.mxu0 0.0
    %1428 = vmatpush1.xpose.msra.mxu0 0.0
    %1429 = vmatprep.subr.mxu0 0.0
    %1430 = vmatpush1.xpose.msra.mxu0 0.0
    %1431 = vmatprep.subr.mxu0 0.0
    %1432 = vmatpush1.xpose.msra.mxu0 0.0
    %1433 = vmatprep.subr.mxu0 0.0
    %1434 = vmatpush1.xpose.msra.mxu0 0.0
    %1435 = vmatprep.subr.mxu0 0.0
    %1436 = vmatpush1.xpose.msra.mxu0 0.0
    %1437 = vmatprep.subr.mxu0 0.0
    %1438 = vmatpush1.xpose.msra.mxu0 0.0
    %1439 = vmatprep.subr.mxu0 0.0
    %1440 = vmatpush1.xpose.msra.mxu0 0.0
    %1441 = vmatprep.mubr.f32.mxu0 0.0
    %1442 = vmatmul.mubr.f32.gmra.mrb[0].mxu0 %v1360
    %v1443 = vpop.f32.mrb[0].mxu0
    %v1444 = vadd.f32 %v1357, %v1443
    %v1445 = vpop.f32.mrb[0].mxu0
    %1446 = vmatprep.mubr.f32.mxu0 0.0
    %1447 = vmatmul.mubr.f32.gmra.mrb[0].mxu0 %v1363
    %v1448 = vpop.f32.mrb[0].mxu0
    %v1449 = vadd.f32 %v1357, %v1448
    %v1450 = vpop.f32.mrb[0].mxu0
    %1451 = vdwg.mxu0
    %v1452 = vadd.f32 %v1237, %v1444
    %v1453 = vadd.f32 %v1238, %v1449
    %v1454 = vsel %vm36, %v1452, 0.0
    %1455 = vadd.xlane.f32.xlu0 %v1454
    %v1456 = vpop.xlane.xlu0 %1455
    %v1457 = vsel %vm36, %v1453, 0.0
    %1458 = vadd.xlane.f32.xlu0 %v1457
    %v1459 = vpop.xlane.xlu0 %1458
    %v1460 = vmul.f32 %v1456, %v43
    %v1461 = vmul.f32 %v1459, %v43
    %v1462 = vsub.f32 %v1452, %v1460
    %v1463 = vsub.f32 %v1453, %v1461
    %v1464 = vmul.f32 %v1462, %v1462
    %v1465 = vmul.f32 %v1463, %v1463
    %v1466 = vsel %vm36, %v1464, 0.0
    %1467 = vadd.xlane.f32.xlu0 %v1466
    %v1468 = vpop.xlane.xlu0 %1467
    %v1469 = vsel %vm36, %v1465, 0.0
    %1470 = vadd.xlane.f32.xlu0 %v1469
    %v1471 = vpop.xlane.xlu0 %1470
    %v1472 = vmul.f32 %v1468, %v43
    %v1473 = vmul.f32 %v1471, %v43
    %v1474 = vadd.f32 %v1472, 1e-12
    %v1475 = vadd.f32 %v1473, 1e-12
    %v1476 = vrsqrt.pop %v1474
    %v1477 = vrsqrt.pop %v1475
    %v1478 = vmul.f32 %v1462, %v1476
    %v1479 = vmul.f32 %v1463, %v1477
    %v1480 = vlaneseq
    %v1481 = vshrl.u32 %v1480, 7
    %v1482 = vsub.s32 6, %v1481
    %v1483 = vrot.slane %v30, %v1482
    %v1484 = vmul.f32 %v1478, %v1483
    %v1485 = vmul.f32 %v1479, %v1483
    %v1486 = vlaneseq
    %v1487 = vshrl.u32 %v1486, 7
    %v1488 = vsub.s32 7, %v1487
    %v1489 = vrot.slane %v30, %v1488
    %v1490 = vadd.f32 %v1484, %v1489
    %v1491 = vadd.f32 %v1485, %v1489
    %s1492 = scalar_lea.vmem %s3, 256
    %v1493 = vld [vmem:[%s1492] sm:$0xff]
    %v1494 = vld [vmem:[%s1492 + $0x8] sm:$0xff]
    %v1495 = vld [vmem:[%s1492 + $0x10] sm:$0xff]
    %v1496 = vld [vmem:[%s1492 + $0x18] sm:$0xff]
    %s1497 = scalar_lea.vmem %s3, 320
    %v1498 = vld [vmem:[%s1497] sm:$0xff]
    %v1499 = vld [vmem:[%s1497 + $0x8] sm:$0xff]
    %v1500 = vld [vmem:[%s1497 + $0x10] sm:$0xff]
    %v1501 = vld [vmem:[%s1497 + $0x18] sm:$0xff]
    %s1502 = scalar_lea.vmem %s3, 384
    %v1503 = vld [vmem:[%s1502] sm:$0xff]
    %v1504 = vld [vmem:[%s1502 + $0x8] sm:$0xff]
    %v1505 = vld [vmem:[%s1502 + $0x10] sm:$0xff]
    %v1506 = vld [vmem:[%s1502 + $0x18] sm:$0xff]
    %s1507 = scalar_lea.vmem %s3, 448
    %v1508 = vld [vmem:[%s1507] sm:$0xff]
    %v1509 = vld [vmem:[%s1507 + $0x8] sm:$0xff]
    %v1510 = vld [vmem:[%s1507 + $0x10] sm:$0xff]
    %v1511 = vld [vmem:[%s1507 + $0x18] sm:$0xff]
    %s1512 = scalar_lea.vmem %s4, 6
    %v1513 = vld [vmem:[%s1512] sm:$0x1]
    %v1515 = vlaneseq
    %v1516 = vshrl.u32 %v1515, 7
    %v1517 = vsub.s32 0, %v1516
    %v1518 = vrot.slane %v1513, %v1517
    %v1521 = vsel %vm36, %v1490, 0
    %v1524 = vsel %vm36, %v1491, 0
    %1526 = vmatprep.subr.mxu0 0.0
    %1527 = vmatpush1.msra.mxu0 %v1493
    %1528 = vmatprep.subr.mxu0 0.0
    %1529 = vmatpush1.msra.mxu0 %v1494
    %1530 = vmatprep.subr.mxu0 0.0
    %1531 = vmatpush1.msra.mxu0 %v1495
    %1532 = vmatprep.subr.mxu0 0.0
    %1533 = vmatpush1.msra.mxu0 %v1496
    %1534 = vmatprep.subr.mxu0 0.0
    %1535 = vmatpush1.msra.mxu0 0.0
    %1536 = vmatprep.subr.mxu0 0.0
    %1537 = vmatpush1.msra.mxu0 0.0
    %1538 = vmatprep.subr.mxu0 0.0
    %1539 = vmatpush1.msra.mxu0 0.0
    %1540 = vmatprep.subr.mxu0 0.0
    %1541 = vmatpush1.msra.mxu0 0.0
    %1542 = vmatprep.subr.mxu0 0.0
    %1543 = vmatpush1.msra.mxu0 0.0
    %1544 = vmatprep.subr.mxu0 0.0
    %1545 = vmatpush1.msra.mxu0 0.0
    %1546 = vmatprep.subr.mxu0 0.0
    %1547 = vmatpush1.msra.mxu0 0.0
    %1548 = vmatprep.subr.mxu0 0.0
    %1549 = vmatpush1.msra.mxu0 0.0
    %1550 = vmatprep.subr.mxu0 0.0
    %1551 = vmatpush1.msra.mxu0 0.0
    %1552 = vmatprep.subr.mxu0 0.0
    %1553 = vmatpush1.msra.mxu0 0.0
    %1554 = vmatprep.subr.mxu0 0.0
    %1555 = vmatpush1.msra.mxu0 0.0
    %1556 = vmatprep.subr.mxu0 0.0
    %1557 = vmatpush1.msra.mxu0 0.0
    %1558 = vmatprep.subr.mxu0 0.0
    %1559 = vmatpush1.msra.mxu0 0.0
    %1560 = vmatprep.subr.mxu0 0.0
    %1561 = vmatpush1.msra.mxu0 0.0
    %1562 = vmatprep.subr.mxu0 0.0
    %1563 = vmatpush1.msra.mxu0 0.0
    %1564 = vmatprep.subr.mxu0 0.0
    %1565 = vmatpush1.msra.mxu0 0.0
    %1566 = vmatprep.subr.mxu0 0.0
    %1567 = vmatpush1.msra.mxu0 0.0
    %1568 = vmatprep.subr.mxu0 0.0
    %1569 = vmatpush1.msra.mxu0 0.0
    %1570 = vmatprep.subr.mxu0 0.0
    %1571 = vmatpush1.msra.mxu0 0.0
    %1572 = vmatprep.subr.mxu0 0.0
    %1573 = vmatpush1.msra.mxu0 0.0
    %1574 = vmatprep.subr.mxu0 0.0
    %1575 = vmatpush1.msra.mxu0 0.0
    %1576 = vmatprep.subr.mxu0 0.0
    %1577 = vmatpush1.msra.mxu0 0.0
    %1578 = vmatprep.subr.mxu0 0.0
    %1579 = vmatpush1.msra.mxu0 0.0
    %1580 = vmatprep.subr.mxu0 0.0
    %1581 = vmatpush1.msra.mxu0 0.0
    %1582 = vmatprep.subr.mxu0 0.0
    %1583 = vmatpush1.msra.mxu0 0.0
    %1584 = vmatprep.subr.mxu0 0.0
    %1585 = vmatpush1.msra.mxu0 0.0
    %1586 = vmatprep.subr.mxu0 0.0
    %1587 = vmatpush1.msra.mxu0 0.0
    %1588 = vmatprep.subr.mxu0 0.0
    %1589 = vmatpush1.msra.mxu0 0.0
    %1590 = vmatprep.mubr.f32.mxu0 0.0
    %1591 = vmatmul.mubr.f32.gmra.mrb[0].mxu0 %v1521
    %v1592 = vpop.f32.mrb[0].mxu0
    %v1593 = vadd.f32 %v1518, %v1592
    %v1594 = vpop.f32.mrb[0].mxu0
    %1595 = vmatprep.mubr.f32.mxu0 0.0
    %1596 = vmatmul.mubr.f32.gmra.mrb[0].mxu0 %v1524
    %v1597 = vpop.f32.mrb[0].mxu0
    %v1598 = vadd.f32 %v1518, %v1597
    %v1599 = vpop.f32.mrb[0].mxu0
    %1600 = vdwg.mxu0
    %s1601 = scalar_lea.vmem %s4, 8
    %v1602 = vld [vmem:[%s1601] sm:$0x1]
    %v1604 = vlaneseq
    %v1605 = vshrl.u32 %v1604, 7
    %v1606 = vsub.s32 0, %v1605
    %v1607 = vrot.slane %v1602, %v1606
    %1609 = vmatprep.subr.mxu0 0.0
    %1610 = vmatpush1.msra.mxu0 %v1498
    %1611 = vmatprep.subr.mxu0 0.0
    %1612 = vmatpush1.msra.mxu0 %v1499
    %1613 = vmatprep.subr.mxu0 0.0
    %1614 = vmatpush1.msra.mxu0 %v1500
    %1615 = vmatprep.subr.mxu0 0.0
    %1616 = vmatpush1.msra.mxu0 %v1501
    %1617 = vmatprep.subr.mxu0 0.0
    %1618 = vmatpush1.msra.mxu0 0.0
    %1619 = vmatprep.subr.mxu0 0.0
    %1620 = vmatpush1.msra.mxu0 0.0
    %1621 = vmatprep.subr.mxu0 0.0
    %1622 = vmatpush1.msra.mxu0 0.0
    %1623 = vmatprep.subr.mxu0 0.0
    %1624 = vmatpush1.msra.mxu0 0.0
    %1625 = vmatprep.subr.mxu0 0.0
    %1626 = vmatpush1.msra.mxu0 0.0
    %1627 = vmatprep.subr.mxu0 0.0
    %1628 = vmatpush1.msra.mxu0 0.0
    %1629 = vmatprep.subr.mxu0 0.0
    %1630 = vmatpush1.msra.mxu0 0.0
    %1631 = vmatprep.subr.mxu0 0.0
    %1632 = vmatpush1.msra.mxu0 0.0
    %1633 = vmatprep.subr.mxu0 0.0
    %1634 = vmatpush1.msra.mxu0 0.0
    %1635 = vmatprep.subr.mxu0 0.0
    %1636 = vmatpush1.msra.mxu0 0.0
    %1637 = vmatprep.subr.mxu0 0.0
    %1638 = vmatpush1.msra.mxu0 0.0
    %1639 = vmatprep.subr.mxu0 0.0
    %1640 = vmatpush1.msra.mxu0 0.0
    %1641 = vmatprep.subr.mxu0 0.0
    %1642 = vmatpush1.msra.mxu0 0.0
    %1643 = vmatprep.subr.mxu0 0.0
    %1644 = vmatpush1.msra.mxu0 0.0
    %1645 = vmatprep.subr.mxu0 0.0
    %1646 = vmatpush1.msra.mxu0 0.0
    %1647 = vmatprep.subr.mxu0 0.0
    %1648 = vmatpush1.msra.mxu0 0.0
    %1649 = vmatprep.subr.mxu0 0.0
    %1650 = vmatpush1.msra.mxu0 0.0
    %1651 = vmatprep.subr.mxu0 0.0
    %1652 = vmatpush1.msra.mxu0 0.0
    %1653 = vmatprep.subr.mxu0 0.0
    %1654 = vmatpush1.msra.mxu0 0.0
    %1655 = vmatprep.subr.mxu0 0.0
    %1656 = vmatpush1.msra.mxu0 0.0
    %1657 = vmatprep.subr.mxu0 0.0
    %1658 = vmatpush1.msra.mxu0 0.0
    %1659 = vmatprep.subr.mxu0 0.0
    %1660 = vmatpush1.msra.mxu0 0.0
    %1661 = vmatprep.subr.mxu0 0.0
    %1662 = vmatpush1.msra.mxu0 0.0
    %1663 = vmatprep.subr.mxu0 0.0
    %1664 = vmatpush1.msra.mxu0 0.0
    %1665 = vmatprep.subr.mxu0 0.0
    %1666 = vmatpush1.msra.mxu0 0.0
    %1667 = vmatprep.subr.mxu0 0.0
    %1668 = vmatpush1.msra.mxu0 0.0
    %1669 = vmatprep.subr.mxu0 0.0
    %1670 = vmatpush1.msra.mxu0 0.0
    %1671 = vmatprep.subr.mxu0 0.0
    %1672 = vmatpush1.msra.mxu0 0.0
    %1673 = vmatprep.mubr.f32.mxu0 0.0
    %1674 = vmatmul.mubr.f32.gmra.mrb[0].mxu0 %v1521
    %v1675 = vpop.f32.mrb[0].mxu0
    %v1676 = vadd.f32 %v1607, %v1675
    %v1677 = vpop.f32.mrb[0].mxu0
    %1678 = vmatprep.mubr.f32.mxu0 0.0
    %1679 = vmatmul.mubr.f32.gmra.mrb[0].mxu0 %v1524
    %v1680 = vpop.f32.mrb[0].mxu0
    %v1681 = vadd.f32 %v1607, %v1680
    %v1682 = vpop.f32.mrb[0].mxu0
    %1683 = vdwg.mxu0
    %s1684 = scalar_lea.vmem %s4, 10
    %v1685 = vld [vmem:[%s1684] sm:$0x1]
    %v1687 = vlaneseq
    %v1688 = vshrl.u32 %v1687, 7
    %v1689 = vsub.s32 0, %v1688
    %v1690 = vrot.slane %v1685, %v1689
    %1692 = vmatprep.subr.mxu0 0.0
    %1693 = vmatpush1.msra.mxu0 %v1503
    %1694 = vmatprep.subr.mxu0 0.0
    %1695 = vmatpush1.msra.mxu0 %v1504
    %1696 = vmatprep.subr.mxu0 0.0
    %1697 = vmatpush1.msra.mxu0 %v1505
    %1698 = vmatprep.subr.mxu0 0.0
    %1699 = vmatpush1.msra.mxu0 %v1506
    %1700 = vmatprep.subr.mxu0 0.0
    %1701 = vmatpush1.msra.mxu0 0.0
    %1702 = vmatprep.subr.mxu0 0.0
    %1703 = vmatpush1.msra.mxu0 0.0
    %1704 = vmatprep.subr.mxu0 0.0
    %1705 = vmatpush1.msra.mxu0 0.0
    %1706 = vmatprep.subr.mxu0 0.0
    %1707 = vmatpush1.msra.mxu0 0.0
    %1708 = vmatprep.subr.mxu0 0.0
    %1709 = vmatpush1.msra.mxu0 0.0
    %1710 = vmatprep.subr.mxu0 0.0
    %1711 = vmatpush1.msra.mxu0 0.0
    %1712 = vmatprep.subr.mxu0 0.0
    %1713 = vmatpush1.msra.mxu0 0.0
    %1714 = vmatprep.subr.mxu0 0.0
    %1715 = vmatpush1.msra.mxu0 0.0
    %1716 = vmatprep.subr.mxu0 0.0
    %1717 = vmatpush1.msra.mxu0 0.0
    %1718 = vmatprep.subr.mxu0 0.0
    %1719 = vmatpush1.msra.mxu0 0.0
    %1720 = vmatprep.subr.mxu0 0.0
    %1721 = vmatpush1.msra.mxu0 0.0
    %1722 = vmatprep.subr.mxu0 0.0
    %1723 = vmatpush1.msra.mxu0 0.0
    %1724 = vmatprep.subr.mxu0 0.0
    %1725 = vmatpush1.msra.mxu0 0.0
    %1726 = vmatprep.subr.mxu0 0.0
    %1727 = vmatpush1.msra.mxu0 0.0
    %1728 = vmatprep.subr.mxu0 0.0
    %1729 = vmatpush1.msra.mxu0 0.0
    %1730 = vmatprep.subr.mxu0 0.0
    %1731 = vmatpush1.msra.mxu0 0.0
    %1732 = vmatprep.subr.mxu0 0.0
    %1733 = vmatpush1.msra.mxu0 0.0
    %1734 = vmatprep.subr.mxu0 0.0
    %1735 = vmatpush1.msra.mxu0 0.0
    %1736 = vmatprep.subr.mxu0 0.0
    %1737 = vmatpush1.msra.mxu0 0.0
    %1738 = vmatprep.subr.mxu0 0.0
    %1739 = vmatpush1.msra.mxu0 0.0
    %1740 = vmatprep.subr.mxu0 0.0
    %1741 = vmatpush1.msra.mxu0 0.0
    %1742 = vmatprep.subr.mxu0 0.0
    %1743 = vmatpush1.msra.mxu0 0.0
    %1744 = vmatprep.subr.mxu0 0.0
    %1745 = vmatpush1.msra.mxu0 0.0
    %1746 = vmatprep.subr.mxu0 0.0
    %1747 = vmatpush1.msra.mxu0 0.0
    %1748 = vmatprep.subr.mxu0 0.0
    %1749 = vmatpush1.msra.mxu0 0.0
    %1750 = vmatprep.subr.mxu0 0.0
    %1751 = vmatpush1.msra.mxu0 0.0
    %1752 = vmatprep.subr.mxu0 0.0
    %1753 = vmatpush1.msra.mxu0 0.0
    %1754 = vmatprep.subr.mxu0 0.0
    %1755 = vmatpush1.msra.mxu0 0.0
    %1756 = vmatprep.mubr.f32.mxu0 0.0
    %1757 = vmatmul.mubr.f32.gmra.mrb[0].mxu0 %v1521
    %v1758 = vpop.f32.mrb[0].mxu0
    %v1759 = vadd.f32 %v1690, %v1758
    %v1760 = vpop.f32.mrb[0].mxu0
    %1761 = vmatprep.mubr.f32.mxu0 0.0
    %1762 = vmatmul.mubr.f32.gmra.mrb[0].mxu0 %v1524
    %v1763 = vpop.f32.mrb[0].mxu0
    %v1764 = vadd.f32 %v1690, %v1763
    %v1765 = vpop.f32.mrb[0].mxu0
    %1766 = vdwg.mxu0
    %v1768 = vsel %vm349, %v1593, 0
    %v1771 = vsel %vm349, %v1598, 0
    %v1774 = vsel %vm349, %v1676, 0
    %v1777 = vsel %vm349, %v1681, 0
    %1779 = vmatprep.subr.mxu0 0.0
    %1780 = vmatpush1.xpose.msra.mxu0 %v1774
    %1781 = vmatprep.subr.mxu0 0.0
    %1782 = vmatpush1.xpose.msra.mxu0 %v1777
    %1783 = vmatprep.subr.mxu0 0.0
    %1784 = vmatpush1.xpose.msra.mxu0 0.0
    %1785 = vmatprep.subr.mxu0 0.0
    %1786 = vmatpush1.xpose.msra.mxu0 0.0
    %1787 = vmatprep.subr.mxu0 0.0
    %1788 = vmatpush1.xpose.msra.mxu0 0.0
    %1789 = vmatprep.subr.mxu0 0.0
    %1790 = vmatpush1.xpose.msra.mxu0 0.0
    %1791 = vmatprep.subr.mxu0 0.0
    %1792 = vmatpush1.xpose.msra.mxu0 0.0
    %1793 = vmatprep.subr.mxu0 0.0
    %1794 = vmatpush1.xpose.msra.mxu0 0.0
    %1795 = vmatprep.subr.mxu0 0.0
    %1796 = vmatpush1.xpose.msra.mxu0 0.0
    %1797 = vmatprep.subr.mxu0 0.0
    %1798 = vmatpush1.xpose.msra.mxu0 0.0
    %1799 = vmatprep.subr.mxu0 0.0
    %1800 = vmatpush1.xpose.msra.mxu0 0.0
    %1801 = vmatprep.subr.mxu0 0.0
    %1802 = vmatpush1.xpose.msra.mxu0 0.0
    %1803 = vmatprep.subr.mxu0 0.0
    %1804 = vmatpush1.xpose.msra.mxu0 0.0
    %1805 = vmatprep.subr.mxu0 0.0
    %1806 = vmatpush1.xpose.msra.mxu0 0.0
    %1807 = vmatprep.subr.mxu0 0.0
    %1808 = vmatpush1.xpose.msra.mxu0 0.0
    %1809 = vmatprep.subr.mxu0 0.0
    %1810 = vmatpush1.xpose.msra.mxu0 0.0
    %1811 = vmatprep.subr.mxu0 0.0
    %1812 = vmatpush1.xpose.msra.mxu0 0.0
    %1813 = vmatprep.subr.mxu0 0.0
    %1814 = vmatpush1.xpose.msra.mxu0 0.0
    %1815 = vmatprep.subr.mxu0 0.0
    %1816 = vmatpush1.xpose.msra.mxu0 0.0
    %1817 = vmatprep.subr.mxu0 0.0
    %1818 = vmatpush1.xpose.msra.mxu0 0.0
    %1819 = vmatprep.subr.mxu0 0.0
    %1820 = vmatpush1.xpose.msra.mxu0 0.0
    %1821 = vmatprep.subr.mxu0 0.0
    %1822 = vmatpush1.xpose.msra.mxu0 0.0
    %1823 = vmatprep.subr.mxu0 0.0
    %1824 = vmatpush1.xpose.msra.mxu0 0.0
    %1825 = vmatprep.subr.mxu0 0.0
    %1826 = vmatpush1.xpose.msra.mxu0 0.0
    %1827 = vmatprep.subr.mxu0 0.0
    %1828 = vmatpush1.xpose.msra.mxu0 0.0
    %1829 = vmatprep.subr.mxu0 0.0
    %1830 = vmatpush1.xpose.msra.mxu0 0.0
    %1831 = vmatprep.subr.mxu0 0.0
    %1832 = vmatpush1.xpose.msra.mxu0 0.0
    %1833 = vmatprep.subr.mxu0 0.0
    %1834 = vmatpush1.xpose.msra.mxu0 0.0
    %1835 = vmatprep.subr.mxu0 0.0
    %1836 = vmatpush1.xpose.msra.mxu0 0.0
    %1837 = vmatprep.subr.mxu0 0.0
    %1838 = vmatpush1.xpose.msra.mxu0 0.0
    %1839 = vmatprep.subr.mxu0 0.0
    %1840 = vmatpush1.xpose.msra.mxu0 0.0
    %1841 = vmatprep.subr.mxu0 0.0
    %1842 = vmatpush1.xpose.msra.mxu0 0.0
    %1843 = vmatprep.mubr.f32.mxu0 0.0
    %1844 = vmatmul.mubr.f32.gmra.mrb[0].mxu0 %v1768
    %v1845 = vpop.f32.mrb[0].mxu0
    %v1846 = vadd.f32 0.0, %v1845
    %v1847 = vpop.f32.mrb[0].mxu0
    %1848 = vmatprep.mubr.f32.mxu0 0.0
    %1849 = vmatmul.mubr.f32.gmra.mrb[0].mxu0 %v1771
    %v1850 = vpop.f32.mrb[0].mxu0
    %v1851 = vadd.f32 0.0, %v1850
    %v1852 = vpop.f32.mrb[0].mxu0
    %1853 = vdwg.mxu0
    %v1854 = vmul.f32 %v1846, 0.25
    %v1855 = vmul.f32 %v1851, 0.25
    %v1856 = vadd.f32 %v1854, %v32
    %v1857 = vadd.f32 %v1855, %v33
    %v1858 = vsel %vm349, %v1856, -inf
    %1859 = vmax.xlane.f32.xlu0 %v1858
    %v1860 = vpop.xlane.xlu0 %1859
    %v1861 = vsel %vm349, %v1857, -inf
    %1862 = vmax.xlane.f32.xlu0 %v1861
    %v1863 = vpop.xlane.xlu0 %1862
    %v1864 = vsub.f32 %v1856, %v1860
    %v1865 = vsub.f32 %v1857, %v1863
    %v1866 = vmul.f32 %v1864, 1.442695
    %v1867 = vpow.pop %v1866
    %v1868 = vmul.f32 %v1865, 1.442695
    %v1869 = vpow.pop %v1868
    %v1870 = vsel %vm349, %v1867, 0.0
    %1871 = vadd.xlane.f32.xlu0 %v1870
    %v1872 = vpop.xlane.xlu0 %1871
    %v1873 = vsel %vm349, %v1869, 0.0
    %1874 = vadd.xlane.f32.xlu0 %v1873
    %v1875 = vpop.xlane.xlu0 %1874
    %v1876 = vrcp.pop %v1872
    %v1877 = vmul.f32 %v1867, %v1876
    %v1878 = vrcp.pop %v1875
    %v1879 = vmul.f32 %v1869, %v1878
    %v1881 = vsel %vm349, %v1877, 0
    %v1884 = vsel %vm349, %v1879, 0
    %1886 = vmatprep.subr.mxu0 0.0
    %1887 = vmatpush1.msra.mxu0 %v1759
    %1888 = vmatprep.subr.mxu0 0.0
    %1889 = vmatpush1.msra.mxu0 %v1764
    %1890 = vmatprep.subr.mxu0 0.0
    %1891 = vmatpush1.msra.mxu0 0.0
    %1892 = vmatprep.subr.mxu0 0.0
    %1893 = vmatpush1.msra.mxu0 0.0
    %1894 = vmatprep.subr.mxu0 0.0
    %1895 = vmatpush1.msra.mxu0 0.0
    %1896 = vmatprep.subr.mxu0 0.0
    %1897 = vmatpush1.msra.mxu0 0.0
    %1898 = vmatprep.subr.mxu0 0.0
    %1899 = vmatpush1.msra.mxu0 0.0
    %1900 = vmatprep.subr.mxu0 0.0
    %1901 = vmatpush1.msra.mxu0 0.0
    %1902 = vmatprep.subr.mxu0 0.0
    %1903 = vmatpush1.msra.mxu0 0.0
    %1904 = vmatprep.subr.mxu0 0.0
    %1905 = vmatpush1.msra.mxu0 0.0
    %1906 = vmatprep.subr.mxu0 0.0
    %1907 = vmatpush1.msra.mxu0 0.0
    %1908 = vmatprep.subr.mxu0 0.0
    %1909 = vmatpush1.msra.mxu0 0.0
    %1910 = vmatprep.subr.mxu0 0.0
    %1911 = vmatpush1.msra.mxu0 0.0
    %1912 = vmatprep.subr.mxu0 0.0
    %1913 = vmatpush1.msra.mxu0 0.0
    %1914 = vmatprep.subr.mxu0 0.0
    %1915 = vmatpush1.msra.mxu0 0.0
    %1916 = vmatprep.subr.mxu0 0.0
    %1917 = vmatpush1.msra.mxu0 0.0
    %1918 = vmatprep.subr.mxu0 0.0
    %1919 = vmatpush1.msra.mxu0 0.0
    %1920 = vmatprep.subr.mxu0 0.0
    %1921 = vmatpush1.msra.mxu0 0.0
    %1922 = vmatprep.subr.mxu0 0.0
    %1923 = vmatpush1.msra.mxu0 0.0
    %1924 = vmatprep.subr.mxu0 0.0
    %1925 = vmatpush1.msra.mxu0 0.0
    %1926 = vmatprep.subr.mxu0 0.0
    %1927 = vmatpush1.msra.mxu0 0.0
    %1928 = vmatprep.subr.mxu0 0.0
    %1929 = vmatpush1.msra.mxu0 0.0
    %1930 = vmatprep.subr.mxu0 0.0
    %1931 = vmatpush1.msra.mxu0 0.0
    %1932 = vmatprep.subr.mxu0 0.0
    %1933 = vmatpush1.msra.mxu0 0.0
    %1934 = vmatprep.subr.mxu0 0.0
    %1935 = vmatpush1.msra.mxu0 0.0
    %1936 = vmatprep.subr.mxu0 0.0
    %1937 = vmatpush1.msra.mxu0 0.0
    %1938 = vmatprep.subr.mxu0 0.0
    %1939 = vmatpush1.msra.mxu0 0.0
    %1940 = vmatprep.subr.mxu0 0.0
    %1941 = vmatpush1.msra.mxu0 0.0
    %1942 = vmatprep.subr.mxu0 0.0
    %1943 = vmatpush1.msra.mxu0 0.0
    %1944 = vmatprep.subr.mxu0 0.0
    %1945 = vmatpush1.msra.mxu0 0.0
    %1946 = vmatprep.subr.mxu0 0.0
    %1947 = vmatpush1.msra.mxu0 0.0
    %1948 = vmatprep.subr.mxu0 0.0
    %1949 = vmatpush1.msra.mxu0 0.0
    %1950 = vmatprep.mubr.f32.mxu0 0.0
    %1951 = vmatmul.mubr.f32.gmra.mrb[0].mxu0 %v1881
    %v1952 = vpop.f32.mrb[0].mxu0
    %v1953 = vadd.f32 0.0, %v1952
    %v1954 = vpop.f32.mrb[0].mxu0
    %1955 = vmatprep.mubr.f32.mxu0 0.0
    %1956 = vmatmul.mubr.f32.gmra.mrb[0].mxu0 %v1884
    %v1957 = vpop.f32.mrb[0].mxu0
    %v1958 = vadd.f32 0.0, %v1957
    %v1959 = vpop.f32.mrb[0].mxu0
    %1960 = vdwg.mxu0
    %s1961 = scalar_lea.vmem %s3, 288
    %v1962 = vld [vmem:[%s1961] sm:$0xff]
    %v1963 = vld [vmem:[%s1961 + $0x8] sm:$0xff]
    %v1964 = vld [vmem:[%s1961 + $0x10] sm:$0xff]
    %v1965 = vld [vmem:[%s1961 + $0x18] sm:$0xff]
    %s1966 = scalar_lea.vmem %s3, 352
    %v1967 = vld [vmem:[%s1966] sm:$0xff]
    %v1968 = vld [vmem:[%s1966 + $0x8] sm:$0xff]
    %v1969 = vld [vmem:[%s1966 + $0x10] sm:$0xff]
    %v1970 = vld [vmem:[%s1966 + $0x18] sm:$0xff]
    %s1971 = scalar_lea.vmem %s3, 416
    %v1972 = vld [vmem:[%s1971] sm:$0xff]
    %v1973 = vld [vmem:[%s1971 + $0x8] sm:$0xff]
    %v1974 = vld [vmem:[%s1971 + $0x10] sm:$0xff]
    %v1975 = vld [vmem:[%s1971 + $0x18] sm:$0xff]
    %s1976 = scalar_lea.vmem %s3, 480
    %v1977 = vld [vmem:[%s1976] sm:$0xff]
    %v1978 = vld [vmem:[%s1976 + $0x8] sm:$0xff]
    %v1979 = vld [vmem:[%s1976 + $0x10] sm:$0xff]
    %v1980 = vld [vmem:[%s1976 + $0x18] sm:$0xff]
    %s1981 = scalar_lea.vmem %s4, 7
    %v1982 = vld [vmem:[%s1981] sm:$0x1]
    %v1984 = vlaneseq
    %v1985 = vshrl.u32 %v1984, 7
    %v1986 = vsub.s32 0, %v1985
    %v1987 = vrot.slane %v1982, %v1986
    %1989 = vmatprep.subr.mxu0 0.0
    %1990 = vmatpush1.msra.mxu0 %v1962
    %1991 = vmatprep.subr.mxu0 0.0
    %1992 = vmatpush1.msra.mxu0 %v1963
    %1993 = vmatprep.subr.mxu0 0.0
    %1994 = vmatpush1.msra.mxu0 %v1964
    %1995 = vmatprep.subr.mxu0 0.0
    %1996 = vmatpush1.msra.mxu0 %v1965
    %1997 = vmatprep.subr.mxu0 0.0
    %1998 = vmatpush1.msra.mxu0 0.0
    %1999 = vmatprep.subr.mxu0 0.0
    %2000 = vmatpush1.msra.mxu0 0.0
    %2001 = vmatprep.subr.mxu0 0.0
    %2002 = vmatpush1.msra.mxu0 0.0
    %2003 = vmatprep.subr.mxu0 0.0
    %2004 = vmatpush1.msra.mxu0 0.0
    %2005 = vmatprep.subr.mxu0 0.0
    %2006 = vmatpush1.msra.mxu0 0.0
    %2007 = vmatprep.subr.mxu0 0.0
    %2008 = vmatpush1.msra.mxu0 0.0
    %2009 = vmatprep.subr.mxu0 0.0
    %2010 = vmatpush1.msra.mxu0 0.0
    %2011 = vmatprep.subr.mxu0 0.0
    %2012 = vmatpush1.msra.mxu0 0.0
    %2013 = vmatprep.subr.mxu0 0.0
    %2014 = vmatpush1.msra.mxu0 0.0
    %2015 = vmatprep.subr.mxu0 0.0
    %2016 = vmatpush1.msra.mxu0 0.0
    %2017 = vmatprep.subr.mxu0 0.0
    %2018 = vmatpush1.msra.mxu0 0.0
    %2019 = vmatprep.subr.mxu0 0.0
    %2020 = vmatpush1.msra.mxu0 0.0
    %2021 = vmatprep.subr.mxu0 0.0
    %2022 = vmatpush1.msra.mxu0 0.0
    %2023 = vmatprep.subr.mxu0 0.0
    %2024 = vmatpush1.msra.mxu0 0.0
    %2025 = vmatprep.subr.mxu0 0.0
    %2026 = vmatpush1.msra.mxu0 0.0
    %2027 = vmatprep.subr.mxu0 0.0
    %2028 = vmatpush1.msra.mxu0 0.0
    %2029 = vmatprep.subr.mxu0 0.0
    %2030 = vmatpush1.msra.mxu0 0.0
    %2031 = vmatprep.subr.mxu0 0.0
    %2032 = vmatpush1.msra.mxu0 0.0
    %2033 = vmatprep.subr.mxu0 0.0
    %2034 = vmatpush1.msra.mxu0 0.0
    %2035 = vmatprep.subr.mxu0 0.0
    %2036 = vmatpush1.msra.mxu0 0.0
    %2037 = vmatprep.subr.mxu0 0.0
    %2038 = vmatpush1.msra.mxu0 0.0
    %2039 = vmatprep.subr.mxu0 0.0
    %2040 = vmatpush1.msra.mxu0 0.0
    %2041 = vmatprep.subr.mxu0 0.0
    %2042 = vmatpush1.msra.mxu0 0.0
    %2043 = vmatprep.subr.mxu0 0.0
    %2044 = vmatpush1.msra.mxu0 0.0
    %2045 = vmatprep.subr.mxu0 0.0
    %2046 = vmatpush1.msra.mxu0 0.0
    %2047 = vmatprep.subr.mxu0 0.0
    %2048 = vmatpush1.msra.mxu0 0.0
    %2049 = vmatprep.subr.mxu0 0.0
    %2050 = vmatpush1.msra.mxu0 0.0
    %2051 = vmatprep.subr.mxu0 0.0
    %2052 = vmatpush1.msra.mxu0 0.0
    %2053 = vmatprep.mubr.f32.mxu0 0.0
    %2054 = vmatmul.mubr.f32.gmra.mrb[0].mxu0 %v1521
    %v2055 = vpop.f32.mrb[0].mxu0
    %v2056 = vadd.f32 %v1987, %v2055
    %v2057 = vpop.f32.mrb[0].mxu0
    %2058 = vmatprep.mubr.f32.mxu0 0.0
    %2059 = vmatmul.mubr.f32.gmra.mrb[0].mxu0 %v1524
    %v2060 = vpop.f32.mrb[0].mxu0
    %v2061 = vadd.f32 %v1987, %v2060
    %v2062 = vpop.f32.mrb[0].mxu0
    %2063 = vdwg.mxu0
    %s2064 = scalar_lea.vmem %s4, 9
    %v2065 = vld [vmem:[%s2064] sm:$0x1]
    %v2067 = vlaneseq
    %v2068 = vshrl.u32 %v2067, 7
    %v2069 = vsub.s32 0, %v2068
    %v2070 = vrot.slane %v2065, %v2069
    %2072 = vmatprep.subr.mxu0 0.0
    %2073 = vmatpush1.msra.mxu0 %v1967
    %2074 = vmatprep.subr.mxu0 0.0
    %2075 = vmatpush1.msra.mxu0 %v1968
    %2076 = vmatprep.subr.mxu0 0.0
    %2077 = vmatpush1.msra.mxu0 %v1969
    %2078 = vmatprep.subr.mxu0 0.0
    %2079 = vmatpush1.msra.mxu0 %v1970
    %2080 = vmatprep.subr.mxu0 0.0
    %2081 = vmatpush1.msra.mxu0 0.0
    %2082 = vmatprep.subr.mxu0 0.0
    %2083 = vmatpush1.msra.mxu0 0.0
    %2084 = vmatprep.subr.mxu0 0.0
    %2085 = vmatpush1.msra.mxu0 0.0
    %2086 = vmatprep.subr.mxu0 0.0
    %2087 = vmatpush1.msra.mxu0 0.0
    %2088 = vmatprep.subr.mxu0 0.0
    %2089 = vmatpush1.msra.mxu0 0.0
    %2090 = vmatprep.subr.mxu0 0.0
    %2091 = vmatpush1.msra.mxu0 0.0
    %2092 = vmatprep.subr.mxu0 0.0
    %2093 = vmatpush1.msra.mxu0 0.0
    %2094 = vmatprep.subr.mxu0 0.0
    %2095 = vmatpush1.msra.mxu0 0.0
    %2096 = vmatprep.subr.mxu0 0.0
    %2097 = vmatpush1.msra.mxu0 0.0
    %2098 = vmatprep.subr.mxu0 0.0
    %2099 = vmatpush1.msra.mxu0 0.0
    %2100 = vmatprep.subr.mxu0 0.0
    %2101 = vmatpush1.msra.mxu0 0.0
    %2102 = vmatprep.subr.mxu0 0.0
    %2103 = vmatpush1.msra.mxu0 0.0
    %2104 = vmatprep.subr.mxu0 0.0
    %2105 = vmatpush1.msra.mxu0 0.0
    %2106 = vmatprep.subr.mxu0 0.0
    %2107 = vmatpush1.msra.mxu0 0.0
    %2108 = vmatprep.subr.mxu0 0.0
    %2109 = vmatpush1.msra.mxu0 0.0
    %2110 = vmatprep.subr.mxu0 0.0
    %2111 = vmatpush1.msra.mxu0 0.0
    %2112 = vmatprep.subr.mxu0 0.0
    %2113 = vmatpush1.msra.mxu0 0.0
    %2114 = vmatprep.subr.mxu0 0.0
    %2115 = vmatpush1.msra.mxu0 0.0
    %2116 = vmatprep.subr.mxu0 0.0
    %2117 = vmatpush1.msra.mxu0 0.0
    %2118 = vmatprep.subr.mxu0 0.0
    %2119 = vmatpush1.msra.mxu0 0.0
    %2120 = vmatprep.subr.mxu0 0.0
    %2121 = vmatpush1.msra.mxu0 0.0
    %2122 = vmatprep.subr.mxu0 0.0
    %2123 = vmatpush1.msra.mxu0 0.0
    %2124 = vmatprep.subr.mxu0 0.0
    %2125 = vmatpush1.msra.mxu0 0.0
    %2126 = vmatprep.subr.mxu0 0.0
    %2127 = vmatpush1.msra.mxu0 0.0
    %2128 = vmatprep.subr.mxu0 0.0
    %2129 = vmatpush1.msra.mxu0 0.0
    %2130 = vmatprep.subr.mxu0 0.0
    %2131 = vmatpush1.msra.mxu0 0.0
    %2132 = vmatprep.subr.mxu0 0.0
    %2133 = vmatpush1.msra.mxu0 0.0
    %2134 = vmatprep.subr.mxu0 0.0
    %2135 = vmatpush1.msra.mxu0 0.0
    %2136 = vmatprep.mubr.f32.mxu0 0.0
    %2137 = vmatmul.mubr.f32.gmra.mrb[0].mxu0 %v1521
    %v2138 = vpop.f32.mrb[0].mxu0
    %v2139 = vadd.f32 %v2070, %v2138
    %v2140 = vpop.f32.mrb[0].mxu0
    %2141 = vmatprep.mubr.f32.mxu0 0.0
    %2142 = vmatmul.mubr.f32.gmra.mrb[0].mxu0 %v1524
    %v2143 = vpop.f32.mrb[0].mxu0
    %v2144 = vadd.f32 %v2070, %v2143
    %v2145 = vpop.f32.mrb[0].mxu0
    %2146 = vdwg.mxu0
    %s2147 = scalar_lea.vmem %s4, 11
    %v2148 = vld [vmem:[%s2147] sm:$0x1]
    %v2150 = vlaneseq
    %v2151 = vshrl.u32 %v2150, 7
    %v2152 = vsub.s32 0, %v2151
    %v2153 = vrot.slane %v2148, %v2152
    %2155 = vmatprep.subr.mxu0 0.0
    %2156 = vmatpush1.msra.mxu0 %v1972
    %2157 = vmatprep.subr.mxu0 0.0
    %2158 = vmatpush1.msra.mxu0 %v1973
    %2159 = vmatprep.subr.mxu0 0.0
    %2160 = vmatpush1.msra.mxu0 %v1974
    %2161 = vmatprep.subr.mxu0 0.0
    %2162 = vmatpush1.msra.mxu0 %v1975
    %2163 = vmatprep.subr.mxu0 0.0
    %2164 = vmatpush1.msra.mxu0 0.0
    %2165 = vmatprep.subr.mxu0 0.0
    %2166 = vmatpush1.msra.mxu0 0.0
    %2167 = vmatprep.subr.mxu0 0.0
    %2168 = vmatpush1.msra.mxu0 0.0
    %2169 = vmatprep.subr.mxu0 0.0
    %2170 = vmatpush1.msra.mxu0 0.0
    %2171 = vmatprep.subr.mxu0 0.0
    %2172 = vmatpush1.msra.mxu0 0.0
    %2173 = vmatprep.subr.mxu0 0.0
    %2174 = vmatpush1.msra.mxu0 0.0
    %2175 = vmatprep.subr.mxu0 0.0
    %2176 = vmatpush1.msra.mxu0 0.0
    %2177 = vmatprep.subr.mxu0 0.0
    %2178 = vmatpush1.msra.mxu0 0.0
    %2179 = vmatprep.subr.mxu0 0.0
    %2180 = vmatpush1.msra.mxu0 0.0
    %2181 = vmatprep.subr.mxu0 0.0
    %2182 = vmatpush1.msra.mxu0 0.0
    %2183 = vmatprep.subr.mxu0 0.0
    %2184 = vmatpush1.msra.mxu0 0.0
    %2185 = vmatprep.subr.mxu0 0.0
    %2186 = vmatpush1.msra.mxu0 0.0
    %2187 = vmatprep.subr.mxu0 0.0
    %2188 = vmatpush1.msra.mxu0 0.0
    %2189 = vmatprep.subr.mxu0 0.0
    %2190 = vmatpush1.msra.mxu0 0.0
    %2191 = vmatprep.subr.mxu0 0.0
    %2192 = vmatpush1.msra.mxu0 0.0
    %2193 = vmatprep.subr.mxu0 0.0
    %2194 = vmatpush1.msra.mxu0 0.0
    %2195 = vmatprep.subr.mxu0 0.0
    %2196 = vmatpush1.msra.mxu0 0.0
    %2197 = vmatprep.subr.mxu0 0.0
    %2198 = vmatpush1.msra.mxu0 0.0
    %2199 = vmatprep.subr.mxu0 0.0
    %2200 = vmatpush1.msra.mxu0 0.0
    %2201 = vmatprep.subr.mxu0 0.0
    %2202 = vmatpush1.msra.mxu0 0.0
    %2203 = vmatprep.subr.mxu0 0.0
    %2204 = vmatpush1.msra.mxu0 0.0
    %2205 = vmatprep.subr.mxu0 0.0
    %2206 = vmatpush1.msra.mxu0 0.0
    %2207 = vmatprep.subr.mxu0 0.0
    %2208 = vmatpush1.msra.mxu0 0.0
    %2209 = vmatprep.subr.mxu0 0.0
    %2210 = vmatpush1.msra.mxu0 0.0
    %2211 = vmatprep.subr.mxu0 0.0
    %2212 = vmatpush1.msra.mxu0 0.0
    %2213 = vmatprep.subr.mxu0 0.0
    %2214 = vmatpush1.msra.mxu0 0.0
    %2215 = vmatprep.subr.mxu0 0.0
    %2216 = vmatpush1.msra.mxu0 0.0
    %2217 = vmatprep.subr.mxu0 0.0
    %2218 = vmatpush1.msra.mxu0 0.0
    %2219 = vmatprep.mubr.f32.mxu0 0.0
    %2220 = vmatmul.mubr.f32.gmra.mrb[0].mxu0 %v1521
    %v2221 = vpop.f32.mrb[0].mxu0
    %v2222 = vadd.f32 %v2153, %v2221
    %v2223 = vpop.f32.mrb[0].mxu0
    %2224 = vmatprep.mubr.f32.mxu0 0.0
    %2225 = vmatmul.mubr.f32.gmra.mrb[0].mxu0 %v1524
    %v2226 = vpop.f32.mrb[0].mxu0
    %v2227 = vadd.f32 %v2153, %v2226
    %v2228 = vpop.f32.mrb[0].mxu0
    %2229 = vdwg.mxu0
    %v2231 = vsel %vm349, %v2056, 0
    %v2234 = vsel %vm349, %v2061, 0
    %v2237 = vsel %vm349, %v2139, 0
    %v2240 = vsel %vm349, %v2144, 0
    %2242 = vmatprep.subr.mxu0 0.0
    %2243 = vmatpush1.xpose.msra.mxu0 %v2237
    %2244 = vmatprep.subr.mxu0 0.0
    %2245 = vmatpush1.xpose.msra.mxu0 %v2240
    %2246 = vmatprep.subr.mxu0 0.0
    %2247 = vmatpush1.xpose.msra.mxu0 0.0
    %2248 = vmatprep.subr.mxu0 0.0
    %2249 = vmatpush1.xpose.msra.mxu0 0.0
    %2250 = vmatprep.subr.mxu0 0.0
    %2251 = vmatpush1.xpose.msra.mxu0 0.0
    %2252 = vmatprep.subr.mxu0 0.0
    %2253 = vmatpush1.xpose.msra.mxu0 0.0
    %2254 = vmatprep.subr.mxu0 0.0
    %2255 = vmatpush1.xpose.msra.mxu0 0.0
    %2256 = vmatprep.subr.mxu0 0.0
    %2257 = vmatpush1.xpose.msra.mxu0 0.0
    %2258 = vmatprep.subr.mxu0 0.0
    %2259 = vmatpush1.xpose.msra.mxu0 0.0
    %2260 = vmatprep.subr.mxu0 0.0
    %2261 = vmatpush1.xpose.msra.mxu0 0.0
    %2262 = vmatprep.subr.mxu0 0.0
    %2263 = vmatpush1.xpose.msra.mxu0 0.0
    %2264 = vmatprep.subr.mxu0 0.0
    %2265 = vmatpush1.xpose.msra.mxu0 0.0
    %2266 = vmatprep.subr.mxu0 0.0
    %2267 = vmatpush1.xpose.msra.mxu0 0.0
    %2268 = vmatprep.subr.mxu0 0.0
    %2269 = vmatpush1.xpose.msra.mxu0 0.0
    %2270 = vmatprep.subr.mxu0 0.0
    %2271 = vmatpush1.xpose.msra.mxu0 0.0
    %2272 = vmatprep.subr.mxu0 0.0
    %2273 = vmatpush1.xpose.msra.mxu0 0.0
    %2274 = vmatprep.subr.mxu0 0.0
    %2275 = vmatpush1.xpose.msra.mxu0 0.0
    %2276 = vmatprep.subr.mxu0 0.0
    %2277 = vmatpush1.xpose.msra.mxu0 0.0
    %2278 = vmatprep.subr.mxu0 0.0
    %2279 = vmatpush1.xpose.msra.mxu0 0.0
    %2280 = vmatprep.subr.mxu0 0.0
    %2281 = vmatpush1.xpose.msra.mxu0 0.0
    %2282 = vmatprep.subr.mxu0 0.0
    %2283 = vmatpush1.xpose.msra.mxu0 0.0
    %2284 = vmatprep.subr.mxu0 0.0
    %2285 = vmatpush1.xpose.msra.mxu0 0.0
    %2286 = vmatprep.subr.mxu0 0.0
    %2287 = vmatpush1.xpose.msra.mxu0 0.0
    %2288 = vmatprep.subr.mxu0 0.0
    %2289 = vmatpush1.xpose.msra.mxu0 0.0
    %2290 = vmatprep.subr.mxu0 0.0
    %2291 = vmatpush1.xpose.msra.mxu0 0.0
    %2292 = vmatprep.subr.mxu0 0.0
    %2293 = vmatpush1.xpose.msra.mxu0 0.0
    %2294 = vmatprep.subr.mxu0 0.0
    %2295 = vmatpush1.xpose.msra.mxu0 0.0
    %2296 = vmatprep.subr.mxu0 0.0
    %2297 = vmatpush1.xpose.msra.mxu0 0.0
    %2298 = vmatprep.subr.mxu0 0.0
    %2299 = vmatpush1.xpose.msra.mxu0 0.0
    %2300 = vmatprep.subr.mxu0 0.0
    %2301 = vmatpush1.xpose.msra.mxu0 0.0
    %2302 = vmatprep.subr.mxu0 0.0
    %2303 = vmatpush1.xpose.msra.mxu0 0.0
    %2304 = vmatprep.subr.mxu0 0.0
    %2305 = vmatpush1.xpose.msra.mxu0 0.0
    %2306 = vmatprep.mubr.f32.mxu0 0.0
    %2307 = vmatmul.mubr.f32.gmra.mrb[0].mxu0 %v2231
    %v2308 = vpop.f32.mrb[0].mxu0
    %v2309 = vadd.f32 0.0, %v2308
    %v2310 = vpop.f32.mrb[0].mxu0
    %2311 = vmatprep.mubr.f32.mxu0 0.0
    %2312 = vmatmul.mubr.f32.gmra.mrb[0].mxu0 %v2234
    %v2313 = vpop.f32.mrb[0].mxu0
    %v2314 = vadd.f32 0.0, %v2313
    %v2315 = vpop.f32.mrb[0].mxu0
    %2316 = vdwg.mxu0
    %v2317 = vmul.f32 %v2309, 0.25
    %v2318 = vmul.f32 %v2314, 0.25
    %v2319 = vadd.f32 %v2317, %v32
    %v2320 = vadd.f32 %v2318, %v33
    %v2321 = vsel %vm349, %v2319, -inf
    %2322 = vmax.xlane.f32.xlu0 %v2321
    %v2323 = vpop.xlane.xlu0 %2322
    %v2324 = vsel %vm349, %v2320, -inf
    %2325 = vmax.xlane.f32.xlu0 %v2324
    %v2326 = vpop.xlane.xlu0 %2325
    %v2327 = vsub.f32 %v2319, %v2323
    %v2328 = vsub.f32 %v2320, %v2326
    %v2329 = vmul.f32 %v2327, 1.442695
    %v2330 = vpow.pop %v2329
    %v2331 = vmul.f32 %v2328, 1.442695
    %v2332 = vpow.pop %v2331
    %v2333 = vsel %vm349, %v2330, 0.0
    %2334 = vadd.xlane.f32.xlu0 %v2333
    %v2335 = vpop.xlane.xlu0 %2334
    %v2336 = vsel %vm349, %v2332, 0.0
    %2337 = vadd.xlane.f32.xlu0 %v2336
    %v2338 = vpop.xlane.xlu0 %2337
    %v2339 = vrcp.pop %v2335
    %v2340 = vmul.f32 %v2330, %v2339
    %v2341 = vrcp.pop %v2338
    %v2342 = vmul.f32 %v2332, %v2341
    %v2344 = vsel %vm349, %v2340, 0
    %v2347 = vsel %vm349, %v2342, 0
    %2349 = vmatprep.subr.mxu0 0.0
    %2350 = vmatpush1.msra.mxu0 %v2222
    %2351 = vmatprep.subr.mxu0 0.0
    %2352 = vmatpush1.msra.mxu0 %v2227
    %2353 = vmatprep.subr.mxu0 0.0
    %2354 = vmatpush1.msra.mxu0 0.0
    %2355 = vmatprep.subr.mxu0 0.0
    %2356 = vmatpush1.msra.mxu0 0.0
    %2357 = vmatprep.subr.mxu0 0.0
    %2358 = vmatpush1.msra.mxu0 0.0
    %2359 = vmatprep.subr.mxu0 0.0
    %2360 = vmatpush1.msra.mxu0 0.0
    %2361 = vmatprep.subr.mxu0 0.0
    %2362 = vmatpush1.msra.mxu0 0.0
    %2363 = vmatprep.subr.mxu0 0.0
    %2364 = vmatpush1.msra.mxu0 0.0
    %2365 = vmatprep.subr.mxu0 0.0
    %2366 = vmatpush1.msra.mxu0 0.0
    %2367 = vmatprep.subr.mxu0 0.0
    %2368 = vmatpush1.msra.mxu0 0.0
    %2369 = vmatprep.subr.mxu0 0.0
    %2370 = vmatpush1.msra.mxu0 0.0
    %2371 = vmatprep.subr.mxu0 0.0
    %2372 = vmatpush1.msra.mxu0 0.0
    %2373 = vmatprep.subr.mxu0 0.0
    %2374 = vmatpush1.msra.mxu0 0.0
    %2375 = vmatprep.subr.mxu0 0.0
    %2376 = vmatpush1.msra.mxu0 0.0
    %2377 = vmatprep.subr.mxu0 0.0
    %2378 = vmatpush1.msra.mxu0 0.0
    %2379 = vmatprep.subr.mxu0 0.0
    %2380 = vmatpush1.msra.mxu0 0.0
    %2381 = vmatprep.subr.mxu0 0.0
    %2382 = vmatpush1.msra.mxu0 0.0
    %2383 = vmatprep.subr.mxu0 0.0
    %2384 = vmatpush1.msra.mxu0 0.0
    %2385 = vmatprep.subr.mxu0 0.0
    %2386 = vmatpush1.msra.mxu0 0.0
    %2387 = vmatprep.subr.mxu0 0.0
    %2388 = vmatpush1.msra.mxu0 0.0
    %2389 = vmatprep.subr.mxu0 0.0
    %2390 = vmatpush1.msra.mxu0 0.0
    %2391 = vmatprep.subr.mxu0 0.0
    %2392 = vmatpush1.msra.mxu0 0.0
    %2393 = vmatprep.subr.mxu0 0.0
    %2394 = vmatpush1.msra.mxu0 0.0
    %2395 = vmatprep.subr.mxu0 0.0
    %2396 = vmatpush1.msra.mxu0 0.0
    %2397 = vmatprep.subr.mxu0 0.0
    %2398 = vmatpush1.msra.mxu0 0.0
    %2399 = vmatprep.subr.mxu0 0.0
    %2400 = vmatpush1.msra.mxu0 0.0
    %2401 = vmatprep.subr.mxu0 0.0
    %2402 = vmatpush1.msra.mxu0 0.0
    %2403 = vmatprep.subr.mxu0 0.0
    %2404 = vmatpush1.msra.mxu0 0.0
    %2405 = vmatprep.subr.mxu0 0.0
    %2406 = vmatpush1.msra.mxu0 0.0
    %2407 = vmatprep.subr.mxu0 0.0
    %2408 = vmatpush1.msra.mxu0 0.0
    %2409 = vmatprep.subr.mxu0 0.0
    %2410 = vmatpush1.msra.mxu0 0.0
    %2411 = vmatprep.subr.mxu0 0.0
    %2412 = vmatpush1.msra.mxu0 0.0
    %2413 = vmatprep.mubr.f32.mxu0 0.0
    %2414 = vmatmul.mubr.f32.gmra.mrb[0].mxu0 %v2344
    %v2415 = vpop.f32.mrb[0].mxu0
    %v2416 = vadd.f32 0.0, %v2415
    %v2417 = vpop.f32.mrb[0].mxu0
    %2418 = vmatprep.mubr.f32.mxu0 0.0
    %2419 = vmatmul.mubr.f32.gmra.mrb[0].mxu0 %v2347
    %v2420 = vpop.f32.mrb[0].mxu0
    %v2421 = vadd.f32 0.0, %v2420
    %v2422 = vpop.f32.mrb[0].mxu0
    %2423 = vdwg.mxu0
    %v2425 = vsel %vm349, %v2416, 0
    %v2428 = vsel %vm349, %v2421, 0
    %v2431 = vsel %vm349, %v1977, 0
    %v2434 = vsel %vm349, %v1978, 0
    %v2437 = vsel %vm349, %v1979, 0
    %v2440 = vsel %vm349, %v1980, 0
    %2442 = vmatprep.subr.mxu0 0.0
    %2443 = vmatpush1.xpose.msra.mxu0 %v2431
    %2444 = vmatprep.subr.mxu0 0.0
    %2445 = vmatpush1.xpose.msra.mxu0 %v2434
    %2446 = vmatprep.subr.mxu0 0.0
    %2447 = vmatpush1.xpose.msra.mxu0 %v2437
    %2448 = vmatprep.subr.mxu0 0.0
    %2449 = vmatpush1.xpose.msra.mxu0 %v2440
    %2450 = vmatprep.subr.mxu0 0.0
    %2451 = vmatpush1.xpose.msra.mxu0 0.0
    %2452 = vmatprep.subr.mxu0 0.0
    %2453 = vmatpush1.xpose.msra.mxu0 0.0
    %2454 = vmatprep.subr.mxu0 0.0
    %2455 = vmatpush1.xpose.msra.mxu0 0.0
    %2456 = vmatprep.subr.mxu0 0.0
    %2457 = vmatpush1.xpose.msra.mxu0 0.0
    %2458 = vmatprep.subr.mxu0 0.0
    %2459 = vmatpush1.xpose.msra.mxu0 0.0
    %2460 = vmatprep.subr.mxu0 0.0
    %2461 = vmatpush1.xpose.msra.mxu0 0.0
    %2462 = vmatprep.subr.mxu0 0.0
    %2463 = vmatpush1.xpose.msra.mxu0 0.0
    %2464 = vmatprep.subr.mxu0 0.0
    %2465 = vmatpush1.xpose.msra.mxu0 0.0
    %2466 = vmatprep.subr.mxu0 0.0
    %2467 = vmatpush1.xpose.msra.mxu0 0.0
    %2468 = vmatprep.subr.mxu0 0.0
    %2469 = vmatpush1.xpose.msra.mxu0 0.0
    %2470 = vmatprep.subr.mxu0 0.0
    %2471 = vmatpush1.xpose.msra.mxu0 0.0
    %2472 = vmatprep.subr.mxu0 0.0
    %2473 = vmatpush1.xpose.msra.mxu0 0.0
    %2474 = vmatprep.subr.mxu0 0.0
    %2475 = vmatpush1.xpose.msra.mxu0 0.0
    %2476 = vmatprep.subr.mxu0 0.0
    %2477 = vmatpush1.xpose.msra.mxu0 0.0
    %2478 = vmatprep.subr.mxu0 0.0
    %2479 = vmatpush1.xpose.msra.mxu0 0.0
    %2480 = vmatprep.subr.mxu0 0.0
    %2481 = vmatpush1.xpose.msra.mxu0 0.0
    %2482 = vmatprep.subr.mxu0 0.0
    %2483 = vmatpush1.xpose.msra.mxu0 0.0
    %2484 = vmatprep.subr.mxu0 0.0
    %2485 = vmatpush1.xpose.msra.mxu0 0.0
    %2486 = vmatprep.subr.mxu0 0.0
    %2487 = vmatpush1.xpose.msra.mxu0 0.0
    %2488 = vmatprep.subr.mxu0 0.0
    %2489 = vmatpush1.xpose.msra.mxu0 0.0
    %2490 = vmatprep.subr.mxu0 0.0
    %2491 = vmatpush1.xpose.msra.mxu0 0.0
    %2492 = vmatprep.subr.mxu0 0.0
    %2493 = vmatpush1.xpose.msra.mxu0 0.0
    %2494 = vmatprep.subr.mxu0 0.0
    %2495 = vmatpush1.xpose.msra.mxu0 0.0
    %2496 = vmatprep.subr.mxu0 0.0
    %2497 = vmatpush1.xpose.msra.mxu0 0.0
    %2498 = vmatprep.subr.mxu0 0.0
    %2499 = vmatpush1.xpose.msra.mxu0 0.0
    %2500 = vmatprep.subr.mxu0 0.0
    %2501 = vmatpush1.xpose.msra.mxu0 0.0
    %2502 = vmatprep.subr.mxu0 0.0
    %2503 = vmatpush1.xpose.msra.mxu0 0.0
    %2504 = vmatprep.subr.mxu0 0.0
    %2505 = vmatpush1.xpose.msra.mxu0 0.0
    %2506 = vmatprep.mubr.f32.mxu0 0.0
    %2507 = vmatmul.mubr.f32.gmra.mrb[0].mxu0 %v2425
    %v2508 = vpop.f32.mrb[0].mxu0
    %v2509 = vadd.f32 0.0, %v2508
    %v2510 = vpop.f32.mrb[0].mxu0
    %2511 = vmatprep.mubr.f32.mxu0 0.0
    %2512 = vmatmul.mubr.f32.gmra.mrb[0].mxu0 %v2428
    %v2513 = vpop.f32.mrb[0].mxu0
    %v2514 = vadd.f32 0.0, %v2513
    %v2515 = vpop.f32.mrb[0].mxu0
    %2516 = vdwg.mxu0
    %v2518 = vsel %vm349, %v1953, 0
    %v2521 = vsel %vm349, %v1958, 0
    %v2524 = vsel %vm349, %v1508, 0
    %v2527 = vsel %vm349, %v1509, 0
    %v2530 = vsel %vm349, %v1510, 0
    %v2533 = vsel %vm349, %v1511, 0
    %2535 = vmatprep.subr.mxu0 0.0
    %2536 = vmatpush1.xpose.msra.mxu0 %v2524
    %2537 = vmatprep.subr.mxu0 0.0
    %2538 = vmatpush1.xpose.msra.mxu0 %v2527
    %2539 = vmatprep.subr.mxu0 0.0
    %2540 = vmatpush1.xpose.msra.mxu0 %v2530
    %2541 = vmatprep.subr.mxu0 0.0
    %2542 = vmatpush1.xpose.msra.mxu0 %v2533
    %2543 = vmatprep.subr.mxu0 0.0
    %2544 = vmatpush1.xpose.msra.mxu0 0.0
    %2545 = vmatprep.subr.mxu0 0.0
    %2546 = vmatpush1.xpose.msra.mxu0 0.0
    %2547 = vmatprep.subr.mxu0 0.0
    %2548 = vmatpush1.xpose.msra.mxu0 0.0
    %2549 = vmatprep.subr.mxu0 0.0
    %2550 = vmatpush1.xpose.msra.mxu0 0.0
    %2551 = vmatprep.subr.mxu0 0.0
    %2552 = vmatpush1.xpose.msra.mxu0 0.0
    %2553 = vmatprep.subr.mxu0 0.0
    %2554 = vmatpush1.xpose.msra.mxu0 0.0
    %2555 = vmatprep.subr.mxu0 0.0
    %2556 = vmatpush1.xpose.msra.mxu0 0.0
    %2557 = vmatprep.subr.mxu0 0.0
    %2558 = vmatpush1.xpose.msra.mxu0 0.0
    %2559 = vmatprep.subr.mxu0 0.0
    %2560 = vmatpush1.xpose.msra.mxu0 0.0
    %2561 = vmatprep.subr.mxu0 0.0
    %2562 = vmatpush1.xpose.msra.mxu0 0.0
    %2563 = vmatprep.subr.mxu0 0.0
    %2564 = vmatpush1.xpose.msra.mxu0 0.0
    %2565 = vmatprep.subr.mxu0 0.0
    %2566 = vmatpush1.xpose.msra.mxu0 0.0
    %2567 = vmatprep.subr.mxu0 0.0
    %2568 = vmatpush1.xpose.msra.mxu0 0.0
    %2569 = vmatprep.subr.mxu0 0.0
    %2570 = vmatpush1.xpose.msra.mxu0 0.0
    %2571 = vmatprep.subr.mxu0 0.0
    %2572 = vmatpush1.xpose.msra.mxu0 0.0
    %2573 = vmatprep.subr.mxu0 0.0
    %2574 = vmatpush1.xpose.msra.mxu0 0.0
    %2575 = vmatprep.subr.mxu0 0.0
    %2576 = vmatpush1.xpose.msra.mxu0 0.0
    %2577 = vmatprep.subr.mxu0 0.0
    %2578 = vmatpush1.xpose.msra.mxu0 0.0
    %2579 = vmatprep.subr.mxu0 0.0
    %2580 = vmatpush1.xpose.msra.mxu0 0.0
    %2581 = vmatprep.subr.mxu0 0.0
    %2582 = vmatpush1.xpose.msra.mxu0 0.0
    %2583 = vmatprep.subr.mxu0 0.0
    %2584 = vmatpush1.xpose.msra.mxu0 0.0
    %2585 = vmatprep.subr.mxu0 0.0
    %2586 = vmatpush1.xpose.msra.mxu0 0.0
    %2587 = vmatprep.subr.mxu0 0.0
    %2588 = vmatpush1.xpose.msra.mxu0 0.0
    %2589 = vmatprep.subr.mxu0 0.0
    %2590 = vmatpush1.xpose.msra.mxu0 0.0
    %2591 = vmatprep.subr.mxu0 0.0
    %2592 = vmatpush1.xpose.msra.mxu0 0.0
    %2593 = vmatprep.subr.mxu0 0.0
    %2594 = vmatpush1.xpose.msra.mxu0 0.0
    %2595 = vmatprep.subr.mxu0 0.0
    %2596 = vmatpush1.xpose.msra.mxu0 0.0
    %2597 = vmatprep.subr.mxu0 0.0
    %2598 = vmatpush1.xpose.msra.mxu0 0.0
    %2599 = vmatprep.mubr.f32.mxu0 0.0
    %2600 = vmatmul.mubr.f32.gmra.mrb[0].mxu0 %v2518
    %v2601 = vpop.f32.mrb[0].mxu0
    %v2602 = vadd.f32 %v2509, %v2601
    %v2603 = vpop.f32.mrb[0].mxu0
    %2604 = vmatprep.mubr.f32.mxu0 0.0
    %2605 = vmatmul.mubr.f32.gmra.mrb[0].mxu0 %v2521
    %v2606 = vpop.f32.mrb[0].mxu0
    %v2607 = vadd.f32 %v2514, %v2606
    %v2608 = vpop.f32.mrb[0].mxu0
    %2609 = vdwg.mxu0
    %v2610 = vadd.f32 %v1490, %v2602
    %v2611 = vadd.f32 %v1491, %v2607
    %v2612 = vlaneseq
    %v2613 = vshrl.u32 %v2612, 7
    %v2614 = vsub.s32 0, %v2613
    %v2615 = vrot.slane %v31, %v2614
    %v2616 = vadd.f32 %v2610, %v2615
    %v2617 = vadd.f32 %v2611, %v2615
    %v2618 = vsel %vm36, %v2616, 0.0
    %2619 = vadd.xlane.f32.xlu0 %v2618
    %v2620 = vpop.xlane.xlu0 %2619
    %v2621 = vsel %vm36, %v2617, 0.0
    %2622 = vadd.xlane.f32.xlu0 %v2621
    %v2623 = vpop.xlane.xlu0 %2622
    %v2624 = vmul.f32 %v2620, %v43
    %v2625 = vmul.f32 %v2623, %v43
    %v2626 = vsub.f32 %v2616, %v2624
    %v2627 = vsub.f32 %v2617, %v2625
    %v2628 = vmul.f32 %v2626, %v2626
    %v2629 = vmul.f32 %v2627, %v2627
    %v2630 = vsel %vm36, %v2628, 0.0
    %2631 = vadd.xlane.f32.xlu0 %v2630
    %v2632 = vpop.xlane.xlu0 %2631
    %v2633 = vsel %vm36, %v2629, 0.0
    %2634 = vadd.xlane.f32.xlu0 %v2633
    %v2635 = vpop.xlane.xlu0 %2634
    %v2636 = vmul.f32 %v2632, %v43
    %v2637 = vmul.f32 %v2635, %v43
    %v2638 = vadd.f32 %v2636, 1e-12
    %v2639 = vadd.f32 %v2637, 1e-12
    %v2640 = vrsqrt.pop %v2638
    %v2641 = vrsqrt.pop %v2639
    %v2642 = vmul.f32 %v2626, %v2640
    %v2643 = vmul.f32 %v2627, %v2641
    %v2644 = vlaneseq
    %v2645 = vshrl.u32 %v2644, 7
    %v2646 = vsub.s32 1, %v2645
    %v2647 = vrot.slane %v31, %v2646
    %v2648 = vmul.f32 %v2642, %v2647
    %v2649 = vmul.f32 %v2643, %v2647
    %v2650 = vlaneseq
    %v2651 = vshrl.u32 %v2650, 7
    %v2652 = vsub.s32 2, %v2651
    %v2653 = vrot.slane %v31, %v2652
    %v2654 = vadd.f32 %v2648, %v2653
    %v2655 = vadd.f32 %v2649, %v2653
    %s2656 = scalar_lea.vmem %s5, 64
    %v2657 = vld [vmem:[%s2656] sm:$0xff]
    %v2658 = vld [vmem:[%s2656 + $0x8] sm:$0xff]
    %v2659 = vld [vmem:[%s2656 + $0x10] sm:$0xff]
    %v2660 = vld [vmem:[%s2656 + $0x18] sm:$0xff]
    %s2661 = scalar_lea.vmem %s6, 1
    %v2662 = vld [vmem:[%s2661] sm:$0x1]
    %v2664 = vlaneseq
    %v2665 = vshrl.u32 %v2664, 7
    %v2666 = vsub.s32 0, %v2665
    %v2667 = vrot.slane %v2662, %v2666
    %v2670 = vsel %vm36, %v2654, 0
    %v2673 = vsel %vm36, %v2655, 0
    %2675 = vmatprep.subr.mxu0 0.0
    %2676 = vmatpush1.msra.mxu0 %v2657
    %2677 = vmatprep.subr.mxu0 0.0
    %2678 = vmatpush1.msra.mxu0 %v2658
    %2679 = vmatprep.subr.mxu0 0.0
    %2680 = vmatpush1.msra.mxu0 %v2659
    %2681 = vmatprep.subr.mxu0 0.0
    %2682 = vmatpush1.msra.mxu0 %v2660
    %2683 = vmatprep.subr.mxu0 0.0
    %2684 = vmatpush1.msra.mxu0 0.0
    %2685 = vmatprep.subr.mxu0 0.0
    %2686 = vmatpush1.msra.mxu0 0.0
    %2687 = vmatprep.subr.mxu0 0.0
    %2688 = vmatpush1.msra.mxu0 0.0
    %2689 = vmatprep.subr.mxu0 0.0
    %2690 = vmatpush1.msra.mxu0 0.0
    %2691 = vmatprep.subr.mxu0 0.0
    %2692 = vmatpush1.msra.mxu0 0.0
    %2693 = vmatprep.subr.mxu0 0.0
    %2694 = vmatpush1.msra.mxu0 0.0
    %2695 = vmatprep.subr.mxu0 0.0
    %2696 = vmatpush1.msra.mxu0 0.0
    %2697 = vmatprep.subr.mxu0 0.0
    %2698 = vmatpush1.msra.mxu0 0.0
    %2699 = vmatprep.subr.mxu0 0.0
    %2700 = vmatpush1.msra.mxu0 0.0
    %2701 = vmatprep.subr.mxu0 0.0
    %2702 = vmatpush1.msra.mxu0 0.0
    %2703 = vmatprep.subr.mxu0 0.0
    %2704 = vmatpush1.msra.mxu0 0.0
    %2705 = vmatprep.subr.mxu0 0.0
    %2706 = vmatpush1.msra.mxu0 0.0
    %2707 = vmatprep.subr.mxu0 0.0
    %2708 = vmatpush1.msra.mxu0 0.0
    %2709 = vmatprep.subr.mxu0 0.0
    %2710 = vmatpush1.msra.mxu0 0.0
    %2711 = vmatprep.subr.mxu0 0.0
    %2712 = vmatpush1.msra.mxu0 0.0
    %2713 = vmatprep.subr.mxu0 0.0
    %2714 = vmatpush1.msra.mxu0 0.0
    %2715 = vmatprep.subr.mxu0 0.0
    %2716 = vmatpush1.msra.mxu0 0.0
    %2717 = vmatprep.subr.mxu0 0.0
    %2718 = vmatpush1.msra.mxu0 0.0
    %2719 = vmatprep.subr.mxu0 0.0
    %2720 = vmatpush1.msra.mxu0 0.0
    %2721 = vmatprep.subr.mxu0 0.0
    %2722 = vmatpush1.msra.mxu0 0.0
    %2723 = vmatprep.subr.mxu0 0.0
    %2724 = vmatpush1.msra.mxu0 0.0
    %2725 = vmatprep.subr.mxu0 0.0
    %2726 = vmatpush1.msra.mxu0 0.0
    %2727 = vmatprep.subr.mxu0 0.0
    %2728 = vmatpush1.msra.mxu0 0.0
    %2729 = vmatprep.subr.mxu0 0.0
    %2730 = vmatpush1.msra.mxu0 0.0
    %2731 = vmatprep.subr.mxu0 0.0
    %2732 = vmatpush1.msra.mxu0 0.0
    %2733 = vmatprep.subr.mxu0 0.0
    %2734 = vmatpush1.msra.mxu0 0.0
    %2735 = vmatprep.subr.mxu0 0.0
    %2736 = vmatpush1.msra.mxu0 0.0
    %2737 = vmatprep.subr.mxu0 0.0
    %2738 = vmatpush1.msra.mxu0 0.0
    %2739 = vmatprep.mubr.f32.mxu0 0.0
    %2740 = vmatmul.mubr.f32.gmra.mrb[0].mxu0 %v2670
    %v2741 = vpop.f32.mrb[0].mxu0
    %v2742 = vadd.f32 %v2667, %v2741
    %v2743 = vpop.f32.mrb[0].mxu0
    %2744 = vmatprep.mubr.f32.mxu0 0.0
    %2745 = vmatmul.mubr.f32.gmra.mrb[0].mxu0 %v2673
    %v2746 = vpop.f32.mrb[0].mxu0
    %v2747 = vadd.f32 %v2667, %v2746
    %v2748 = vpop.f32.mrb[0].mxu0
    %2749 = vdwg.mxu0
    %v2750 = vmul.f32 %v2742, %v2742
    %v2751 = vmul.f32 %v2747, %v2747
    %v2752 = vmul.f32 %v2742, %v2750
    %v2753 = vmul.f32 %v2747, %v2751
    %v2754 = vmul.f32 %v2752, 0.044715
    %v2755 = vmul.f32 %v2753, 0.044715
    %v2756 = vadd.f32 %v2742, %v2754
    %v2757 = vadd.f32 %v2747, %v2755
    %v2758 = vmul.f32 %v2756, 0.7978846
    %v2759 = vmul.f32 %v2757, 0.7978846
    %v2760 = vtanh.pop %v2758
    %v2761 = vtanh.pop %v2759
    %v2762 = vadd.f32 %v2760, 1.0
    %v2763 = vadd.f32 %v2761, 1.0
    %v2764 = vmul.f32 %v2762, 0.5
    %v2765 = vmul.f32 %v2763, 0.5
    %v2766 = vmul.f32 %v2742, %v2764
    %v2767 = vmul.f32 %v2747, %v2765
    %s2768 = scalar_lea.vmem %s5, 96
    %v2769 = vld [vmem:[%s2768] sm:$0xff]
    %v2770 = vld [vmem:[%s2768 + $0x8] sm:$0xff]
    %v2771 = vld [vmem:[%s2768 + $0x10] sm:$0xff]
    %v2772 = vld [vmem:[%s2768 + $0x18] sm:$0xff]
    %v2773 = vlaneseq
    %v2774 = vshrl.u32 %v2773, 7
    %v2775 = vsub.s32 3, %v2774
    %v2776 = vrot.slane %v31, %v2775
    %v2778 = vsel %vm1358, %v2766, 0
    %v2781 = vsel %vm1358, %v2767, 0
    %v2784 = vsel %vm1358, %v2769, 0
    %v2787 = vsel %vm1358, %v2770, 0
    %v2790 = vsel %vm1358, %v2771, 0
    %v2793 = vsel %vm1358, %v2772, 0
    %2795 = vmatprep.subr.mxu0 0.0
    %2796 = vmatpush1.xpose.msra.mxu0 %v2784
    %2797 = vmatprep.subr.mxu0 0.0
    %2798 = vmatpush1.xpose.msra.mxu0 %v2787
    %2799 = vmatprep.subr.mxu0 0.0
    %2800 = vmatpush1.xpose.msra.mxu0 %v2790
    %2801 = vmatprep.subr.mxu0 0.0
    %2802 = vmatpush1.xpose.msra.mxu0 %v2793
    %2803 = vmatprep.subr.mxu0 0.0
    %2804 = vmatpush1.xpose.msra.mxu0 0.0
    %2805 = vmatprep.subr.mxu0 0.0
    %2806 = vmatpush1.xpose.msra.mxu0 0.0
    %2807 = vmatprep.subr.mxu0 0.0
    %2808 = vmatpush1.xpose.msra.mxu0 0.0
    %2809 = vmatprep.subr.mxu0 0.0
    %2810 = vmatpush1.xpose.msra.mxu0 0.0
    %2811 = vmatprep.subr.mxu0 0.0
    %2812 = vmatpush1.xpose.msra.mxu0 0.0
    %2813 = vmatprep.subr.mxu0 0.0
    %2814 = vmatpush1.xpose.msra.mxu0 0.0
    %2815 = vmatprep.subr.mxu0 0.0
    %2816 = vmatpush1.xpose.msra.mxu0 0.0
    %2817 = vmatprep.subr.mxu0 0.0
    %2818 = vmatpush1.xpose.msra.mxu0 0.0
    %2819 = vmatprep.subr.mxu0 0.0
    %2820 = vmatpush1.xpose.msra.mxu0 0.0
    %2821 = vmatprep.subr.mxu0 0.0
    %2822 = vmatpush1.xpose.msra.mxu0 0.0
    %2823 = vmatprep.subr.mxu0 0.0
    %2824 = vmatpush1.xpose.msra.mxu0 0.0
    %2825 = vmatprep.subr.mxu0 0.0
    %2826 = vmatpush1.xpose.msra.mxu0 0.0
    %2827 = vmatprep.subr.mxu0 0.0
    %2828 = vmatpush1.xpose.msra.mxu0 0.0
    %2829 = vmatprep.subr.mxu0 0.0
    %2830 = vmatpush1.xpose.msra.mxu0 0.0
    %2831 = vmatprep.subr.mxu0 0.0
    %2832 = vmatpush1.xpose.msra.mxu0 0.0
    %2833 = vmatprep.subr.mxu0 0.0
    %2834 = vmatpush1.xpose.msra.mxu0 0.0
    %2835 = vmatprep.subr.mxu0 0.0
    %2836 = vmatpush1.xpose.msra.mxu0 0.0
    %2837 = vmatprep.subr.mxu0 0.0
    %2838 = vmatpush1.xpose.msra.mxu0 0.0
    %2839 = vmatprep.subr.mxu0 0.0
    %2840 = vmatpush1.xpose.msra.mxu0 0.0
    %2841 = vmatprep.subr.mxu0 0.0
    %2842 = vmatpush1.xpose.msra.mxu0 0.0
    %2843 = vmatprep.subr.mxu0 0.0
    %2844 = vmatpush1.xpose.msra.mxu0 0.0
    %2845 = vmatprep.subr.mxu0 0.0
    %2846 = vmatpush1.xpose.msra.mxu0 0.0
    %2847 = vmatprep.subr.mxu0 0.0
    %2848 = vmatpush1.xpose.msra.mxu0 0.0
    %2849 = vmatprep.subr.mxu0 0.0
    %2850 = vmatpush1.xpose.msra.mxu0 0.0
    %2851 = vmatprep.subr.mxu0 0.0
    %2852 = vmatpush1.xpose.msra.mxu0 0.0
    %2853 = vmatprep.subr.mxu0 0.0
    %2854 = vmatpush1.xpose.msra.mxu0 0.0
    %2855 = vmatprep.subr.mxu0 0.0
    %2856 = vmatpush1.xpose.msra.mxu0 0.0
    %2857 = vmatprep.subr.mxu0 0.0
    %2858 = vmatpush1.xpose.msra.mxu0 0.0
    %2859 = vmatprep.mubr.f32.mxu0 0.0
    %2860 = vmatmul.mubr.f32.gmra.mrb[0].mxu0 %v2778
    %v2861 = vpop.f32.mrb[0].mxu0
    %v2862 = vadd.f32 %v2776, %v2861
    %v2863 = vpop.f32.mrb[0].mxu0
    %2864 = vmatprep.mubr.f32.mxu0 0.0
    %2865 = vmatmul.mubr.f32.gmra.mrb[0].mxu0 %v2781
    %v2866 = vpop.f32.mrb[0].mxu0
    %v2867 = vadd.f32 %v2776, %v2866
    %v2868 = vpop.f32.mrb[0].mxu0
    %2869 = vdwg.mxu0
    %v2870 = vadd.f32 %v2654, %v2862
    %v2871 = vadd.f32 %v2655, %v2867
    %v2872 = vsel %vm36, %v2870, 0.0
    %2873 = vadd.xlane.f32.xlu0 %v2872
    %v2874 = vpop.xlane.xlu0 %2873
    %v2875 = vsel %vm36, %v2871, 0.0
    %2876 = vadd.xlane.f32.xlu0 %v2875
    %v2877 = vpop.xlane.xlu0 %2876
    %v2878 = vmul.f32 %v2874, %v43
    %v2879 = vmul.f32 %v2877, %v43
    %v2880 = vsub.f32 %v2870, %v2878
    %v2881 = vsub.f32 %v2871, %v2879
    %v2882 = vmul.f32 %v2880, %v2880
    %v2883 = vmul.f32 %v2881, %v2881
    %v2884 = vsel %vm36, %v2882, 0.0
    %2885 = vadd.xlane.f32.xlu0 %v2884
    %v2886 = vpop.xlane.xlu0 %2885
    %v2887 = vsel %vm36, %v2883, 0.0
    %2888 = vadd.xlane.f32.xlu0 %v2887
    %v2889 = vpop.xlane.xlu0 %2888
    %v2890 = vmul.f32 %v2886, %v43
    %v2891 = vmul.f32 %v2889, %v43
    %v2892 = vadd.f32 %v2890, 1e-12
    %v2893 = vadd.f32 %v2891, 1e-12
    %v2894 = vrsqrt.pop %v2892
    %v2895 = vrsqrt.pop %v2893
    %v2896 = vmul.f32 %v2880, %v2894
    %v2897 = vmul.f32 %v2881, %v2895
    %v2898 = vlaneseq
    %v2899 = vshrl.u32 %v2898, 7
    %v2900 = vsub.s32 4, %v2899
    %v2901 = vrot.slane %v31, %v2900
    %v2902 = vmul.f32 %v2896, %v2901
    %v2903 = vmul.f32 %v2897, %v2901
    %v2904 = vlaneseq
    %v2905 = vshrl.u32 %v2904, 7
    %v2906 = vsub.s32 5, %v2905
    %v2907 = vrot.slane %v31, %v2906
    %v2908 = vadd.f32 %v2902, %v2907
    %v2909 = vadd.f32 %v2903, %v2907
    %v2910 = vld [vmem:[%s2] sm:$0x3]
    %v2912 = vsel %vm349, %v2910, 0
    %2914 = vmatprep.subr.mxu0 0.0
    %2915 = vmatpush1.msra.mxu0 %v2908
    %2916 = vmatprep.subr.mxu0 0.0
    %2917 = vmatpush1.msra.mxu0 %v2909
    %2918 = vmatprep.subr.mxu0 0.0
    %2919 = vmatpush1.msra.mxu0 0.0
    %2920 = vmatprep.subr.mxu0 0.0
    %2921 = vmatpush1.msra.mxu0 0.0
    %2922 = vmatprep.subr.mxu0 0.0
    %2923 = vmatpush1.msra.mxu0 0.0
    %2924 = vmatprep.subr.mxu0 0.0
    %2925 = vmatpush1.msra.mxu0 0.0
    %2926 = vmatprep.subr.mxu0 0.0
    %2927 = vmatpush1.msra.mxu0 0.0
    %2928 = vmatprep.subr.mxu0 0.0
    %2929 = vmatpush1.msra.mxu0 0.0
    %2930 = vmatprep.subr.mxu0 0.0
    %2931 = vmatpush1.msra.mxu0 0.0
    %2932 = vmatprep.subr.mxu0 0.0
    %2933 = vmatpush1.msra.mxu0 0.0
    %2934 = vmatprep.subr.mxu0 0.0
    %2935 = vmatpush1.msra.mxu0 0.0
    %2936 = vmatprep.subr.mxu0 0.0
    %2937 = vmatpush1.msra.mxu0 0.0
    %2938 = vmatprep.subr.mxu0 0.0
    %2939 = vmatpush1.msra.mxu0 0.0
    %2940 = vmatprep.subr.mxu0 0.0
    %2941 = vmatpush1.msra.mxu0 0.0
    %2942 = vmatprep.subr.mxu0 0.0
    %2943 = vmatpush1.msra.mxu0 0.0
    %2944 = vmatprep.subr.mxu0 0.0
    %2945 = vmatpush1.msra.mxu0 0.0
    %2946 = vmatprep.subr.mxu0 0.0
    %2947 = vmatpush1.msra.mxu0 0.0
    %2948 = vmatprep.subr.mxu0 0.0
    %2949 = vmatpush1.msra.mxu0 0.0
    %2950 = vmatprep.subr.mxu0 0.0
    %2951 = vmatpush1.msra.mxu0 0.0
    %2952 = vmatprep.subr.mxu0 0.0
    %2953 = vmatpush1.msra.mxu0 0.0
    %2954 = vmatprep.subr.mxu0 0.0
    %2955 = vmatpush1.msra.mxu0 0.0
    %2956 = vmatprep.subr.mxu0 0.0
    %2957 = vmatpush1.msra.mxu0 0.0
    %2958 = vmatprep.subr.mxu0 0.0
    %2959 = vmatpush1.msra.mxu0 0.0
    %2960 = vmatprep.subr.mxu0 0.0
    %2961 = vmatpush1.msra.mxu0 0.0
    %2962 = vmatprep.subr.mxu0 0.0
    %2963 = vmatpush1.msra.mxu0 0.0
    %2964 = vmatprep.subr.mxu0 0.0
    %2965 = vmatpush1.msra.mxu0 0.0
    %2966 = vmatprep.subr.mxu0 0.0
    %2967 = vmatpush1.msra.mxu0 0.0
    %2968 = vmatprep.subr.mxu0 0.0
    %2969 = vmatpush1.msra.mxu0 0.0
    %2970 = vmatprep.subr.mxu0 0.0
    %2971 = vmatpush1.msra.mxu0 0.0
    %2972 = vmatprep.subr.mxu0 0.0
    %2973 = vmatpush1.msra.mxu0 0.0
    %2974 = vmatprep.subr.mxu0 0.0
    %2975 = vmatpush1.msra.mxu0 0.0
    %2976 = vmatprep.subr.mxu0 0.0
    %2977 = vmatpush1.msra.mxu0 0.0
    %2978 = vmatprep.mubr.f32.mxu0 0.0
    %2979 = vmatmul.mubr.f32.gmra.mrb[0].mxu0 %v2912
    %v2980 = vpop.f32.mrb[0].mxu0
    %v2981 = vadd.f32 0.0, %v2980
    %v2982 = vpop.f32.mrb[0].mxu0
    %2983 = vdwg.mxu0
    %vm2984 = vcmask 123904
    %v2985 = vsel %vm2984, %v2910, 0.0
    %2986 = vadd.xlane.f32.xlu0 %v2985
    %v2987 = vpop.xlane.xlu0 %2986
    %v2988 = vmax.f32 %v2987, 1e-09
    %v2989 = vrcp.pop %v2988
    %v2990 = vmul.f32 %v2981, %v2989
    %v2991 = vmul.f32 %v2990, %v2990
    %vm2992 = vcmask 254976
    %v2993 = vsel %vm2992, %v2991, 0.0
    %2994 = vadd.xlane.f32.xlu0 %v2993
    %v2995 = vpop.xlane.xlu0 %2994
    %v2996 = vrsqrt.pop %v2995
    %v2997 = vmul.f32 %v2995, %v2996
    %vm2998 = vcmp.eq.f32.partialorder %v2995, inf
    %v2999 = vsel %vm2998, %v2995, %v2997
    %vm3000 = vcmp.eq.f32.partialorder %v2995, 0.0
    %v3001 = vand.u32 %v2995, 2147483648
    %v3002 = vsel %vm3000, %v3001, %v2999
    %v3003 = vmax.f32 %v3002, 1e-12
    %v3004 = vrcp.pop %v3003
    %v3005 = vmul.f32 %v2990, %v3004
    %3006 = vst.msk [vmem:[#allocation2] sm:$0x3] %vm2992, %v3005
    // Predicated region
    $region34: #{contrastive_forward.1} parent=1 // pred_check
      _
    $region35: #{contrastive_forward.1} parent=1 // pred_check_branch
      %3008 = sbr.rel (0) target = $region37
    $region36: #{contrastive_forward.1} parent=1 // pred_region
      %s3010 = ssub.s32 32, 32
      %3011 = vsyncadd [#allocation3], %s3010
      %s3013 = sshll.u32 [#allocation2], 4
      %s3014 = int_to_ptr.vmem [resolvable:$true] %s3013
      %3016 = dma.vmem_to_hbm [thread:$0]  %s3014, 32, %s8, [#allocation3]
    $region37: #{contrastive_forward.1} parent=1 // pred_fallthru
      _
    // Predicated region
    $region38: #{contrastive_forward.1} parent=1 // pred_check
      _
    $region39: #{contrastive_forward.1} parent=1 // pred_check_branch
      %3018 = sbr.rel (0) target = $region41
    $region40: #{contrastive_forward.1} parent=1 // pred_region
      %3019 = dma.done [#allocation3], 32
    $region41: #{contrastive_forward.1} parent=1 // pred_fallthru
      _
    %3020 = vsyncpa [#allocation3], 1

</llo_original>
